<compile_context>
chip_gen: v7x
topology: tpu7x:2x2x1
jax: 0.10.0
libtpu: 0.0.40
codegen_flags: <defaults>
</compile_context>

<pallas_src>
import jax
import jax.numpy as jnp
from jax.experimental import pallas as pl
from jax.experimental.pallas import tpu as pltpu

# ----- model dims (mirroring nn.py constants) -------------------------------
INGREDIENTS = 10
INGREDIENTS_TYPES = 10
MAX_INGREDIENTS_PER_TYPE = 77
INGREDIENTS_SPACE = INGREDIENTS_TYPES + MAX_INGREDIENTS_PER_TYPE + 1  # 88

NUM_ACTIONS = 10      # assumed (undefined in the reference snippet)
NUM_INGREDIENTS = 10  # assumed (undefined in the reference snippet)
STEPS = 10
STEPS_SPACE = NUM_ACTIONS + 2 + NUM_INGREDIENTS                        # 22

NUM_FEATURES = INGREDIENTS * INGREDIENTS_SPACE + STEPS * STEPS_SPACE   # 1100
H1 = NUM_FEATURES // 2   # 550
H2 = NUM_FEATURES // 4   # 275
H3 = NUM_FEATURES // 8   # 137

LEAKY_SLOPE = 0.01       # nn.LeakyReLU default negative_slope


def _round_up(v, m):
    return ((v + m - 1) // m) * m


def _cdiv(a, b):
    return -(-a // b)


# Lane-aligned (multiple-of-128) padded *output* dims used inside the kernel.
# The contracting dim of layer 1 stays at NUM_FEATURES (ragged K is masked by
# Mosaic), so x never needs a feature-padding pass.
H1_PAD = _round_up(H1, 128)            # 640
H2_PAD = _round_up(H2, 128)            # 384
H3_PAD = _round_up(H3, 128)            # 256


# ----- kernel ----------------------------------------------------------------
def _leaky_relu(x):
    return jnp.where(x > 0, x, jnp.asarray(LEAKY_SLOPE, x.dtype) * x)


def discriminator_kernel(x_ref,
                         w1_ref, b1_ref,
                         w2_ref, b2_ref,
                         w3_ref, b3_ref,
                         w4_ref, b4_ref,
                         out_ref):
    # Layer 1: (TB, 1100)bf16 @ (1100, 640)bf16 -> f32 accumulator (MXU).
    h = jnp.dot(x_ref[...], w1_ref[...],
                preferred_element_type=jnp.float32) + b1_ref[...]
    # LeakyReLU + recast in bf16: halves elementwise vreg traffic on v6e/v7x,
    # and the next matmul wants a bf16 LHS anyway.
    h = _leaky_relu(h.astype(jnp.bfloat16))

    # Layer 2: (TB, 640) @ (640, 384)
    h = jnp.dot(h, w2_ref[...], preferred_element_type=jnp.float32) + b2_ref[...]
    h = _leaky_relu(h.astype(jnp.bfloat16))

    # Layer 3: (TB, 384) @ (384, 256)
    h = jnp.dot(h, w3_ref[...], preferred_element_type=jnp.float32) + b3_ref[...]
    h = _leaky_relu(h.astype(jnp.bfloat16))

    # Layer 4 (H3 -> 1): VPU multiply + XLU lane reduction (frees the MXU,
    # avoids an N=1 matmul).  bf16 * f32 promotes to f32.
    logits = jnp.sum(h * w4_ref[...], axis=-1, keepdims=True) + b4_ref[...]

    # Numerically stable sigmoid; the divide goes to the EUP reciprocal slot.
    e = jnp.exp(-jnp.abs(logits))
    out_ref[...] = jnp.where(logits >= 0, 1.0, e) * pl.reciprocal(1.0 + e,
                                                                  approx=True)


# ----- wrapper ----------------------------------------------------------------
def _choose_tb(batch):
    """Batch tile: large tiles for large batches, >=2 grid steps when possible
    so both v7x TensorCores get work (dimension_semantics=("parallel",))."""
    b8 = _round_up(max(batch, 1), 8)
    n_tiles = max(2, _cdiv(b8, 512))
    return min(512, _round_up(_cdiv(b8, n_tiles), 8))


def prepare_input(x, tb):
    """Cast to bf16 and pad the batch to a multiple of the batch tile.

    In a real training loop do this once at the producer (or emit bf16
    activations directly) so it is not an extra HBM pass per call.
    """
    b = x.shape[0]
    b_pad = _round_up(max(b, 1), tb)
    x = x.astype(jnp.bfloat16)
    if b_pad != b:
        x = jnp.pad(x, ((0, b_pad - b), (0, 0)))
    return x


def discriminator_forward(x, packed_params):
    (w1, b1, w2, b2, w3, b3, w4, b4) = packed_params
    B = x.shape[0]
    tb = _choose_tb(B)
    x_p = prepare_input(x, tb)
    b_pad = x_p.shape[0]

    def const_spec(shape):
        # Same block every grid step -> stays resident in VMEM across steps.
        return pl.BlockSpec(shape, lambda i: (0, 0))

    out = pl.pallas_call(
        discriminator_kernel,
        out_shape=jax.ShapeDtypeStruct((b_pad, 1), jnp.float32),
        grid=(b_pad // tb,),
        in_specs=[
            # x tiled on batch; trailing dim is the full (ragged) K = 1100.
            pl.BlockSpec((tb, NUM_FEATURES), lambda i: (i, 0)),
            const_spec((NUM_FEATURES, H1_PAD)), const_spec((1, H1_PAD)),
            const_spec((H1_PAD, H2_PAD)),       const_spec((1, H2_PAD)),
            const_spec((H2_PAD, H3_PAD)),       const_spec((1, H3_PAD)),
            const_spec((1, H3_PAD)),            # w4 as an f32 row vector
            const_spec((1, 1)),                 # b4 scalar
        ],
        out_specs=pl.BlockSpec((tb, 1), lambda i: (i, 0)),
        compiler_params=pltpu.CompilerParams(
            dimension_semantics=("parallel",),
            vmem_limit_bytes=32 << 20,
        ),
    )(x_p, w1, b1, w2, b2, w3, b3, w4, b4)

    return out[:B]


# ----- parameter init & packing ----------------------------------------------
def init_params(key):
    """PyTorch-style uniform(-1/sqrt(fan_in), 1/sqrt(fan_in)) init, f32."""
    dims = [(NUM_FEATURES, H1), (H1, H2), (H2, H3), (H3, 1)]
    params = []
    for (fan_in, fan_out) in dims:
        key, kw, kb = jax.random.split(key, 3)
        bound = 1.0 / jnp.sqrt(jnp.float32(fan_in))
        w = jax.random.uniform(kw, (fan_in, fan_out), jnp.float32, -bound, bound)
        b = jax.random.uniform(kb, (1, fan_out), jnp.float32, -bound, bound)
        params += [w, b]
    return tuple(params)


def pack_params(params):
    """Zero-pad output dims to 128-multiples; matmul weights -> bf16.

    Padded weight rows/cols are zero, so padded activation columns stay zero
    through every layer and results are exact up to bf16 rounding.
    """
    (w1, b1, w2, b2, w3, b3, w4, b4) = params

    def pad_w(w, r, c):
        return jnp.zeros((r, c), jnp.float32).at[:w.shape[0], :w.shape[1]].set(w)

    def pad_b(b, c):
        return jnp.zeros((1, c), jnp.float32).at[:, :b.shape[1]].set(b)

    w1p = pad_w(w1, NUM_FEATURES, H1_PAD).astype(jnp.bfloat16)
    w2p = pad_w(w2, H1_PAD, H2_PAD).astype(jnp.bfloat16)
    w3p = pad_w(w3, H2_PAD, H3_PAD).astype(jnp.bfloat16)
    # Final layer used as a VPU reduction -> keep f32, store as a (1, H3_PAD) row.
    w4p = jnp.zeros((1, H3_PAD), jnp.float32).at[0, :H3].set(w4[:, 0])
    b4p = b4.reshape(1, 1).astype(jnp.float32)

    return (w1p, pad_b(b1, H1_PAD),
            w2p, pad_b(b2, H2_PAD),
            w3p, pad_b(b3, H3_PAD),
            w4p, b4p)


# ----- pure-JAX f32 reference -------------------------------------------------
def reference_forward(x, params):
    (w1, b1, w2, b2, w3, b3, w4, b4) = params
    h = x @ w1 + b1
    h = jnp.where(h > 0, h, LEAKY_SLOPE * h)
    h = h @ w2 + b2
    h = jnp.where(h > 0, h, LEAKY_SLOPE * h)
    h = h @ w3 + b3
    h = jnp.where(h > 0, h, LEAKY_SLOPE * h)
    return jax.nn.sigmoid(h @ w4 + b4)


if __name__ == "__main__":
    key = jax.random.PRNGKey(0)
    key, kx = jax.random.split(key)

    B = 2
    x = jax.random.normal(kx, (B, NUM_FEATURES), jnp.float32)
    params = init_params(key)
    packed = pack_params(params)

    out = discriminator_forward(x, packed)
    out = jax.block_until_ready(out)

    ref = reference_forward(x, params)
    assert out.shape == (B, 1)
    # bf16 matmul operands/activations vs f32 reference -> modest tolerance on
    # a [0,1] sigmoid output (documented accuracy tradeoff).
    assert jnp.allclose(out, ref, atol=2e-2, rtol=0.0), (out, ref)

    print("KERNEL_OK")
</pallas_src>

<mosaic_0001>
module attributes {stable_mosaic.version = 11 : i64} {
  func.func @discriminator_kernel(%arg0: i32, %arg1: memref<8x1100xbf16, #tpu.memory_space<vmem>>, %arg2: memref<1100x640xbf16, #tpu.memory_space<vmem>>, %arg3: memref<1x640xf32, #tpu.memory_space<vmem>>, %arg4: memref<640x384xbf16, #tpu.memory_space<vmem>>, %arg5: memref<1x384xf32, #tpu.memory_space<vmem>>, %arg6: memref<384x256xbf16, #tpu.memory_space<vmem>>, %arg7: memref<1x256xf32, #tpu.memory_space<vmem>>, %arg8: memref<1x256xf32, #tpu.memory_space<vmem>>, %arg9: memref<1x1xf32, #tpu.memory_space<vmem>>, %arg10: memref<8x1xf32, #tpu.memory_space<vmem>>) attributes {dimension_semantics = [#tpu.dimension_semantics<parallel>], iteration_bounds = array<i64: 1>, scalar_prefetch = 0 : i64, scratch_operands = 0 : i64, tpu.core_type = #tpu.core_type<tc>, window_params = [{transform_indices = @transform_0, window_bounds = array<i64: 8, 1100>}, {pipeline_mode = #tpu.pipeline_mode<synchronous>, transform_indices = @transform_1, window_bounds = array<i64: 1100, 640>}, {pipeline_mode = #tpu.pipeline_mode<synchronous>, transform_indices = @transform_2, window_bounds = array<i64: 1, 640>}, {pipeline_mode = #tpu.pipeline_mode<synchronous>, transform_indices = @transform_3, window_bounds = array<i64: 640, 384>}, {pipeline_mode = #tpu.pipeline_mode<synchronous>, transform_indices = @transform_4, window_bounds = array<i64: 1, 384>}, {pipeline_mode = #tpu.pipeline_mode<synchronous>, transform_indices = @transform_5, window_bounds = array<i64: 384, 256>}, {pipeline_mode = #tpu.pipeline_mode<synchronous>, transform_indices = @transform_6, window_bounds = array<i64: 1, 256>}, {pipeline_mode = #tpu.pipeline_mode<synchronous>, transform_indices = @transform_7, window_bounds = array<i64: 1, 256>}, {pipeline_mode = #tpu.pipeline_mode<synchronous>, transform_indices = @transform_8, window_bounds = array<i64: 1, 1>}, {transform_indices = @transform_9, window_bounds = array<i64: 8, 1>}]} {
    %c0 = arith.constant 0 : index
    %c0_0 = arith.constant 0 : index
    %0 = vector.load %arg1[%c0, %c0_0] : memref<8x1100xbf16, #tpu.memory_space<vmem>>, vector<8x1100xbf16>
    %c0_1 = arith.constant 0 : index
    %c0_2 = arith.constant 0 : index
    %1 = vector.load %arg2[%c0_1, %c0_2] : memref<1100x640xbf16, #tpu.memory_space<vmem>>, vector<1100x640xbf16>
    %cst = arith.constant dense<0.000000e+00> : vector<8x640xf32>
    %2 = tpu.matmul %0, %1, %cst {dimension_numbers = #tpu.dot_dimension_numbers<[1], [0], [0], [1], [0, 0, 1, 1], [], []>} : vector<8x1100xbf16>, vector<1100x640xbf16>, vector<8x640xf32> -> vector<8x640xf32>
    %c0_3 = arith.constant 0 : index
    %c0_4 = arith.constant 0 : index
    %3 = vector.load %arg3[%c0_3, %c0_4] : memref<1x640xf32, #tpu.memory_space<vmem>>, vector<1x640xf32>
    %4 = vector.broadcast %3 : vector<1x640xf32> to vector<8x640xf32>
    %5 = arith.addf %2, %4 : vector<8x640xf32>
    %6 = arith.truncf %5 : vector<8x640xf32> to vector<8x640xbf16>
    %cst_5 = arith.constant 0.000000e+00 : bf16
    %7 = vector.broadcast %cst_5 : bf16 to vector<8x640xbf16>
    %8 = arith.cmpf ogt, %6, %7 : vector<8x640xbf16>
    %cst_6 = arith.constant 1.000980e-02 : bf16
    %9 = vector.broadcast %cst_6 : bf16 to vector<8x640xbf16>
    %10 = arith.mulf %9, %6 : vector<8x640xbf16>
    %11 = arith.select %8, %6, %10 : vector<8x640xi1>, vector<8x640xbf16>
    %c0_7 = arith.constant 0 : index
    %c0_8 = arith.constant 0 : index
    %12 = vector.load %arg4[%c0_7, %c0_8] : memref<640x384xbf16, #tpu.memory_space<vmem>>, vector<640x384xbf16>
    %cst_9 = arith.constant dense<0.000000e+00> : vector<8x384xf32>
    %13 = tpu.matmul %11, %12, %cst_9 {dimension_numbers = #tpu.dot_dimension_numbers<[1], [0], [0], [1], [0, 0, 1, 1], [], []>} : vector<8x640xbf16>, vector<640x384xbf16>, vector<8x384xf32> -> vector<8x384xf32>
    %c0_10 = arith.constant 0 : index
    %c0_11 = arith.constant 0 : index
    %14 = vector.load %arg5[%c0_10, %c0_11] : memref<1x384xf32, #tpu.memory_space<vmem>>, vector<1x384xf32>
    %15 = vector.broadcast %14 : vector<1x384xf32> to vector<8x384xf32>
    %16 = arith.addf %13, %15 : vector<8x384xf32>
    %17 = arith.truncf %16 : vector<8x384xf32> to vector<8x384xbf16>
    %cst_12 = arith.constant 0.000000e+00 : bf16
    %18 = vector.broadcast %cst_12 : bf16 to vector<8x384xbf16>
    %19 = arith.cmpf ogt, %17, %18 : vector<8x384xbf16>
    %cst_13 = arith.constant 1.000980e-02 : bf16
    %20 = vector.broadcast %cst_13 : bf16 to vector<8x384xbf16>
    %21 = arith.mulf %20, %17 : vector<8x384xbf16>
    %22 = arith.select %19, %17, %21 : vector<8x384xi1>, vector<8x384xbf16>
    %c0_14 = arith.constant 0 : index
    %c0_15 = arith.constant 0 : index
    %23 = vector.load %arg6[%c0_14, %c0_15] : memref<384x256xbf16, #tpu.memory_space<vmem>>, vector<384x256xbf16>
    %cst_16 = arith.constant dense<0.000000e+00> : vector<8x256xf32>
    %24 = tpu.matmul %22, %23, %cst_16 {dimension_numbers = #tpu.dot_dimension_numbers<[1], [0], [0], [1], [0, 0, 1, 1], [], []>} : vector<8x384xbf16>, vector<384x256xbf16>, vector<8x256xf32> -> vector<8x256xf32>
    %c0_17 = arith.constant 0 : index
    %c0_18 = arith.constant 0 : index
    %25 = vector.load %arg7[%c0_17, %c0_18] : memref<1x256xf32, #tpu.memory_space<vmem>>, vector<1x256xf32>
    %26 = vector.broadcast %25 : vector<1x256xf32> to vector<8x256xf32>
    %27 = arith.addf %24, %26 : vector<8x256xf32>
    %28 = arith.truncf %27 : vector<8x256xf32> to vector<8x256xbf16>
    %cst_19 = arith.constant 0.000000e+00 : bf16
    %29 = vector.broadcast %cst_19 : bf16 to vector<8x256xbf16>
    %30 = arith.cmpf ogt, %28, %29 : vector<8x256xbf16>
    %cst_20 = arith.constant 1.000980e-02 : bf16
    %31 = vector.broadcast %cst_20 : bf16 to vector<8x256xbf16>
    %32 = arith.mulf %31, %28 : vector<8x256xbf16>
    %33 = arith.select %30, %28, %32 : vector<8x256xi1>, vector<8x256xbf16>
    %c0_21 = arith.constant 0 : index
    %c0_22 = arith.constant 0 : index
    %34 = vector.load %arg8[%c0_21, %c0_22] : memref<1x256xf32, #tpu.memory_space<vmem>>, vector<1x256xf32>
    %35 = arith.extf %33 : vector<8x256xbf16> to vector<8x256xf32>
    %36 = vector.broadcast %34 : vector<1x256xf32> to vector<8x256xf32>
    %37 = arith.mulf %35, %36 : vector<8x256xf32>
    %cst_23 = arith.constant dense<0.000000e+00> : vector<8xf32>
    %38 = vector.multi_reduction <add>, %37, %cst_23 [1] : vector<8x256xf32> to vector<8xf32>
    %39 = vector.shape_cast %38 : vector<8xf32> to vector<8x1xf32>
    %c0_24 = arith.constant 0 : index
    %c0_25 = arith.constant 0 : index
    %40 = vector.load %arg9[%c0_24, %c0_25] : memref<1x1xf32, #tpu.memory_space<vmem>>, vector<1x1xf32>
    %41 = vector.broadcast %40 : vector<1x1xf32> to vector<8x1xf32>
    %42 = arith.addf %39, %41 : vector<8x1xf32>
    %43 = math.absf %42 : vector<8x1xf32>
    %cst_26 = arith.constant 0.000000e+00 : f32
    %44 = vector.broadcast %cst_26 : f32 to vector<8x1xf32>
    %45 = arith.subf %44, %43 : vector<8x1xf32>
    %46 = math.exp %45 : vector<8x1xf32>
    %cst_27 = arith.constant 0.000000e+00 : f32
    %47 = vector.broadcast %cst_27 : f32 to vector<8x1xf32>
    %48 = arith.cmpf oge, %42, %47 : vector<8x1xf32>
    %cst_28 = arith.constant 1.000000e+00 : f32
    %49 = vector.broadcast %cst_28 : f32 to vector<8x1xf32>
    %50 = arith.select %48, %49, %46 : vector<8x1xi1>, vector<8x1xf32>
    %cst_29 = arith.constant 1.000000e+00 : f32
    %51 = vector.broadcast %cst_29 : f32 to vector<8x1xf32>
    %52 = arith.addf %51, %46 : vector<8x1xf32>
    %53 = tpu.reciprocal %52 {approx = true} : vector<8x1xf32> -> vector<8x1xf32>
    %54 = arith.mulf %50, %53 : vector<8x1xf32>
    %c0_30 = arith.constant 0 : index
    %c0_31 = arith.constant 0 : index
    %55 = vector.load %arg10[%c0_30, %c0_31] : memref<8x1xf32, #tpu.memory_space<vmem>>, vector<8x1xf32>
    tpu.vector_store %arg10[%c0_30, %c0_31], %54 {strides = array<i32>} : memref<8x1xf32, #tpu.memory_space<vmem>>, vector<8x1xf32>,
    return
  }
  func.func @transform_0(%arg0: i32) -> (i32, i32) {
    %c0_i32 = arith.constant 0 : i32
    %c0_i32_0 = arith.constant 0 : i32
    return %arg0, %c0_i32 : i32, i32
  }
  func.func @transform_1(%arg0: i32) -> (i32, i32) {
    %c0_i32 = arith.constant 0 : i32
    %c0_i32_0 = arith.constant 0 : i32
    %c0_i32_1 = arith.constant 0 : i32
    return %c0_i32, %c0_i32_0 : i32, i32
  }
  func.func @transform_2(%arg0: i32) -> (i32, i32) {
    %c0_i32 = arith.constant 0 : i32
    %c0_i32_0 = arith.constant 0 : i32
    %c0_i32_1 = arith.constant 0 : i32
    return %c0_i32, %c0_i32_0 : i32, i32
  }
  func.func @transform_3(%arg0: i32) -> (i32, i32) {
    %c0_i32 = arith.constant 0 : i32
    %c0_i32_0 = arith.constant 0 : i32
    %c0_i32_1 = arith.constant 0 : i32
    return %c0_i32, %c0_i32_0 : i32, i32
  }
  func.func @transform_4(%arg0: i32) -> (i32, i32) {
    %c0_i32 = arith.constant 0 : i32
    %c0_i32_0 = arith.constant 0 : i32
    %c0_i32_1 = arith.constant 0 : i32
    return %c0_i32, %c0_i32_0 : i32, i32
  }
  func.func @transform_5(%arg0: i32) -> (i32, i32) {
    %c0_i32 = arith.constant 0 : i32
    %c0_i32_0 = arith.constant 0 : i32
    %c0_i32_1 = arith.constant 0 : i32
    return %c0_i32, %c0_i32_0 : i32, i32
  }
  func.func @transform_6(%arg0: i32) -> (i32, i32) {
    %c0_i32 = arith.constant 0 : i32
    %c0_i32_0 = arith.constant 0 : i32
    %c0_i32_1 = arith.constant 0 : i32
    return %c0_i32, %c0_i32_0 : i32, i32
  }
  func.func @transform_7(%arg0: i32) -> (i32, i32) {
    %c0_i32 = arith.constant 0 : i32
    %c0_i32_0 = arith.constant 0 : i32
    %c0_i32_1 = arith.constant 0 : i32
    return %c0_i32, %c0_i32_0 : i32, i32
  }
  func.func @transform_8(%arg0: i32) -> (i32, i32) {
    %c0_i32 = arith.constant 0 : i32
    %c0_i32_0 = arith.constant 0 : i32
    %c0_i32_1 = arith.constant 0 : i32
    return %c0_i32, %c0_i32_0 : i32, i32
  }
  func.func @transform_9(%arg0: i32) -> (i32, i32) {
    %c0_i32 = arith.constant 0 : i32
    %c0_i32_0 = arith.constant 0 : i32
    return %arg0, %c0_i32 : i32, i32
  }
}

</mosaic_0001>

<llo_original>
// kernel: tpu_custom_call.1
$region0: #{tpu_custom_call.1}
  #allocation0 [shape = 'u32[]', space=smem, size = 0x4, offset = 0x4, fixed_abs, tag = 'smem constant byte address 0x4 - core index']
  #allocation1 [shape = 'u32[144,128]{1,0:T(1,128)}', space=vmem, size = 0x12000, scoped, tag = 'internal scratch']
  #allocation2 [shape = 'f32[1,1]{1,0:T(1,128)S(1)}', space=vmem, size = 0x200, scoped, tag = 'scoped memory for tpu_custom_call.1']
  %s0 = inlined_call_operand.hbm [shape: bf16[8,1100], index: 0, kind: input, shape index: {}]
  %s1 = inlined_call_operand.hbm [shape: bf16[1100,640], index: 1, kind: input, shape index: {}]
  %s2 = inlined_call_operand.hbm [shape: f32[1,640], index: 2, kind: input, shape index: {}]
  %s3 = inlined_call_operand.hbm [shape: bf16[640,384], index: 3, kind: input, shape index: {}]
  %s4 = inlined_call_operand.hbm [shape: f32[1,384], index: 4, kind: input, shape index: {}]
  %s5 = inlined_call_operand.hbm [shape: bf16[384,256], index: 5, kind: input, shape index: {}]
  %s6 = inlined_call_operand.hbm [shape: f32[1,256], index: 6, kind: input, shape index: {}]
  %s7 = inlined_call_operand.hbm [shape: f32[1,256], index: 7, kind: input, shape index: {}]
  %s8 = inlined_call_operand.<no memory space> [shape: f32[1,1], index: 8, kind: input, shape index: {}]
  %s9 = inlined_call_operand.vmem [shape: f32[8,1], index: 9, kind: output, shape index: {}]
  %s10 = sld [smem:[#allocation0]]
  $region78: #{tpu_custom_call.1} parent=0
    _
  %s12 = ssub.s32 1, %s10
  %s13 = scalar_select 0, %s12, %s10
  %v14 = vstv %s8
  %15 = vst [vmem:[#allocation2] sm:$0x1] %v14
  $region1: #{tpu_custom_call.1} parent=0
    #allocation3 [shape = 'u8[18432]{0}', space=vmem, size = 0x4800, scoped, tag = 'input window, operand 0, single buffered']
    #allocation4 [shape = 's32[1]{0}', space=sflag, size = 0x4, scoped, tag = 'scoped memory for tpu_custom_call.1']
    #allocation5 [shape = 'u8[1413120]{0}', space=vmem, size = 0x159000, scoped, tag = 'input window, operand 1, single buffered']
    #allocation6 [shape = 's32[1]{0}', space=sflag, size = 0x4, scoped, tag = 'scoped memory for tpu_custom_call.1']
    #allocation7 [shape = 'u8[2560]{0}', space=vmem, size = 0xc00, scoped, tag = 'input window, operand 2, single buffered']
    #allocation8 [shape = 'u8[491520]{0}', space=vmem, size = 0x78000, scoped, tag = 'input window, operand 3, single buffered']
    #allocation9 [shape = 's32[1]{0}', space=sflag, size = 0x4, scoped, tag = 'scoped memory for tpu_custom_call.1']
    #allocation10 [shape = 'u8[1536]{0}', space=vmem, size = 0x800, scoped, tag = 'input window, operand 4, single buffered']
    #allocation11 [shape = 'u8[196608]{0}', space=vmem, size = 0x30000, scoped, tag = 'input window, operand 5, single buffered']
    #allocation12 [shape = 's32[1]{0}', space=sflag, size = 0x4, scoped, tag = 'scoped memory for tpu_custom_call.1']
    #allocation13 [shape = 'u8[1024]{0}', space=vmem, size = 0x400, scoped, tag = 'input window, operand 6, single buffered']
    #allocation14 [shape = 'u8[1024]{0}', space=vmem, size = 0x400, scoped, tag = 'input window, operand 7, single buffered']
    #allocation15 [shape = 's32[1]{0}', space=sflag, size = 0x4, scoped, tag = 'scoped memory for tpu_custom_call.1']
    %16 = vsyncpa [#allocation4], 0
    %17 = vsyncpa [#allocation6], 0
    %18 = vsyncpa [#allocation9], 0
    %19 = vsyncpa [#allocation12], 0
    %20 = vsyncpa [#allocation15], 0
    // Predicated region
    $region2: #{tpu_custom_call.1} parent=1 // pred_check
      _
    $region3: #{tpu_custom_call.1} parent=1 // pred_check_branch
      %22 = sbr.rel (0) target = $region5
    $region4: #{tpu_custom_call.1} parent=1 // pred_region
      %s24 = ssub.s32 576, 576
      %25 = vsyncadd [#allocation4], %s24
      %s27 = sshll.u32 [#allocation3], 4
      %s28 = int_to_ptr.vmem [resolvable:$true] %s27
      %30 = dma.hbm_to_vmem [thread:$0]  %s0, 576, %s28, [#allocation4]
    $region5: #{tpu_custom_call.1} parent=1 // pred_fallthru
      _
    // Predicated region
    $region6: #{tpu_custom_call.1} parent=1 // pred_check
      _
    $region7: #{tpu_custom_call.1} parent=1 // pred_check_branch
      %32 = sbr.rel (0) target = $region9
    $region8: #{tpu_custom_call.1} parent=1 // pred_region
      %s34 = ssub.s32 44160, 44160
      %35 = vsyncadd [#allocation6], %s34
      %s36 = sshll.u32 [#allocation5], 4
      %s37 = int_to_ptr.vmem [resolvable:$true] %s36
      %42 = dma.hbm_to_vmem [thread:$0]  %s1, 44160, %s37, [#allocation6], 320, 320, 20
    $region9: #{tpu_custom_call.1} parent=1 // pred_fallthru
      _
    // Predicated region
    $region10: #{tpu_custom_call.1} parent=1 // pred_check
      _
    $region11: #{tpu_custom_call.1} parent=1 // pred_check_branch
      %44 = sbr.rel (0) target = $region13
    $region12: #{tpu_custom_call.1} parent=1 // pred_region
      %s46 = ssub.s32 80, 80
      %47 = vsyncadd [#allocation6], %s46
      %s49 = sshll.u32 [#allocation7], 4
      %s50 = int_to_ptr.vmem [resolvable:$true] %s49
      %52 = dma.hbm_to_vmem [thread:$0]  %s2, 80, %s50, [#allocation6]
    $region13: #{tpu_custom_call.1} parent=1 // pred_fallthru
      _
    // Predicated region
    $region14: #{tpu_custom_call.1} parent=1 // pred_check
      _
    $region15: #{tpu_custom_call.1} parent=1 // pred_check_branch
      %54 = sbr.rel (0) target = $region17
    $region16: #{tpu_custom_call.1} parent=1 // pred_region
      %s56 = ssub.s32 15360, 15360
      %57 = vsyncadd [#allocation9], %s56
      %s58 = sshll.u32 [#allocation8], 4
      %s59 = int_to_ptr.vmem [resolvable:$true] %s58
      %64 = dma.hbm_to_vmem [thread:$0]  %s3, 15360, %s59, [#allocation9], 192, 192, 12
    $region17: #{tpu_custom_call.1} parent=1 // pred_fallthru
      _
    // Predicated region
    $region18: #{tpu_custom_call.1} parent=1 // pred_check
      _
    $region19: #{tpu_custom_call.1} parent=1 // pred_check_branch
      %66 = sbr.rel (0) target = $region21
    $region20: #{tpu_custom_call.1} parent=1 // pred_region
      %s68 = ssub.s32 48, 48
      %69 = vsyncadd [#allocation9], %s68
      %s71 = sshll.u32 [#allocation10], 4
      %s72 = int_to_ptr.vmem [resolvable:$true] %s71
      %74 = dma.hbm_to_vmem [thread:$0]  %s4, 48, %s72, [#allocation9]
    $region21: #{tpu_custom_call.1} parent=1 // pred_fallthru
      _
    // Predicated region
    $region22: #{tpu_custom_call.1} parent=1 // pred_check
      _
    $region23: #{tpu_custom_call.1} parent=1 // pred_check_branch
      %76 = sbr.rel (0) target = $region25
    $region24: #{tpu_custom_call.1} parent=1 // pred_region
      %s78 = ssub.s32 6144, 6144
      %79 = vsyncadd [#allocation12], %s78
      %s80 = sshll.u32 [#allocation11], 4
      %s81 = int_to_ptr.vmem [resolvable:$true] %s80
      %86 = dma.hbm_to_vmem [thread:$0]  %s5, 6144, %s81, [#allocation12], 128, 128, 8
    $region25: #{tpu_custom_call.1} parent=1 // pred_fallthru
      _
    // Predicated region
    $region26: #{tpu_custom_call.1} parent=1 // pred_check
      _
    $region27: #{tpu_custom_call.1} parent=1 // pred_check_branch
      %88 = sbr.rel (0) target = $region29
    $region28: #{tpu_custom_call.1} parent=1 // pred_region
      %s90 = ssub.s32 32, 32
      %91 = vsyncadd [#allocation12], %s90
      %s93 = sshll.u32 [#allocation13], 4
      %s94 = int_to_ptr.vmem [resolvable:$true] %s93
      %96 = dma.hbm_to_vmem [thread:$0]  %s6, 32, %s94, [#allocation12]
    $region29: #{tpu_custom_call.1} parent=1 // pred_fallthru
      _
    // Predicated region
    $region30: #{tpu_custom_call.1} parent=1 // pred_check
      _
    $region31: #{tpu_custom_call.1} parent=1 // pred_check_branch
      %98 = sbr.rel (0) target = $region33
    $region32: #{tpu_custom_call.1} parent=1 // pred_region
      %s100 = ssub.s32 32, 32
      %101 = vsyncadd [#allocation15], %s100
      %s103 = sshll.u32 [#allocation14], 4
      %s104 = int_to_ptr.vmem [resolvable:$true] %s103
      %106 = dma.hbm_to_vmem [thread:$0]  %s7, 32, %s104, [#allocation15]
    $region33: #{tpu_custom_call.1} parent=1 // pred_fallthru
      _
    // Predicated region
    $region34: #{tpu_custom_call.1} parent=1 // pred_check
      _
    $region35: #{tpu_custom_call.1} parent=1 // pred_check_branch
      %108 = sbr.rel (0) target = $region37
    $region36: #{tpu_custom_call.1} parent=1 // pred_region
      _
    $region37: #{tpu_custom_call.1} parent=1 // pred_fallthru
      _
    // Predicated region
    $region38: #{tpu_custom_call.1} parent=1 // pred_check
      _
    $region39: #{tpu_custom_call.1} parent=1 // pred_check_branch
      %110 = sbr.rel (0) target = $region41
    $region40: #{tpu_custom_call.1} parent=1 // pred_region
      %111 = dma.done [#allocation4], 576
    $region41: #{tpu_custom_call.1} parent=1 // pred_fallthru
      _
    // Predicated region
    $region42: #{tpu_custom_call.1} parent=1 // pred_check
      _
    $region43: #{tpu_custom_call.1} parent=1 // pred_check_branch
      %113 = sbr.rel (0) target = $region45
    $region44: #{tpu_custom_call.1} parent=1 // pred_region
      %114 = dma.done [#allocation6], 44160
    $region45: #{tpu_custom_call.1} parent=1 // pred_fallthru
      _
    // Predicated region
    $region46: #{tpu_custom_call.1} parent=1 // pred_check
      _
    $region47: #{tpu_custom_call.1} parent=1 // pred_check_branch
      %116 = sbr.rel (0) target = $region49
    $region48: #{tpu_custom_call.1} parent=1 // pred_region
      %117 = dma.done [#allocation6], 80
    $region49: #{tpu_custom_call.1} parent=1 // pred_fallthru
      _
    // Predicated region
    $region50: #{tpu_custom_call.1} parent=1 // pred_check
      _
    $region51: #{tpu_custom_call.1} parent=1 // pred_check_branch
      %119 = sbr.rel (0) target = $region53
    $region52: #{tpu_custom_call.1} parent=1 // pred_region
      %120 = dma.done [#allocation9], 15360
    $region53: #{tpu_custom_call.1} parent=1 // pred_fallthru
      _
    // Predicated region
    $region54: #{tpu_custom_call.1} parent=1 // pred_check
      _
    $region55: #{tpu_custom_call.1} parent=1 // pred_check_branch
      %122 = sbr.rel (0) target = $region57
    $region56: #{tpu_custom_call.1} parent=1 // pred_region
      %123 = dma.done [#allocation9], 48
    $region57: #{tpu_custom_call.1} parent=1 // pred_fallthru
      _
    // Predicated region
    $region58: #{tpu_custom_call.1} parent=1 // pred_check
      _
    $region59: #{tpu_custom_call.1} parent=1 // pred_check_branch
      %125 = sbr.rel (0) target = $region61
    $region60: #{tpu_custom_call.1} parent=1 // pred_region
      %126 = dma.done [#allocation12], 6144
    $region61: #{tpu_custom_call.1} parent=1 // pred_fallthru
      _
    // Predicated region
    $region62: #{tpu_custom_call.1} parent=1 // pred_check
      _
    $region63: #{tpu_custom_call.1} parent=1 // pred_check_branch
      %128 = sbr.rel (0) target = $region65
    $region64: #{tpu_custom_call.1} parent=1 // pred_region
      %129 = dma.done [#allocation12], 32
    $region65: #{tpu_custom_call.1} parent=1 // pred_fallthru
      _
    // Predicated region
    $region66: #{tpu_custom_call.1} parent=1 // pred_check
      _
    $region67: #{tpu_custom_call.1} parent=1 // pred_check_branch
      %131 = sbr.rel (0) target = $region69
    $region68: #{tpu_custom_call.1} parent=1 // pred_region
      %132 = dma.done [#allocation15], 32
    $region69: #{tpu_custom_call.1} parent=1 // pred_fallthru
      _
    %v135 = vld [vmem:[#allocation3] sm:$0xff]
    %v136 = vld [vmem:[#allocation3 + $0x8] sm:$0xff]
    %v137 = vld [vmem:[#allocation3 + $0x10] sm:$0xff]
    %v138 = vld [vmem:[#allocation3 + $0x18] sm:$0xff]
    %v139 = vld [vmem:[#allocation3 + $0x20] sm:$0xf]
    %v140 = vld [vmem:[#allocation5] sm:$0xff]
    %v141 = vld [vmem:[#allocation5 + $0x8] sm:$0xff]
    %v142 = vld [vmem:[#allocation5 + $0x10] sm:$0xf]
    %v143 = vld [vmem:[#allocation5 + $0x14] sm:$0xff]
    %v144 = vld [vmem:[#allocation5 + $0x1c] sm:$0xff]
    %v145 = vld [vmem:[#allocation5 + $0x24] sm:$0xf]
    %v146 = vld [vmem:[#allocation5 + $0x28] sm:$0xff]
    %v147 = vld [vmem:[#allocation5 + $0x30] sm:$0xff]
    %v148 = vld [vmem:[#allocation5 + $0x38] sm:$0xf]
    %v149 = vld [vmem:[#allocation5 + $0x3c] sm:$0xff]
    %v150 = vld [vmem:[#allocation5 + $0x44] sm:$0xff]
    %v151 = vld [vmem:[#allocation5 + $0x4c] sm:$0xf]
    %v152 = vld [vmem:[#allocation5 + $0x50] sm:$0xff]
    %v153 = vld [vmem:[#allocation5 + $0x58] sm:$0xff]
    %v154 = vld [vmem:[#allocation5 + $0x60] sm:$0xf]
    %v155 = vld [vmem:[#allocation5 + $0x64] sm:$0xff]
    %v156 = vld [vmem:[#allocation5 + $0x6c] sm:$0xff]
    %v157 = vld [vmem:[#allocation5 + $0x74] sm:$0xf]
    %v158 = vld [vmem:[#allocation5 + $0x78] sm:$0xff]
    %v159 = vld [vmem:[#allocation5 + $0x80] sm:$0xff]
    %v160 = vld [vmem:[#allocation5 + $0x88] sm:$0xf]
    %v161 = vld [vmem:[#allocation5 + $0x8c] sm:$0xff]
    %v162 = vld [vmem:[#allocation5 + $0x94] sm:$0xff]
    %v163 = vld [vmem:[#allocation5 + $0x9c] sm:$0xf]
    %v164 = vld [vmem:[#allocation5 + $0xa0] sm:$0xff]
    %v165 = vld [vmem:[#allocation5 + $0xa8] sm:$0xff]
    %v166 = vld [vmem:[#allocation5 + $0xb0] sm:$0xf]
    %v167 = vld [vmem:[#allocation5 + $0xb4] sm:$0xff]
    %v168 = vld [vmem:[#allocation5 + $0xbc] sm:$0xff]
    %v169 = vld [vmem:[#allocation5 + $0xc4] sm:$0xf]
    %v170 = vld [vmem:[#allocation5 + $0xc8] sm:$0xff]
    %v171 = vld [vmem:[#allocation5 + $0xd0] sm:$0xff]
    %v172 = vld [vmem:[#allocation5 + $0xd8] sm:$0xf]
    %v173 = vld [vmem:[#allocation5 + $0xdc] sm:$0xff]
    %v174 = vld [vmem:[#allocation5 + $0xe4] sm:$0xff]
    %v175 = vld [vmem:[#allocation5 + $0xec] sm:$0xf]
    %v176 = vld [vmem:[#allocation5 + $0xf0] sm:$0xff]
    %v177 = vld [vmem:[#allocation5 + $0xf8] sm:$0xff]
    %v178 = vld [vmem:[#allocation5 + $0x100] sm:$0xf]
    %v179 = vld [vmem:[#allocation5 + $0x104] sm:$0xff]
    %v180 = vld [vmem:[#allocation5 + $0x10c] sm:$0xff]
    %v181 = vld [vmem:[#allocation5 + $0x114] sm:$0xf]
    %v182 = vld [vmem:[#allocation5 + $0x118] sm:$0xff]
    %v183 = vld [vmem:[#allocation5 + $0x120] sm:$0xff]
    %v184 = vld [vmem:[#allocation5 + $0x128] sm:$0xf]
    %v185 = vld [vmem:[#allocation5 + $0x12c] sm:$0xff]
    %v186 = vld [vmem:[#allocation5 + $0x134] sm:$0xff]
    %v187 = vld [vmem:[#allocation5 + $0x13c] sm:$0xf]
    %v188 = vld [vmem:[#allocation5 + $0x140] sm:$0xff]
    %v189 = vld [vmem:[#allocation5 + $0x148] sm:$0xff]
    %v190 = vld [vmem:[#allocation5 + $0x150] sm:$0xf]
    %v191 = vld [vmem:[#allocation5 + $0x154] sm:$0xff]
    %v192 = vld [vmem:[#allocation5 + $0x15c] sm:$0xff]
    %v193 = vld [vmem:[#allocation5 + $0x164] sm:$0xf]
    %v194 = vld [vmem:[#allocation5 + $0x168] sm:$0xff]
    %v195 = vld [vmem:[#allocation5 + $0x170] sm:$0xff]
    %v196 = vld [vmem:[#allocation5 + $0x178] sm:$0xf]
    %v197 = vld [vmem:[#allocation5 + $0x17c] sm:$0xff]
    %v198 = vld [vmem:[#allocation5 + $0x184] sm:$0xff]
    %v199 = vld [vmem:[#allocation5 + $0x18c] sm:$0xf]
    %v200 = vld [vmem:[#allocation5 + $0x190] sm:$0xff]
    %v201 = vld [vmem:[#allocation5 + $0x198] sm:$0xff]
    %v202 = vld [vmem:[#allocation5 + $0x1a0] sm:$0xf]
    %v203 = vld [vmem:[#allocation5 + $0x1a4] sm:$0xff]
    %v204 = vld [vmem:[#allocation5 + $0x1ac] sm:$0xff]
    %v205 = vld [vmem:[#allocation5 + $0x1b4] sm:$0xf]
    %v206 = vld [vmem:[#allocation5 + $0x1b8] sm:$0xff]
    %v207 = vld [vmem:[#allocation5 + $0x1c0] sm:$0xff]
    %v208 = vld [vmem:[#allocation5 + $0x1c8] sm:$0xf]
    %v209 = vld [vmem:[#allocation5 + $0x1cc] sm:$0xff]
    %v210 = vld [vmem:[#allocation5 + $0x1d4] sm:$0xff]
    %v211 = vld [vmem:[#allocation5 + $0x1dc] sm:$0xf]
    %v212 = vld [vmem:[#allocation5 + $0x1e0] sm:$0xff]
    %v213 = vld [vmem:[#allocation5 + $0x1e8] sm:$0xff]
    %v214 = vld [vmem:[#allocation5 + $0x1f0] sm:$0xf]
    %v215 = vld [vmem:[#allocation5 + $0x1f4] sm:$0xff]
    %v216 = vld [vmem:[#allocation5 + $0x1fc] sm:$0xff]
    %v217 = vld [vmem:[#allocation5 + $0x204] sm:$0xf]
    %v218 = vld [vmem:[#allocation5 + $0x208] sm:$0xff]
    %v219 = vld [vmem:[#allocation5 + $0x210] sm:$0xff]
    %v220 = vld [vmem:[#allocation5 + $0x218] sm:$0xf]
    %v221 = vld [vmem:[#allocation5 + $0x21c] sm:$0xff]
    %v222 = vld [vmem:[#allocation5 + $0x224] sm:$0xff]
    %v223 = vld [vmem:[#allocation5 + $0x22c] sm:$0xf]
    %v224 = vld [vmem:[#allocation5 + $0x230] sm:$0xff]
    %v225 = vld [vmem:[#allocation5 + $0x238] sm:$0xff]
    %v226 = vld [vmem:[#allocation5 + $0x240] sm:$0xf]
    %v227 = vld [vmem:[#allocation5 + $0x244] sm:$0xff]
    %v228 = vld [vmem:[#allocation5 + $0x24c] sm:$0xff]
    %v229 = vld [vmem:[#allocation5 + $0x254] sm:$0xf]
    %v230 = vld [vmem:[#allocation5 + $0x258] sm:$0xff]
    %v231 = vld [vmem:[#allocation5 + $0x260] sm:$0xff]
    %v232 = vld [vmem:[#allocation5 + $0x268] sm:$0xf]
    %v233 = vld [vmem:[#allocation5 + $0x26c] sm:$0xff]
    %v234 = vld [vmem:[#allocation5 + $0x274] sm:$0xff]
    %v235 = vld [vmem:[#allocation5 + $0x27c] sm:$0xf]
    %v236 = vld [vmem:[#allocation5 + $0x280] sm:$0xff]
    %v237 = vld [vmem:[#allocation5 + $0x288] sm:$0xff]
    %v238 = vld [vmem:[#allocation5 + $0x290] sm:$0xf]
    %v239 = vld [vmem:[#allocation5 + $0x294] sm:$0xff]
    %v240 = vld [vmem:[#allocation5 + $0x29c] sm:$0xff]
    %v241 = vld [vmem:[#allocation5 + $0x2a4] sm:$0xf]
    %v242 = vld [vmem:[#allocation5 + $0x2a8] sm:$0xff]
    %v243 = vld [vmem:[#allocation5 + $0x2b0] sm:$0xff]
    %v244 = vld [vmem:[#allocation5 + $0x2b8] sm:$0xf]
    %v245 = vld [vmem:[#allocation5 + $0x2bc] sm:$0xff]
    %v246 = vld [vmem:[#allocation5 + $0x2c4] sm:$0xff]
    %v247 = vld [vmem:[#allocation5 + $0x2cc] sm:$0xf]
    %v248 = vld [vmem:[#allocation5 + $0x2d0] sm:$0xff]
    %v249 = vld [vmem:[#allocation5 + $0x2d8] sm:$0xff]
    %v250 = vld [vmem:[#allocation5 + $0x2e0] sm:$0xf]
    %v251 = vld [vmem:[#allocation5 + $0x2e4] sm:$0xff]
    %v252 = vld [vmem:[#allocation5 + $0x2ec] sm:$0xff]
    %v253 = vld [vmem:[#allocation5 + $0x2f4] sm:$0xf]
    %v254 = vld [vmem:[#allocation5 + $0x2f8] sm:$0xff]
    %v255 = vld [vmem:[#allocation5 + $0x300] sm:$0xff]
    %v256 = vld [vmem:[#allocation5 + $0x308] sm:$0xf]
    %v257 = vld [vmem:[#allocation5 + $0x30c] sm:$0xff]
    %v258 = vld [vmem:[#allocation5 + $0x314] sm:$0xff]
    %v259 = vld [vmem:[#allocation5 + $0x31c] sm:$0xf]
    %v260 = vld [vmem:[#allocation5 + $0x320] sm:$0xff]
    %v261 = vld [vmem:[#allocation5 + $0x328] sm:$0xff]
    %v262 = vld [vmem:[#allocation5 + $0x330] sm:$0xf]
    %v263 = vld [vmem:[#allocation5 + $0x334] sm:$0xff]
    %v264 = vld [vmem:[#allocation5 + $0x33c] sm:$0xff]
    %v265 = vld [vmem:[#allocation5 + $0x344] sm:$0xf]
    %v266 = vld [vmem:[#allocation5 + $0x348] sm:$0xff]
    %v267 = vld [vmem:[#allocation5 + $0x350] sm:$0xff]
    %v268 = vld [vmem:[#allocation5 + $0x358] sm:$0xf]
    %v269 = vld [vmem:[#allocation5 + $0x35c] sm:$0xff]
    %v270 = vld [vmem:[#allocation5 + $0x364] sm:$0xff]
    %v271 = vld [vmem:[#allocation5 + $0x36c] sm:$0xf]
    %v272 = vld [vmem:[#allocation5 + $0x370] sm:$0xff]
    %v273 = vld [vmem:[#allocation5 + $0x378] sm:$0xff]
    %v274 = vld [vmem:[#allocation5 + $0x380] sm:$0xf]
    %v275 = vld [vmem:[#allocation5 + $0x384] sm:$0xff]
    %v276 = vld [vmem:[#allocation5 + $0x38c] sm:$0xff]
    %v277 = vld [vmem:[#allocation5 + $0x394] sm:$0xf]
    %v278 = vld [vmem:[#allocation5 + $0x398] sm:$0xff]
    %v279 = vld [vmem:[#allocation5 + $0x3a0] sm:$0xff]
    %v280 = vld [vmem:[#allocation5 + $0x3a8] sm:$0xf]
    %v281 = vld [vmem:[#allocation5 + $0x3ac] sm:$0xff]
    %v282 = vld [vmem:[#allocation5 + $0x3b4] sm:$0xff]
    %v283 = vld [vmem:[#allocation5 + $0x3bc] sm:$0xf]
    %v284 = vld [vmem:[#allocation5 + $0x3c0] sm:$0xff]
    %v285 = vld [vmem:[#allocation5 + $0x3c8] sm:$0xff]
    %v286 = vld [vmem:[#allocation5 + $0x3d0] sm:$0xf]
    %v287 = vld [vmem:[#allocation5 + $0x3d4] sm:$0xff]
    %v288 = vld [vmem:[#allocation5 + $0x3dc] sm:$0xff]
    %v289 = vld [vmem:[#allocation5 + $0x3e4] sm:$0xf]
    %v290 = vld [vmem:[#allocation5 + $0x3e8] sm:$0xff]
    %v291 = vld [vmem:[#allocation5 + $0x3f0] sm:$0xff]
    %v292 = vld [vmem:[#allocation5 + $0x3f8] sm:$0xf]
    %v293 = vld [vmem:[#allocation5 + $0x3fc] sm:$0xff]
    %v294 = vld [vmem:[#allocation5 + $0x404] sm:$0xff]
    %v295 = vld [vmem:[#allocation5 + $0x40c] sm:$0xf]
    %v296 = vld [vmem:[#allocation5 + $0x410] sm:$0xff]
    %v297 = vld [vmem:[#allocation5 + $0x418] sm:$0xff]
    %v298 = vld [vmem:[#allocation5 + $0x420] sm:$0xf]
    %v299 = vld [vmem:[#allocation5 + $0x424] sm:$0xff]
    %v300 = vld [vmem:[#allocation5 + $0x42c] sm:$0xff]
    %v301 = vld [vmem:[#allocation5 + $0x434] sm:$0xf]
    %v302 = vld [vmem:[#allocation5 + $0x438] sm:$0xff]
    %v303 = vld [vmem:[#allocation5 + $0x440] sm:$0xff]
    %v304 = vld [vmem:[#allocation5 + $0x448] sm:$0xf]
    %v305 = vld [vmem:[#allocation5 + $0x44c] sm:$0xff]
    %v306 = vld [vmem:[#allocation5 + $0x454] sm:$0xff]
    %v307 = vld [vmem:[#allocation5 + $0x45c] sm:$0xf]
    %v308 = vld [vmem:[#allocation5 + $0x460] sm:$0xff]
    %v309 = vld [vmem:[#allocation5 + $0x468] sm:$0xff]
    %v310 = vld [vmem:[#allocation5 + $0x470] sm:$0xf]
    %v311 = vld [vmem:[#allocation5 + $0x474] sm:$0xff]
    %v312 = vld [vmem:[#allocation5 + $0x47c] sm:$0xff]
    %v313 = vld [vmem:[#allocation5 + $0x484] sm:$0xf]
    %v314 = vld [vmem:[#allocation5 + $0x488] sm:$0xff]
    %v315 = vld [vmem:[#allocation5 + $0x490] sm:$0xff]
    %v316 = vld [vmem:[#allocation5 + $0x498] sm:$0xf]
    %v317 = vld [vmem:[#allocation5 + $0x49c] sm:$0xff]
    %v318 = vld [vmem:[#allocation5 + $0x4a4] sm:$0xff]
    %v319 = vld [vmem:[#allocation5 + $0x4ac] sm:$0xf]
    %v320 = vld [vmem:[#allocation5 + $0x4b0] sm:$0xff]
    %v321 = vld [vmem:[#allocation5 + $0x4b8] sm:$0xff]
    %v322 = vld [vmem:[#allocation5 + $0x4c0] sm:$0xf]
    %v323 = vld [vmem:[#allocation5 + $0x4c4] sm:$0xff]
    %v324 = vld [vmem:[#allocation5 + $0x4cc] sm:$0xff]
    %v325 = vld [vmem:[#allocation5 + $0x4d4] sm:$0xf]
    %v326 = vld [vmem:[#allocation5 + $0x4d8] sm:$0xff]
    %v327 = vld [vmem:[#allocation5 + $0x4e0] sm:$0xff]
    %v328 = vld [vmem:[#allocation5 + $0x4e8] sm:$0xf]
    %v329 = vld [vmem:[#allocation5 + $0x4ec] sm:$0xff]
    %v330 = vld [vmem:[#allocation5 + $0x4f4] sm:$0xff]
    %v331 = vld [vmem:[#allocation5 + $0x4fc] sm:$0xf]
    %v332 = vld [vmem:[#allocation5 + $0x500] sm:$0xff]
    %v333 = vld [vmem:[#allocation5 + $0x508] sm:$0xff]
    %v334 = vld [vmem:[#allocation5 + $0x510] sm:$0xf]
    %v335 = vld [vmem:[#allocation5 + $0x514] sm:$0xff]
    %v336 = vld [vmem:[#allocation5 + $0x51c] sm:$0xff]
    %v337 = vld [vmem:[#allocation5 + $0x524] sm:$0xf]
    %v338 = vld [vmem:[#allocation5 + $0x528] sm:$0xff]
    %v339 = vld [vmem:[#allocation5 + $0x530] sm:$0xff]
    %v340 = vld [vmem:[#allocation5 + $0x538] sm:$0xf]
    %v341 = vld [vmem:[#allocation5 + $0x53c] sm:$0xff]
    %v342 = vld [vmem:[#allocation5 + $0x544] sm:$0xff]
    %v343 = vld [vmem:[#allocation5 + $0x54c] sm:$0xf]
    %v344 = vld [vmem:[#allocation5 + $0x550] sm:$0xff]
    %v345 = vld [vmem:[#allocation5 + $0x558] sm:$0xff]
    %v346 = vld [vmem:[#allocation5 + $0x560] sm:$0xf]
    %v347 = vld [vmem:[#allocation5 + $0x564] sm:$0xff]
    %v348 = vld [vmem:[#allocation5 + $0x56c] sm:$0xff]
    %v349 = vld [vmem:[#allocation5 + $0x574] sm:$0xf]
    %v350 = vld [vmem:[#allocation5 + $0x578] sm:$0xff]
    %v351 = vld [vmem:[#allocation5 + $0x580] sm:$0xff]
    %v352 = vld [vmem:[#allocation5 + $0x588] sm:$0xf]
    %v353 = vld [vmem:[#allocation5 + $0x58c] sm:$0xff]
    %v354 = vld [vmem:[#allocation5 + $0x594] sm:$0xff]
    %v355 = vld [vmem:[#allocation5 + $0x59c] sm:$0xf]
    %v356 = vld [vmem:[#allocation5 + $0x5a0] sm:$0xff]
    %v357 = vld [vmem:[#allocation5 + $0x5a8] sm:$0xff]
    %v358 = vld [vmem:[#allocation5 + $0x5b0] sm:$0xf]
    %v359 = vld [vmem:[#allocation5 + $0x5b4] sm:$0xff]
    %v360 = vld [vmem:[#allocation5 + $0x5bc] sm:$0xff]
    %v361 = vld [vmem:[#allocation5 + $0x5c4] sm:$0xf]
    %v362 = vld [vmem:[#allocation5 + $0x5c8] sm:$0xff]
    %v363 = vld [vmem:[#allocation5 + $0x5d0] sm:$0xff]
    %v364 = vld [vmem:[#allocation5 + $0x5d8] sm:$0xf]
    %v365 = vld [vmem:[#allocation5 + $0x5dc] sm:$0xff]
    %v366 = vld [vmem:[#allocation5 + $0x5e4] sm:$0xff]
    %v367 = vld [vmem:[#allocation5 + $0x5ec] sm:$0xf]
    %v368 = vld [vmem:[#allocation5 + $0x5f0] sm:$0xff]
    %v369 = vld [vmem:[#allocation5 + $0x5f8] sm:$0xff]
    %v370 = vld [vmem:[#allocation5 + $0x600] sm:$0xf]
    %v371 = vld [vmem:[#allocation5 + $0x604] sm:$0xff]
    %v372 = vld [vmem:[#allocation5 + $0x60c] sm:$0xff]
    %v373 = vld [vmem:[#allocation5 + $0x614] sm:$0xf]
    %v374 = vld [vmem:[#allocation5 + $0x618] sm:$0xff]
    %v375 = vld [vmem:[#allocation5 + $0x620] sm:$0xff]
    %v376 = vld [vmem:[#allocation5 + $0x628] sm:$0xf]
    %v377 = vld [vmem:[#allocation5 + $0x62c] sm:$0xff]
    %v378 = vld [vmem:[#allocation5 + $0x634] sm:$0xff]
    %v379 = vld [vmem:[#allocation5 + $0x63c] sm:$0xf]
    %v380 = vld [vmem:[#allocation5 + $0x640] sm:$0xff]
    %v381 = vld [vmem:[#allocation5 + $0x648] sm:$0xff]
    %v382 = vld [vmem:[#allocation5 + $0x650] sm:$0xf]
    %v383 = vld [vmem:[#allocation5 + $0x654] sm:$0xff]
    %v384 = vld [vmem:[#allocation5 + $0x65c] sm:$0xff]
    %v385 = vld [vmem:[#allocation5 + $0x664] sm:$0xf]
    %v386 = vld [vmem:[#allocation5 + $0x668] sm:$0xff]
    %v387 = vld [vmem:[#allocation5 + $0x670] sm:$0xff]
    %v388 = vld [vmem:[#allocation5 + $0x678] sm:$0xf]
    %v389 = vld [vmem:[#allocation5 + $0x67c] sm:$0xff]
    %v390 = vld [vmem:[#allocation5 + $0x684] sm:$0xff]
    %v391 = vld [vmem:[#allocation5 + $0x68c] sm:$0xf]
    %v392 = vld [vmem:[#allocation5 + $0x690] sm:$0xff]
    %v393 = vld [vmem:[#allocation5 + $0x698] sm:$0xff]
    %v394 = vld [vmem:[#allocation5 + $0x6a0] sm:$0xf]
    %v395 = vld [vmem:[#allocation5 + $0x6a4] sm:$0xff]
    %v396 = vld [vmem:[#allocation5 + $0x6ac] sm:$0xff]
    %v397 = vld [vmem:[#allocation5 + $0x6b4] sm:$0xf]
    %v398 = vld [vmem:[#allocation5 + $0x6b8] sm:$0xff]
    %v399 = vld [vmem:[#allocation5 + $0x6c0] sm:$0xff]
    %v400 = vld [vmem:[#allocation5 + $0x6c8] sm:$0xf]
    %v401 = vld [vmem:[#allocation5 + $0x6cc] sm:$0xff]
    %v402 = vld [vmem:[#allocation5 + $0x6d4] sm:$0xff]
    %v403 = vld [vmem:[#allocation5 + $0x6dc] sm:$0xf]
    %v404 = vld [vmem:[#allocation5 + $0x6e0] sm:$0xff]
    %v405 = vld [vmem:[#allocation5 + $0x6e8] sm:$0xff]
    %v406 = vld [vmem:[#allocation5 + $0x6f0] sm:$0xf]
    %v407 = vld [vmem:[#allocation5 + $0x6f4] sm:$0xff]
    %v408 = vld [vmem:[#allocation5 + $0x6fc] sm:$0xff]
    %v409 = vld [vmem:[#allocation5 + $0x704] sm:$0xf]
    %v410 = vld [vmem:[#allocation5 + $0x708] sm:$0xff]
    %v411 = vld [vmem:[#allocation5 + $0x710] sm:$0xff]
    %v412 = vld [vmem:[#allocation5 + $0x718] sm:$0xf]
    %v413 = vld [vmem:[#allocation5 + $0x71c] sm:$0xff]
    %v414 = vld [vmem:[#allocation5 + $0x724] sm:$0xff]
    %v415 = vld [vmem:[#allocation5 + $0x72c] sm:$0xf]
    %v416 = vld [vmem:[#allocation5 + $0x730] sm:$0xff]
    %v417 = vld [vmem:[#allocation5 + $0x738] sm:$0xff]
    %v418 = vld [vmem:[#allocation5 + $0x740] sm:$0xf]
    %v419 = vld [vmem:[#allocation5 + $0x744] sm:$0xff]
    %v420 = vld [vmem:[#allocation5 + $0x74c] sm:$0xff]
    %v421 = vld [vmem:[#allocation5 + $0x754] sm:$0xf]
    %v422 = vld [vmem:[#allocation5 + $0x758] sm:$0xff]
    %v423 = vld [vmem:[#allocation5 + $0x760] sm:$0xff]
    %v424 = vld [vmem:[#allocation5 + $0x768] sm:$0xf]
    %v425 = vld [vmem:[#allocation5 + $0x76c] sm:$0xff]
    %v426 = vld [vmem:[#allocation5 + $0x774] sm:$0xff]
    %v427 = vld [vmem:[#allocation5 + $0x77c] sm:$0xf]
    %v428 = vld [vmem:[#allocation5 + $0x780] sm:$0xff]
    %v429 = vld [vmem:[#allocation5 + $0x788] sm:$0xff]
    %v430 = vld [vmem:[#allocation5 + $0x790] sm:$0xf]
    %v431 = vld [vmem:[#allocation5 + $0x794] sm:$0xff]
    %v432 = vld [vmem:[#allocation5 + $0x79c] sm:$0xff]
    %v433 = vld [vmem:[#allocation5 + $0x7a4] sm:$0xf]
    %v434 = vld [vmem:[#allocation5 + $0x7a8] sm:$0xff]
    %v435 = vld [vmem:[#allocation5 + $0x7b0] sm:$0xff]
    %v436 = vld [vmem:[#allocation5 + $0x7b8] sm:$0xf]
    %v437 = vld [vmem:[#allocation5 + $0x7bc] sm:$0xff]
    %v438 = vld [vmem:[#allocation5 + $0x7c4] sm:$0xff]
    %v439 = vld [vmem:[#allocation5 + $0x7cc] sm:$0xf]
    %v440 = vld [vmem:[#allocation5 + $0x7d0] sm:$0xff]
    %v441 = vld [vmem:[#allocation5 + $0x7d8] sm:$0xff]
    %v442 = vld [vmem:[#allocation5 + $0x7e0] sm:$0xf]
    %v443 = vld [vmem:[#allocation5 + $0x7e4] sm:$0xff]
    %v444 = vld [vmem:[#allocation5 + $0x7ec] sm:$0xff]
    %v445 = vld [vmem:[#allocation5 + $0x7f4] sm:$0xf]
    %v446 = vld [vmem:[#allocation5 + $0x7f8] sm:$0xff]
    %v447 = vld [vmem:[#allocation5 + $0x800] sm:$0xff]
    %v448 = vld [vmem:[#allocation5 + $0x808] sm:$0xf]
    %v449 = vld [vmem:[#allocation5 + $0x80c] sm:$0xff]
    %v450 = vld [vmem:[#allocation5 + $0x814] sm:$0xff]
    %v451 = vld [vmem:[#allocation5 + $0x81c] sm:$0xf]
    %v452 = vld [vmem:[#allocation5 + $0x820] sm:$0xff]
    %v453 = vld [vmem:[#allocation5 + $0x828] sm:$0xff]
    %v454 = vld [vmem:[#allocation5 + $0x830] sm:$0xf]
    %v455 = vld [vmem:[#allocation5 + $0x834] sm:$0xff]
    %v456 = vld [vmem:[#allocation5 + $0x83c] sm:$0xff]
    %v457 = vld [vmem:[#allocation5 + $0x844] sm:$0xf]
    %v458 = vld [vmem:[#allocation5 + $0x848] sm:$0xff]
    %v459 = vld [vmem:[#allocation5 + $0x850] sm:$0xff]
    %v460 = vld [vmem:[#allocation5 + $0x858] sm:$0xf]
    %v461 = vld [vmem:[#allocation5 + $0x85c] sm:$0xff]
    %v462 = vld [vmem:[#allocation5 + $0x864] sm:$0xff]
    %v463 = vld [vmem:[#allocation5 + $0x86c] sm:$0xf]
    %v464 = vld [vmem:[#allocation5 + $0x870] sm:$0xff]
    %v465 = vld [vmem:[#allocation5 + $0x878] sm:$0xff]
    %v466 = vld [vmem:[#allocation5 + $0x880] sm:$0xf]
    %v467 = vld [vmem:[#allocation5 + $0x884] sm:$0xff]
    %v468 = vld [vmem:[#allocation5 + $0x88c] sm:$0xff]
    %v469 = vld [vmem:[#allocation5 + $0x894] sm:$0xf]
    %v470 = vld [vmem:[#allocation5 + $0x898] sm:$0xff]
    %v471 = vld [vmem:[#allocation5 + $0x8a0] sm:$0xff]
    %v472 = vld [vmem:[#allocation5 + $0x8a8] sm:$0xf]
    %v473 = vld [vmem:[#allocation5 + $0x8ac] sm:$0xff]
    %v474 = vld [vmem:[#allocation5 + $0x8b4] sm:$0xff]
    %v475 = vld [vmem:[#allocation5 + $0x8bc] sm:$0xf]
    %v476 = vld [vmem:[#allocation5 + $0x8c0] sm:$0xff]
    %v477 = vld [vmem:[#allocation5 + $0x8c8] sm:$0xff]
    %v478 = vld [vmem:[#allocation5 + $0x8d0] sm:$0xf]
    %v479 = vld [vmem:[#allocation5 + $0x8d4] sm:$0xff]
    %v480 = vld [vmem:[#allocation5 + $0x8dc] sm:$0xff]
    %v481 = vld [vmem:[#allocation5 + $0x8e4] sm:$0xf]
    %v482 = vld [vmem:[#allocation5 + $0x8e8] sm:$0xff]
    %v483 = vld [vmem:[#allocation5 + $0x8f0] sm:$0xff]
    %v484 = vld [vmem:[#allocation5 + $0x8f8] sm:$0xf]
    %v485 = vld [vmem:[#allocation5 + $0x8fc] sm:$0xff]
    %v486 = vld [vmem:[#allocation5 + $0x904] sm:$0xff]
    %v487 = vld [vmem:[#allocation5 + $0x90c] sm:$0xf]
    %v488 = vld [vmem:[#allocation5 + $0x910] sm:$0xff]
    %v489 = vld [vmem:[#allocation5 + $0x918] sm:$0xff]
    %v490 = vld [vmem:[#allocation5 + $0x920] sm:$0xf]
    %v491 = vld [vmem:[#allocation5 + $0x924] sm:$0xff]
    %v492 = vld [vmem:[#allocation5 + $0x92c] sm:$0xff]
    %v493 = vld [vmem:[#allocation5 + $0x934] sm:$0xf]
    %v494 = vld [vmem:[#allocation5 + $0x938] sm:$0xff]
    %v495 = vld [vmem:[#allocation5 + $0x940] sm:$0xff]
    %v496 = vld [vmem:[#allocation5 + $0x948] sm:$0xf]
    %v497 = vld [vmem:[#allocation5 + $0x94c] sm:$0xff]
    %v498 = vld [vmem:[#allocation5 + $0x954] sm:$0xff]
    %v499 = vld [vmem:[#allocation5 + $0x95c] sm:$0xf]
    %v500 = vld [vmem:[#allocation5 + $0x960] sm:$0xff]
    %v501 = vld [vmem:[#allocation5 + $0x968] sm:$0xff]
    %v502 = vld [vmem:[#allocation5 + $0x970] sm:$0xf]
    %v503 = vld [vmem:[#allocation5 + $0x974] sm:$0xff]
    %v504 = vld [vmem:[#allocation5 + $0x97c] sm:$0xff]
    %v505 = vld [vmem:[#allocation5 + $0x984] sm:$0xf]
    %v506 = vld [vmem:[#allocation5 + $0x988] sm:$0xff]
    %v507 = vld [vmem:[#allocation5 + $0x990] sm:$0xff]
    %v508 = vld [vmem:[#allocation5 + $0x998] sm:$0xf]
    %v509 = vld [vmem:[#allocation5 + $0x99c] sm:$0xff]
    %v510 = vld [vmem:[#allocation5 + $0x9a4] sm:$0xff]
    %v511 = vld [vmem:[#allocation5 + $0x9ac] sm:$0xf]
    %v512 = vld [vmem:[#allocation5 + $0x9b0] sm:$0xff]
    %v513 = vld [vmem:[#allocation5 + $0x9b8] sm:$0xff]
    %v514 = vld [vmem:[#allocation5 + $0x9c0] sm:$0xf]
    %v515 = vld [vmem:[#allocation5 + $0x9c4] sm:$0xff]
    %v516 = vld [vmem:[#allocation5 + $0x9cc] sm:$0xff]
    %v517 = vld [vmem:[#allocation5 + $0x9d4] sm:$0xf]
    %v518 = vld [vmem:[#allocation5 + $0x9d8] sm:$0xff]
    %v519 = vld [vmem:[#allocation5 + $0x9e0] sm:$0xff]
    %v520 = vld [vmem:[#allocation5 + $0x9e8] sm:$0xf]
    %v521 = vld [vmem:[#allocation5 + $0x9ec] sm:$0xff]
    %v522 = vld [vmem:[#allocation5 + $0x9f4] sm:$0xff]
    %v523 = vld [vmem:[#allocation5 + $0x9fc] sm:$0xf]
    %v524 = vld [vmem:[#allocation5 + $0xa00] sm:$0xff]
    %v525 = vld [vmem:[#allocation5 + $0xa08] sm:$0xff]
    %v526 = vld [vmem:[#allocation5 + $0xa10] sm:$0xf]
    %v527 = vld [vmem:[#allocation5 + $0xa14] sm:$0xff]
    %v528 = vld [vmem:[#allocation5 + $0xa1c] sm:$0xff]
    %v529 = vld [vmem:[#allocation5 + $0xa24] sm:$0xf]
    %v530 = vld [vmem:[#allocation5 + $0xa28] sm:$0xff]
    %v531 = vld [vmem:[#allocation5 + $0xa30] sm:$0xff]
    %v532 = vld [vmem:[#allocation5 + $0xa38] sm:$0xf]
    %v533 = vld [vmem:[#allocation5 + $0xa3c] sm:$0xff]
    %v534 = vld [vmem:[#allocation5 + $0xa44] sm:$0xff]
    %v535 = vld [vmem:[#allocation5 + $0xa4c] sm:$0xf]
    %v536 = vld [vmem:[#allocation5 + $0xa50] sm:$0xff]
    %v537 = vld [vmem:[#allocation5 + $0xa58] sm:$0xff]
    %v538 = vld [vmem:[#allocation5 + $0xa60] sm:$0xf]
    %v539 = vld [vmem:[#allocation5 + $0xa64] sm:$0xff]
    %v540 = vld [vmem:[#allocation5 + $0xa6c] sm:$0xff]
    %v541 = vld [vmem:[#allocation5 + $0xa74] sm:$0xf]
    %v542 = vld [vmem:[#allocation5 + $0xa78] sm:$0xff]
    %v543 = vld [vmem:[#allocation5 + $0xa80] sm:$0xff]
    %v544 = vld [vmem:[#allocation5 + $0xa88] sm:$0xf]
    %v545 = vld [vmem:[#allocation5 + $0xa8c] sm:$0xff]
    %v546 = vld [vmem:[#allocation5 + $0xa94] sm:$0xff]
    %v547 = vld [vmem:[#allocation5 + $0xa9c] sm:$0xf]
    %v548 = vld [vmem:[#allocation5 + $0xaa0] sm:$0xff]
    %v549 = vld [vmem:[#allocation5 + $0xaa8] sm:$0xff]
    %v550 = vld [vmem:[#allocation5 + $0xab0] sm:$0xf]
    %v551 = vld [vmem:[#allocation5 + $0xab4] sm:$0x33]
    %v552 = vld [vmem:[#allocation5 + $0xabc] sm:$0x33]
    %v553 = vld [vmem:[#allocation5 + $0xac4] sm:$0x3]
    %v554 = vld [vmem:[#allocation7] sm:$0x1f]
    %v556 = vlaneseq
    %v557 = vshrl.u32 %v556, 7
    %v558 = vsub.s32 0, %v557
    %v559 = vrot.slane %v554, %v558
    %v560 = vlaneseq
    %v561 = vshrl.u32 %v560, 7
    %v562 = vsub.s32 1, %v561
    %v563 = vrot.slane %v554, %v562
    %v564 = vlaneseq
    %v565 = vshrl.u32 %v564, 7
    %v566 = vsub.s32 2, %v565
    %v567 = vrot.slane %v554, %v566
    %v568 = vlaneseq
    %v569 = vshrl.u32 %v568, 7
    %v570 = vsub.s32 3, %v569
    %v571 = vrot.slane %v554, %v570
    %v572 = vlaneseq
    %v573 = vshrl.u32 %v572, 7
    %v574 = vsub.s32 4, %v573
    %v575 = vrot.slane %v554, %v574
    %v586 = vunpack.c.l.b16 %v135
    %v587 = vunpack.c.h.b16 %v135
    %v588 = vunpack.c.l.b16 %v136
    %v589 = vunpack.c.h.b16 %v136
    %v590 = vunpack.c.l.b16 %v137
    %v591 = vunpack.c.h.b16 %v137
    %v592 = vunpack.c.l.b16 %v138
    %v593 = vunpack.c.h.b16 %v138
    %v594 = vunpack.c.l.b16 %v139
    %v595 = vpack.c.b16 %v586, %v586
    %v596 = vpack.c.b16 %v587, %v587
    %v597 = vpack.c.b16 %v588, %v588
    %v598 = vpack.c.b16 %v589, %v589
    %v599 = vpack.c.b16 %v590, %v590
    %v600 = vpack.c.b16 %v591, %v591
    %v601 = vpack.c.b16 %v592, %v592
    %v602 = vpack.c.b16 %v593, %v593
    %v603 = vpack.c.b16 %v594, %v594
    %v1026 = vunpack.c.l.b16 %v140
    %v1027 = vunpack.c.h.b16 %v140
    %v1028 = vunpack.c.l.b16 %v141
    %v1029 = vunpack.c.h.b16 %v141
    %v1030 = vunpack.c.l.b16 %v142
    %v1031 = vunpack.c.l.b16 %v143
    %v1032 = vunpack.c.h.b16 %v143
    %v1033 = vunpack.c.l.b16 %v144
    %v1034 = vunpack.c.h.b16 %v144
    %v1035 = vunpack.c.l.b16 %v145
    %v1036 = vunpack.c.l.b16 %v146
    %v1037 = vunpack.c.h.b16 %v146
    %v1038 = vunpack.c.l.b16 %v147
    %v1039 = vunpack.c.h.b16 %v147
    %v1040 = vunpack.c.l.b16 %v148
    %v1041 = vunpack.c.l.b16 %v149
    %v1042 = vunpack.c.h.b16 %v149
    %v1043 = vunpack.c.l.b16 %v150
    %v1044 = vunpack.c.h.b16 %v150
    %v1045 = vunpack.c.l.b16 %v151
    %v1046 = vunpack.c.l.b16 %v152
    %v1047 = vunpack.c.h.b16 %v152
    %v1048 = vunpack.c.l.b16 %v153
    %v1049 = vunpack.c.h.b16 %v153
    %v1050 = vunpack.c.l.b16 %v154
    %v1051 = vunpack.c.l.b16 %v155
    %v1052 = vunpack.c.h.b16 %v155
    %v1053 = vunpack.c.l.b16 %v156
    %v1054 = vunpack.c.h.b16 %v156
    %v1055 = vunpack.c.l.b16 %v157
    %v1056 = vunpack.c.l.b16 %v158
    %v1057 = vunpack.c.h.b16 %v158
    %v1058 = vunpack.c.l.b16 %v159
    %v1059 = vunpack.c.h.b16 %v159
    %v1060 = vunpack.c.l.b16 %v160
    %v1061 = vunpack.c.l.b16 %v161
    %v1062 = vunpack.c.h.b16 %v161
    %v1063 = vunpack.c.l.b16 %v162
    %v1064 = vunpack.c.h.b16 %v162
    %v1065 = vunpack.c.l.b16 %v163
    %v1066 = vunpack.c.l.b16 %v164
    %v1067 = vunpack.c.h.b16 %v164
    %v1068 = vunpack.c.l.b16 %v165
    %v1069 = vunpack.c.h.b16 %v165
    %v1070 = vunpack.c.l.b16 %v166
    %v1071 = vunpack.c.l.b16 %v167
    %v1072 = vunpack.c.h.b16 %v167
    %v1073 = vunpack.c.l.b16 %v168
    %v1074 = vunpack.c.h.b16 %v168
    %v1075 = vunpack.c.l.b16 %v169
    %v1076 = vunpack.c.l.b16 %v170
    %v1077 = vunpack.c.h.b16 %v170
    %v1078 = vunpack.c.l.b16 %v171
    %v1079 = vunpack.c.h.b16 %v171
    %v1080 = vunpack.c.l.b16 %v172
    %v1081 = vunpack.c.l.b16 %v173
    %v1082 = vunpack.c.h.b16 %v173
    %v1083 = vunpack.c.l.b16 %v174
    %v1084 = vunpack.c.h.b16 %v174
    %v1085 = vunpack.c.l.b16 %v175
    %v1086 = vunpack.c.l.b16 %v176
    %v1087 = vunpack.c.h.b16 %v176
    %v1088 = vunpack.c.l.b16 %v177
    %v1089 = vunpack.c.h.b16 %v177
    %v1090 = vunpack.c.l.b16 %v178
    %v1091 = vunpack.c.l.b16 %v179
    %v1092 = vunpack.c.h.b16 %v179
    %v1093 = vunpack.c.l.b16 %v180
    %v1094 = vunpack.c.h.b16 %v180
    %v1095 = vunpack.c.l.b16 %v181
    %v1096 = vunpack.c.l.b16 %v182
    %v1097 = vunpack.c.h.b16 %v182
    %v1098 = vunpack.c.l.b16 %v183
    %v1099 = vunpack.c.h.b16 %v183
    %v1100 = vunpack.c.l.b16 %v184
    %v1101 = vunpack.c.l.b16 %v185
    %v1102 = vunpack.c.h.b16 %v185
    %v1103 = vunpack.c.l.b16 %v186
    %v1104 = vunpack.c.h.b16 %v186
    %v1105 = vunpack.c.l.b16 %v187
    %v1106 = vunpack.c.l.b16 %v188
    %v1107 = vunpack.c.h.b16 %v188
    %v1108 = vunpack.c.l.b16 %v189
    %v1109 = vunpack.c.h.b16 %v189
    %v1110 = vunpack.c.l.b16 %v190
    %v1111 = vunpack.c.l.b16 %v191
    %v1112 = vunpack.c.h.b16 %v191
    %v1113 = vunpack.c.l.b16 %v192
    %v1114 = vunpack.c.h.b16 %v192
    %v1115 = vunpack.c.l.b16 %v193
    %v1116 = vunpack.c.l.b16 %v194
    %v1117 = vunpack.c.h.b16 %v194
    %v1118 = vunpack.c.l.b16 %v195
    %v1119 = vunpack.c.h.b16 %v195
    %v1120 = vunpack.c.l.b16 %v196
    %v1121 = vunpack.c.l.b16 %v197
    %v1122 = vunpack.c.h.b16 %v197
    %v1123 = vunpack.c.l.b16 %v198
    %v1124 = vunpack.c.h.b16 %v198
    %v1125 = vunpack.c.l.b16 %v199
    %v1126 = vunpack.c.l.b16 %v200
    %v1127 = vunpack.c.h.b16 %v200
    %v1128 = vunpack.c.l.b16 %v201
    %v1129 = vunpack.c.h.b16 %v201
    %v1130 = vunpack.c.l.b16 %v202
    %v1131 = vunpack.c.l.b16 %v203
    %v1132 = vunpack.c.h.b16 %v203
    %v1133 = vunpack.c.l.b16 %v204
    %v1134 = vunpack.c.h.b16 %v204
    %v1135 = vunpack.c.l.b16 %v205
    %v1136 = vunpack.c.l.b16 %v206
    %v1137 = vunpack.c.h.b16 %v206
    %v1138 = vunpack.c.l.b16 %v207
    %v1139 = vunpack.c.h.b16 %v207
    %v1140 = vunpack.c.l.b16 %v208
    %v1141 = vunpack.c.l.b16 %v209
    %v1142 = vunpack.c.h.b16 %v209
    %v1143 = vunpack.c.l.b16 %v210
    %v1144 = vunpack.c.h.b16 %v210
    %v1145 = vunpack.c.l.b16 %v211
    %v1146 = vunpack.c.l.b16 %v212
    %v1147 = vunpack.c.h.b16 %v212
    %v1148 = vunpack.c.l.b16 %v213
    %v1149 = vunpack.c.h.b16 %v213
    %v1150 = vunpack.c.l.b16 %v214
    %v1151 = vunpack.c.l.b16 %v215
    %v1152 = vunpack.c.h.b16 %v215
    %v1153 = vunpack.c.l.b16 %v216
    %v1154 = vunpack.c.h.b16 %v216
    %v1155 = vunpack.c.l.b16 %v217
    %v1156 = vunpack.c.l.b16 %v218
    %v1157 = vunpack.c.h.b16 %v218
    %v1158 = vunpack.c.l.b16 %v219
    %v1159 = vunpack.c.h.b16 %v219
    %v1160 = vunpack.c.l.b16 %v220
    %v1161 = vunpack.c.l.b16 %v221
    %v1162 = vunpack.c.h.b16 %v221
    %v1163 = vunpack.c.l.b16 %v222
    %v1164 = vunpack.c.h.b16 %v222
    %v1165 = vunpack.c.l.b16 %v223
    %v1166 = vunpack.c.l.b16 %v224
    %v1167 = vunpack.c.h.b16 %v224
    %v1168 = vunpack.c.l.b16 %v225
    %v1169 = vunpack.c.h.b16 %v225
    %v1170 = vunpack.c.l.b16 %v226
    %v1171 = vunpack.c.l.b16 %v227
    %v1172 = vunpack.c.h.b16 %v227
    %v1173 = vunpack.c.l.b16 %v228
    %v1174 = vunpack.c.h.b16 %v228
    %v1175 = vunpack.c.l.b16 %v229
    %v1176 = vunpack.c.l.b16 %v230
    %v1177 = vunpack.c.h.b16 %v230
    %v1178 = vunpack.c.l.b16 %v231
    %v1179 = vunpack.c.h.b16 %v231
    %v1180 = vunpack.c.l.b16 %v232
    %v1181 = vunpack.c.l.b16 %v233
    %v1182 = vunpack.c.h.b16 %v233
    %v1183 = vunpack.c.l.b16 %v234
    %v1184 = vunpack.c.h.b16 %v234
    %v1185 = vunpack.c.l.b16 %v235
    %v1186 = vunpack.c.l.b16 %v236
    %v1187 = vunpack.c.h.b16 %v236
    %v1188 = vunpack.c.l.b16 %v237
    %v1189 = vunpack.c.h.b16 %v237
    %v1190 = vunpack.c.l.b16 %v238
    %v1191 = vunpack.c.l.b16 %v239
    %v1192 = vunpack.c.h.b16 %v239
    %v1193 = vunpack.c.l.b16 %v240
    %v1194 = vunpack.c.h.b16 %v240
    %v1195 = vunpack.c.l.b16 %v241
    %v1196 = vunpack.c.l.b16 %v242
    %v1197 = vunpack.c.h.b16 %v242
    %v1198 = vunpack.c.l.b16 %v243
    %v1199 = vunpack.c.h.b16 %v243
    %v1200 = vunpack.c.l.b16 %v244
    %v1201 = vunpack.c.l.b16 %v245
    %v1202 = vunpack.c.h.b16 %v245
    %v1203 = vunpack.c.l.b16 %v246
    %v1204 = vunpack.c.h.b16 %v246
    %v1205 = vunpack.c.l.b16 %v247
    %v1206 = vunpack.c.l.b16 %v248
    %v1207 = vunpack.c.h.b16 %v248
    %v1208 = vunpack.c.l.b16 %v249
    %v1209 = vunpack.c.h.b16 %v249
    %v1210 = vunpack.c.l.b16 %v250
    %v1211 = vunpack.c.l.b16 %v251
    %v1212 = vunpack.c.h.b16 %v251
    %v1213 = vunpack.c.l.b16 %v252
    %v1214 = vunpack.c.h.b16 %v252
    %v1215 = vunpack.c.l.b16 %v253
    %v1216 = vunpack.c.l.b16 %v254
    %v1217 = vunpack.c.h.b16 %v254
    %v1218 = vunpack.c.l.b16 %v255
    %v1219 = vunpack.c.h.b16 %v255
    %v1220 = vunpack.c.l.b16 %v256
    %v1221 = vunpack.c.l.b16 %v257
    %v1222 = vunpack.c.h.b16 %v257
    %v1223 = vunpack.c.l.b16 %v258
    %v1224 = vunpack.c.h.b16 %v258
    %v1225 = vunpack.c.l.b16 %v259
    %v1226 = vunpack.c.l.b16 %v260
    %v1227 = vunpack.c.h.b16 %v260
    %v1228 = vunpack.c.l.b16 %v261
    %v1229 = vunpack.c.h.b16 %v261
    %v1230 = vunpack.c.l.b16 %v262
    %v1231 = vunpack.c.l.b16 %v263
    %v1232 = vunpack.c.h.b16 %v263
    %v1233 = vunpack.c.l.b16 %v264
    %v1234 = vunpack.c.h.b16 %v264
    %v1235 = vunpack.c.l.b16 %v265
    %v1236 = vunpack.c.l.b16 %v266
    %v1237 = vunpack.c.h.b16 %v266
    %v1238 = vunpack.c.l.b16 %v267
    %v1239 = vunpack.c.h.b16 %v267
    %v1240 = vunpack.c.l.b16 %v268
    %v1241 = vunpack.c.l.b16 %v269
    %v1242 = vunpack.c.h.b16 %v269
    %v1243 = vunpack.c.l.b16 %v270
    %v1244 = vunpack.c.h.b16 %v270
    %v1245 = vunpack.c.l.b16 %v271
    %v1246 = vunpack.c.l.b16 %v272
    %v1247 = vunpack.c.h.b16 %v272
    %v1248 = vunpack.c.l.b16 %v273
    %v1249 = vunpack.c.h.b16 %v273
    %v1250 = vunpack.c.l.b16 %v274
    %v1251 = vunpack.c.l.b16 %v275
    %v1252 = vunpack.c.h.b16 %v275
    %v1253 = vunpack.c.l.b16 %v276
    %v1254 = vunpack.c.h.b16 %v276
    %v1255 = vunpack.c.l.b16 %v277
    %v1256 = vunpack.c.l.b16 %v278
    %v1257 = vunpack.c.h.b16 %v278
    %v1258 = vunpack.c.l.b16 %v279
    %v1259 = vunpack.c.h.b16 %v279
    %v1260 = vunpack.c.l.b16 %v280
    %v1261 = vunpack.c.l.b16 %v281
    %v1262 = vunpack.c.h.b16 %v281
    %v1263 = vunpack.c.l.b16 %v282
    %v1264 = vunpack.c.h.b16 %v282
    %v1265 = vunpack.c.l.b16 %v283
    %v1266 = vunpack.c.l.b16 %v284
    %v1267 = vunpack.c.h.b16 %v284
    %v1268 = vunpack.c.l.b16 %v285
    %v1269 = vunpack.c.h.b16 %v285
    %v1270 = vunpack.c.l.b16 %v286
    %v1271 = vunpack.c.l.b16 %v287
    %v1272 = vunpack.c.h.b16 %v287
    %v1273 = vunpack.c.l.b16 %v288
    %v1274 = vunpack.c.h.b16 %v288
    %v1275 = vunpack.c.l.b16 %v289
    %v1276 = vunpack.c.l.b16 %v290
    %v1277 = vunpack.c.h.b16 %v290
    %v1278 = vunpack.c.l.b16 %v291
    %v1279 = vunpack.c.h.b16 %v291
    %v1280 = vunpack.c.l.b16 %v292
    %v1281 = vunpack.c.l.b16 %v293
    %v1282 = vunpack.c.h.b16 %v293
    %v1283 = vunpack.c.l.b16 %v294
    %v1284 = vunpack.c.h.b16 %v294
    %v1285 = vunpack.c.l.b16 %v295
    %v1286 = vunpack.c.l.b16 %v296
    %v1287 = vunpack.c.h.b16 %v296
    %v1288 = vunpack.c.l.b16 %v297
    %v1289 = vunpack.c.h.b16 %v297
    %v1290 = vunpack.c.l.b16 %v298
    %v1291 = vunpack.c.l.b16 %v299
    %v1292 = vunpack.c.h.b16 %v299
    %v1293 = vunpack.c.l.b16 %v300
    %v1294 = vunpack.c.h.b16 %v300
    %v1295 = vunpack.c.l.b16 %v301
    %v1296 = vunpack.c.l.b16 %v302
    %v1297 = vunpack.c.h.b16 %v302
    %v1298 = vunpack.c.l.b16 %v303
    %v1299 = vunpack.c.h.b16 %v303
    %v1300 = vunpack.c.l.b16 %v304
    %v1301 = vunpack.c.l.b16 %v305
    %v1302 = vunpack.c.h.b16 %v305
    %v1303 = vunpack.c.l.b16 %v306
    %v1304 = vunpack.c.h.b16 %v306
    %v1305 = vunpack.c.l.b16 %v307
    %v1306 = vunpack.c.l.b16 %v308
    %v1307 = vunpack.c.h.b16 %v308
    %v1308 = vunpack.c.l.b16 %v309
    %v1309 = vunpack.c.h.b16 %v309
    %v1310 = vunpack.c.l.b16 %v310
    %v1311 = vunpack.c.l.b16 %v311
    %v1312 = vunpack.c.h.b16 %v311
    %v1313 = vunpack.c.l.b16 %v312
    %v1314 = vunpack.c.h.b16 %v312
    %v1315 = vunpack.c.l.b16 %v313
    %v1316 = vunpack.c.l.b16 %v314
    %v1317 = vunpack.c.h.b16 %v314
    %v1318 = vunpack.c.l.b16 %v315
    %v1319 = vunpack.c.h.b16 %v315
    %v1320 = vunpack.c.l.b16 %v316
    %v1321 = vunpack.c.l.b16 %v317
    %v1322 = vunpack.c.h.b16 %v317
    %v1323 = vunpack.c.l.b16 %v318
    %v1324 = vunpack.c.h.b16 %v318
    %v1325 = vunpack.c.l.b16 %v319
    %v1326 = vunpack.c.l.b16 %v320
    %v1327 = vunpack.c.h.b16 %v320
    %v1328 = vunpack.c.l.b16 %v321
    %v1329 = vunpack.c.h.b16 %v321
    %v1330 = vunpack.c.l.b16 %v322
    %v1331 = vunpack.c.l.b16 %v323
    %v1332 = vunpack.c.h.b16 %v323
    %v1333 = vunpack.c.l.b16 %v324
    %v1334 = vunpack.c.h.b16 %v324
    %v1335 = vunpack.c.l.b16 %v325
    %v1336 = vunpack.c.l.b16 %v326
    %v1337 = vunpack.c.h.b16 %v326
    %v1338 = vunpack.c.l.b16 %v327
    %v1339 = vunpack.c.h.b16 %v327
    %v1340 = vunpack.c.l.b16 %v328
    %v1341 = vunpack.c.l.b16 %v329
    %v1342 = vunpack.c.h.b16 %v329
    %v1343 = vunpack.c.l.b16 %v330
    %v1344 = vunpack.c.h.b16 %v330
    %v1345 = vunpack.c.l.b16 %v331
    %v1346 = vunpack.c.l.b16 %v332
    %v1347 = vunpack.c.h.b16 %v332
    %v1348 = vunpack.c.l.b16 %v333
    %v1349 = vunpack.c.h.b16 %v333
    %v1350 = vunpack.c.l.b16 %v334
    %v1351 = vunpack.c.l.b16 %v335
    %v1352 = vunpack.c.h.b16 %v335
    %v1353 = vunpack.c.l.b16 %v336
    %v1354 = vunpack.c.h.b16 %v336
    %v1355 = vunpack.c.l.b16 %v337
    %v1356 = vunpack.c.l.b16 %v338
    %v1357 = vunpack.c.h.b16 %v338
    %v1358 = vunpack.c.l.b16 %v339
    %v1359 = vunpack.c.h.b16 %v339
    %v1360 = vunpack.c.l.b16 %v340
    %v1361 = vunpack.c.l.b16 %v341
    %v1362 = vunpack.c.h.b16 %v341
    %v1363 = vunpack.c.l.b16 %v342
    %v1364 = vunpack.c.h.b16 %v342
    %v1365 = vunpack.c.l.b16 %v343
    %v1366 = vunpack.c.l.b16 %v344
    %v1367 = vunpack.c.h.b16 %v344
    %v1368 = vunpack.c.l.b16 %v345
    %v1369 = vunpack.c.h.b16 %v345
    %v1370 = vunpack.c.l.b16 %v346
    %v1371 = vunpack.c.l.b16 %v347
    %v1372 = vunpack.c.h.b16 %v347
    %v1373 = vunpack.c.l.b16 %v348
    %v1374 = vunpack.c.h.b16 %v348
    %v1375 = vunpack.c.l.b16 %v349
    %v1376 = vunpack.c.l.b16 %v350
    %v1377 = vunpack.c.h.b16 %v350
    %v1378 = vunpack.c.l.b16 %v351
    %v1379 = vunpack.c.h.b16 %v351
    %v1380 = vunpack.c.l.b16 %v352
    %v1381 = vunpack.c.l.b16 %v353
    %v1382 = vunpack.c.h.b16 %v353
    %v1383 = vunpack.c.l.b16 %v354
    %v1384 = vunpack.c.h.b16 %v354
    %v1385 = vunpack.c.l.b16 %v355
    %v1386 = vunpack.c.l.b16 %v356
    %v1387 = vunpack.c.h.b16 %v356
    %v1388 = vunpack.c.l.b16 %v357
    %v1389 = vunpack.c.h.b16 %v357
    %v1390 = vunpack.c.l.b16 %v358
    %v1391 = vunpack.c.l.b16 %v359
    %v1392 = vunpack.c.h.b16 %v359
    %v1393 = vunpack.c.l.b16 %v360
    %v1394 = vunpack.c.h.b16 %v360
    %v1395 = vunpack.c.l.b16 %v361
    %v1396 = vunpack.c.l.b16 %v362
    %v1397 = vunpack.c.h.b16 %v362
    %v1398 = vunpack.c.l.b16 %v363
    %v1399 = vunpack.c.h.b16 %v363
    %v1400 = vunpack.c.l.b16 %v364
    %v1401 = vunpack.c.l.b16 %v365
    %v1402 = vunpack.c.h.b16 %v365
    %v1403 = vunpack.c.l.b16 %v366
    %v1404 = vunpack.c.h.b16 %v366
    %v1405 = vunpack.c.l.b16 %v367
    %v1406 = vunpack.c.l.b16 %v368
    %v1407 = vunpack.c.h.b16 %v368
    %v1408 = vunpack.c.l.b16 %v369
    %v1409 = vunpack.c.h.b16 %v369
    %v1410 = vunpack.c.l.b16 %v370
    %v1411 = vunpack.c.l.b16 %v371
    %v1412 = vunpack.c.h.b16 %v371
    %v1413 = vunpack.c.l.b16 %v372
    %v1414 = vunpack.c.h.b16 %v372
    %v1415 = vunpack.c.l.b16 %v373
    %v1416 = vunpack.c.l.b16 %v374
    %v1417 = vunpack.c.h.b16 %v374
    %v1418 = vunpack.c.l.b16 %v375
    %v1419 = vunpack.c.h.b16 %v375
    %v1420 = vunpack.c.l.b16 %v376
    %v1421 = vunpack.c.l.b16 %v377
    %v1422 = vunpack.c.h.b16 %v377
    %v1423 = vunpack.c.l.b16 %v378
    %v1424 = vunpack.c.h.b16 %v378
    %v1425 = vunpack.c.l.b16 %v379
    %v1426 = vunpack.c.l.b16 %v380
    %v1427 = vunpack.c.h.b16 %v380
    %v1428 = vunpack.c.l.b16 %v381
    %v1429 = vunpack.c.h.b16 %v381
    %v1430 = vunpack.c.l.b16 %v382
    %v1431 = vunpack.c.l.b16 %v383
    %v1432 = vunpack.c.h.b16 %v383
    %v1433 = vunpack.c.l.b16 %v384
    %v1434 = vunpack.c.h.b16 %v384
    %v1435 = vunpack.c.l.b16 %v385
    %v1436 = vunpack.c.l.b16 %v386
    %v1437 = vunpack.c.h.b16 %v386
    %v1438 = vunpack.c.l.b16 %v387
    %v1439 = vunpack.c.h.b16 %v387
    %v1440 = vunpack.c.l.b16 %v388
    %v1441 = vunpack.c.l.b16 %v389
    %v1442 = vunpack.c.h.b16 %v389
    %v1443 = vunpack.c.l.b16 %v390
    %v1444 = vunpack.c.h.b16 %v390
    %v1445 = vunpack.c.l.b16 %v391
    %v1446 = vunpack.c.l.b16 %v392
    %v1447 = vunpack.c.h.b16 %v392
    %v1448 = vunpack.c.l.b16 %v393
    %v1449 = vunpack.c.h.b16 %v393
    %v1450 = vunpack.c.l.b16 %v394
    %v1451 = vunpack.c.l.b16 %v395
    %v1452 = vunpack.c.h.b16 %v395
    %v1453 = vunpack.c.l.b16 %v396
    %v1454 = vunpack.c.h.b16 %v396
    %v1455 = vunpack.c.l.b16 %v397
    %v1456 = vunpack.c.l.b16 %v398
    %v1457 = vunpack.c.h.b16 %v398
    %v1458 = vunpack.c.l.b16 %v399
    %v1459 = vunpack.c.h.b16 %v399
    %v1460 = vunpack.c.l.b16 %v400
    %v1461 = vunpack.c.l.b16 %v401
    %v1462 = vunpack.c.h.b16 %v401
    %v1463 = vunpack.c.l.b16 %v402
    %v1464 = vunpack.c.h.b16 %v402
    %v1465 = vunpack.c.l.b16 %v403
    %v1466 = vunpack.c.l.b16 %v404
    %v1467 = vunpack.c.h.b16 %v404
    %v1468 = vunpack.c.l.b16 %v405
    %v1469 = vunpack.c.h.b16 %v405
    %v1470 = vunpack.c.l.b16 %v406
    %v1471 = vunpack.c.l.b16 %v407
    %v1472 = vunpack.c.h.b16 %v407
    %v1473 = vunpack.c.l.b16 %v408
    %v1474 = vunpack.c.h.b16 %v408
    %v1475 = vunpack.c.l.b16 %v409
    %v1476 = vunpack.c.l.b16 %v410
    %v1477 = vunpack.c.h.b16 %v410
    %v1478 = vunpack.c.l.b16 %v411
    %v1479 = vunpack.c.h.b16 %v411
    %v1480 = vunpack.c.l.b16 %v412
    %v1481 = vunpack.c.l.b16 %v413
    %v1482 = vunpack.c.h.b16 %v413
    %v1483 = vunpack.c.l.b16 %v414
    %v1484 = vunpack.c.h.b16 %v414
    %v1485 = vunpack.c.l.b16 %v415
    %v1486 = vunpack.c.l.b16 %v416
    %v1487 = vunpack.c.h.b16 %v416
    %v1488 = vunpack.c.l.b16 %v417
    %v1489 = vunpack.c.h.b16 %v417
    %v1490 = vunpack.c.l.b16 %v418
    %v1491 = vunpack.c.l.b16 %v419
    %v1492 = vunpack.c.h.b16 %v419
    %v1493 = vunpack.c.l.b16 %v420
    %v1494 = vunpack.c.h.b16 %v420
    %v1495 = vunpack.c.l.b16 %v421
    %v1496 = vunpack.c.l.b16 %v422
    %v1497 = vunpack.c.h.b16 %v422
    %v1498 = vunpack.c.l.b16 %v423
    %v1499 = vunpack.c.h.b16 %v423
    %v1500 = vunpack.c.l.b16 %v424
    %v1501 = vunpack.c.l.b16 %v425
    %v1502 = vunpack.c.h.b16 %v425
    %v1503 = vunpack.c.l.b16 %v426
    %v1504 = vunpack.c.h.b16 %v426
    %v1505 = vunpack.c.l.b16 %v427
    %v1506 = vunpack.c.l.b16 %v428
    %v1507 = vunpack.c.h.b16 %v428
    %v1508 = vunpack.c.l.b16 %v429
    %v1509 = vunpack.c.h.b16 %v429
    %v1510 = vunpack.c.l.b16 %v430
    %v1511 = vunpack.c.l.b16 %v431
    %v1512 = vunpack.c.h.b16 %v431
    %v1513 = vunpack.c.l.b16 %v432
    %v1514 = vunpack.c.h.b16 %v432
    %v1515 = vunpack.c.l.b16 %v433
    %v1516 = vunpack.c.l.b16 %v434
    %v1517 = vunpack.c.h.b16 %v434
    %v1518 = vunpack.c.l.b16 %v435
    %v1519 = vunpack.c.h.b16 %v435
    %v1520 = vunpack.c.l.b16 %v436
    %v1521 = vunpack.c.l.b16 %v437
    %v1522 = vunpack.c.h.b16 %v437
    %v1523 = vunpack.c.l.b16 %v438
    %v1524 = vunpack.c.h.b16 %v438
    %v1525 = vunpack.c.l.b16 %v439
    %v1526 = vunpack.c.l.b16 %v440
    %v1527 = vunpack.c.h.b16 %v440
    %v1528 = vunpack.c.l.b16 %v441
    %v1529 = vunpack.c.h.b16 %v441
    %v1530 = vunpack.c.l.b16 %v442
    %v1531 = vunpack.c.l.b16 %v443
    %v1532 = vunpack.c.h.b16 %v443
    %v1533 = vunpack.c.l.b16 %v444
    %v1534 = vunpack.c.h.b16 %v444
    %v1535 = vunpack.c.l.b16 %v445
    %v1536 = vunpack.c.l.b16 %v446
    %v1537 = vunpack.c.h.b16 %v446
    %v1538 = vunpack.c.l.b16 %v447
    %v1539 = vunpack.c.h.b16 %v447
    %v1540 = vunpack.c.l.b16 %v448
    %v1541 = vunpack.c.l.b16 %v449
    %v1542 = vunpack.c.h.b16 %v449
    %v1543 = vunpack.c.l.b16 %v450
    %v1544 = vunpack.c.h.b16 %v450
    %v1545 = vunpack.c.l.b16 %v451
    %v1546 = vunpack.c.l.b16 %v452
    %v1547 = vunpack.c.h.b16 %v452
    %v1548 = vunpack.c.l.b16 %v453
    %v1549 = vunpack.c.h.b16 %v453
    %v1550 = vunpack.c.l.b16 %v454
    %v1551 = vunpack.c.l.b16 %v455
    %v1552 = vunpack.c.h.b16 %v455
    %v1553 = vunpack.c.l.b16 %v456
    %v1554 = vunpack.c.h.b16 %v456
    %v1555 = vunpack.c.l.b16 %v457
    %v1556 = vunpack.c.l.b16 %v458
    %v1557 = vunpack.c.h.b16 %v458
    %v1558 = vunpack.c.l.b16 %v459
    %v1559 = vunpack.c.h.b16 %v459
    %v1560 = vunpack.c.l.b16 %v460
    %v1561 = vunpack.c.l.b16 %v461
    %v1562 = vunpack.c.h.b16 %v461
    %v1563 = vunpack.c.l.b16 %v462
    %v1564 = vunpack.c.h.b16 %v462
    %v1565 = vunpack.c.l.b16 %v463
    %v1566 = vunpack.c.l.b16 %v464
    %v1567 = vunpack.c.h.b16 %v464
    %v1568 = vunpack.c.l.b16 %v465
    %v1569 = vunpack.c.h.b16 %v465
    %v1570 = vunpack.c.l.b16 %v466
    %v1571 = vunpack.c.l.b16 %v467
    %v1572 = vunpack.c.h.b16 %v467
    %v1573 = vunpack.c.l.b16 %v468
    %v1574 = vunpack.c.h.b16 %v468
    %v1575 = vunpack.c.l.b16 %v469
    %v1576 = vunpack.c.l.b16 %v470
    %v1577 = vunpack.c.h.b16 %v470
    %v1578 = vunpack.c.l.b16 %v471
    %v1579 = vunpack.c.h.b16 %v471
    %v1580 = vunpack.c.l.b16 %v472
    %v1581 = vunpack.c.l.b16 %v473
    %v1582 = vunpack.c.h.b16 %v473
    %v1583 = vunpack.c.l.b16 %v474
    %v1584 = vunpack.c.h.b16 %v474
    %v1585 = vunpack.c.l.b16 %v475
    %v1586 = vunpack.c.l.b16 %v476
    %v1587 = vunpack.c.h.b16 %v476
    %v1588 = vunpack.c.l.b16 %v477
    %v1589 = vunpack.c.h.b16 %v477
    %v1590 = vunpack.c.l.b16 %v478
    %v1591 = vunpack.c.l.b16 %v479
    %v1592 = vunpack.c.h.b16 %v479
    %v1593 = vunpack.c.l.b16 %v480
    %v1594 = vunpack.c.h.b16 %v480
    %v1595 = vunpack.c.l.b16 %v481
    %v1596 = vunpack.c.l.b16 %v482
    %v1597 = vunpack.c.h.b16 %v482
    %v1598 = vunpack.c.l.b16 %v483
    %v1599 = vunpack.c.h.b16 %v483
    %v1600 = vunpack.c.l.b16 %v484
    %v1601 = vunpack.c.l.b16 %v485
    %v1602 = vunpack.c.h.b16 %v485
    %v1603 = vunpack.c.l.b16 %v486
    %v1604 = vunpack.c.h.b16 %v486
    %v1605 = vunpack.c.l.b16 %v487
    %v1606 = vunpack.c.l.b16 %v488
    %v1607 = vunpack.c.h.b16 %v488
    %v1608 = vunpack.c.l.b16 %v489
    %v1609 = vunpack.c.h.b16 %v489
    %v1610 = vunpack.c.l.b16 %v490
    %v1611 = vunpack.c.l.b16 %v491
    %v1612 = vunpack.c.h.b16 %v491
    %v1613 = vunpack.c.l.b16 %v492
    %v1614 = vunpack.c.h.b16 %v492
    %v1615 = vunpack.c.l.b16 %v493
    %v1616 = vunpack.c.l.b16 %v494
    %v1617 = vunpack.c.h.b16 %v494
    %v1618 = vunpack.c.l.b16 %v495
    %v1619 = vunpack.c.h.b16 %v495
    %v1620 = vunpack.c.l.b16 %v496
    %v1621 = vunpack.c.l.b16 %v497
    %v1622 = vunpack.c.h.b16 %v497
    %v1623 = vunpack.c.l.b16 %v498
    %v1624 = vunpack.c.h.b16 %v498
    %v1625 = vunpack.c.l.b16 %v499
    %v1626 = vunpack.c.l.b16 %v500
    %v1627 = vunpack.c.h.b16 %v500
    %v1628 = vunpack.c.l.b16 %v501
    %v1629 = vunpack.c.h.b16 %v501
    %v1630 = vunpack.c.l.b16 %v502
    %v1631 = vunpack.c.l.b16 %v503
    %v1632 = vunpack.c.h.b16 %v503
    %v1633 = vunpack.c.l.b16 %v504
    %v1634 = vunpack.c.h.b16 %v504
    %v1635 = vunpack.c.l.b16 %v505
    %v1636 = vunpack.c.l.b16 %v506
    %v1637 = vunpack.c.h.b16 %v506
    %v1638 = vunpack.c.l.b16 %v507
    %v1639 = vunpack.c.h.b16 %v507
    %v1640 = vunpack.c.l.b16 %v508
    %v1641 = vunpack.c.l.b16 %v509
    %v1642 = vunpack.c.h.b16 %v509
    %v1643 = vunpack.c.l.b16 %v510
    %v1644 = vunpack.c.h.b16 %v510
    %v1645 = vunpack.c.l.b16 %v511
    %v1646 = vunpack.c.l.b16 %v512
    %v1647 = vunpack.c.h.b16 %v512
    %v1648 = vunpack.c.l.b16 %v513
    %v1649 = vunpack.c.h.b16 %v513
    %v1650 = vunpack.c.l.b16 %v514
    %v1651 = vunpack.c.l.b16 %v515
    %v1652 = vunpack.c.h.b16 %v515
    %v1653 = vunpack.c.l.b16 %v516
    %v1654 = vunpack.c.h.b16 %v516
    %v1655 = vunpack.c.l.b16 %v517
    %v1656 = vunpack.c.l.b16 %v518
    %v1657 = vunpack.c.h.b16 %v518
    %v1658 = vunpack.c.l.b16 %v519
    %v1659 = vunpack.c.h.b16 %v519
    %v1660 = vunpack.c.l.b16 %v520
    %v1661 = vunpack.c.l.b16 %v521
    %v1662 = vunpack.c.h.b16 %v521
    %v1663 = vunpack.c.l.b16 %v522
    %v1664 = vunpack.c.h.b16 %v522
    %v1665 = vunpack.c.l.b16 %v523
    %v1666 = vunpack.c.l.b16 %v524
    %v1667 = vunpack.c.h.b16 %v524
    %v1668 = vunpack.c.l.b16 %v525
    %v1669 = vunpack.c.h.b16 %v525
    %v1670 = vunpack.c.l.b16 %v526
    %v1671 = vunpack.c.l.b16 %v527
    %v1672 = vunpack.c.h.b16 %v527
    %v1673 = vunpack.c.l.b16 %v528
    %v1674 = vunpack.c.h.b16 %v528
    %v1675 = vunpack.c.l.b16 %v529
    %v1676 = vunpack.c.l.b16 %v530
    %v1677 = vunpack.c.h.b16 %v530
    %v1678 = vunpack.c.l.b16 %v531
    %v1679 = vunpack.c.h.b16 %v531
    %v1680 = vunpack.c.l.b16 %v532
    %v1681 = vunpack.c.l.b16 %v533
    %v1682 = vunpack.c.h.b16 %v533
    %v1683 = vunpack.c.l.b16 %v534
    %v1684 = vunpack.c.h.b16 %v534
    %v1685 = vunpack.c.l.b16 %v535
    %v1686 = vunpack.c.l.b16 %v536
    %v1687 = vunpack.c.h.b16 %v536
    %v1688 = vunpack.c.l.b16 %v537
    %v1689 = vunpack.c.h.b16 %v537
    %v1690 = vunpack.c.l.b16 %v538
    %v1691 = vunpack.c.l.b16 %v539
    %v1692 = vunpack.c.h.b16 %v539
    %v1693 = vunpack.c.l.b16 %v540
    %v1694 = vunpack.c.h.b16 %v540
    %v1695 = vunpack.c.l.b16 %v541
    %v1696 = vunpack.c.l.b16 %v542
    %v1697 = vunpack.c.h.b16 %v542
    %v1698 = vunpack.c.l.b16 %v543
    %v1699 = vunpack.c.h.b16 %v543
    %v1700 = vunpack.c.l.b16 %v544
    %v1701 = vunpack.c.l.b16 %v545
    %v1702 = vunpack.c.h.b16 %v545
    %v1703 = vunpack.c.l.b16 %v546
    %v1704 = vunpack.c.h.b16 %v546
    %v1705 = vunpack.c.l.b16 %v547
    %v1706 = vunpack.c.l.b16 %v548
    %v1707 = vunpack.c.h.b16 %v548
    %v1708 = vunpack.c.l.b16 %v549
    %v1709 = vunpack.c.h.b16 %v549
    %v1710 = vunpack.c.l.b16 %v550
    %v1711 = vunpack.c.l.b16 %v551
    %v1712 = vunpack.c.h.b16 %v551
    %v1713 = vunpack.c.l.b16 %v552
    %v1714 = vunpack.c.h.b16 %v552
    %v1715 = vunpack.c.l.b16 %v553
    %v1716 = vpack.c.b16 %v1031, %v1026
    %v1717 = vpack.c.b16 %v1032, %v1027
    %v1718 = vpack.c.b16 %v1033, %v1028
    %v1719 = vpack.c.b16 %v1034, %v1029
    %v1720 = vpack.c.b16 %v1035, %v1030
    %v1721 = vpack.c.b16 %v1041, %v1036
    %v1722 = vpack.c.b16 %v1042, %v1037
    %v1723 = vpack.c.b16 %v1043, %v1038
    %v1724 = vpack.c.b16 %v1044, %v1039
    %v1725 = vpack.c.b16 %v1045, %v1040
    %v1726 = vpack.c.b16 %v1051, %v1046
    %v1727 = vpack.c.b16 %v1052, %v1047
    %v1728 = vpack.c.b16 %v1053, %v1048
    %v1729 = vpack.c.b16 %v1054, %v1049
    %v1730 = vpack.c.b16 %v1055, %v1050
    %v1731 = vpack.c.b16 %v1061, %v1056
    %v1732 = vpack.c.b16 %v1062, %v1057
    %v1733 = vpack.c.b16 %v1063, %v1058
    %v1734 = vpack.c.b16 %v1064, %v1059
    %v1735 = vpack.c.b16 %v1065, %v1060
    %v1736 = vpack.c.b16 %v1071, %v1066
    %v1737 = vpack.c.b16 %v1072, %v1067
    %v1738 = vpack.c.b16 %v1073, %v1068
    %v1739 = vpack.c.b16 %v1074, %v1069
    %v1740 = vpack.c.b16 %v1075, %v1070
    %v1741 = vpack.c.b16 %v1081, %v1076
    %v1742 = vpack.c.b16 %v1082, %v1077
    %v1743 = vpack.c.b16 %v1083, %v1078
    %v1744 = vpack.c.b16 %v1084, %v1079
    %v1745 = vpack.c.b16 %v1085, %v1080
    %v1746 = vpack.c.b16 %v1091, %v1086
    %v1747 = vpack.c.b16 %v1092, %v1087
    %v1748 = vpack.c.b16 %v1093, %v1088
    %v1749 = vpack.c.b16 %v1094, %v1089
    %v1750 = vpack.c.b16 %v1095, %v1090
    %v1751 = vpack.c.b16 %v1101, %v1096
    %v1752 = vpack.c.b16 %v1102, %v1097
    %v1753 = vpack.c.b16 %v1103, %v1098
    %v1754 = vpack.c.b16 %v1104, %v1099
    %v1755 = vpack.c.b16 %v1105, %v1100
    %v1756 = vpack.c.b16 %v1111, %v1106
    %v1757 = vpack.c.b16 %v1112, %v1107
    %v1758 = vpack.c.b16 %v1113, %v1108
    %v1759 = vpack.c.b16 %v1114, %v1109
    %v1760 = vpack.c.b16 %v1115, %v1110
    %v1761 = vpack.c.b16 %v1121, %v1116
    %v1762 = vpack.c.b16 %v1122, %v1117
    %v1763 = vpack.c.b16 %v1123, %v1118
    %v1764 = vpack.c.b16 %v1124, %v1119
    %v1765 = vpack.c.b16 %v1125, %v1120
    %v1766 = vpack.c.b16 %v1131, %v1126
    %v1767 = vpack.c.b16 %v1132, %v1127
    %v1768 = vpack.c.b16 %v1133, %v1128
    %v1769 = vpack.c.b16 %v1134, %v1129
    %v1770 = vpack.c.b16 %v1135, %v1130
    %v1771 = vpack.c.b16 %v1141, %v1136
    %v1772 = vpack.c.b16 %v1142, %v1137
    %v1773 = vpack.c.b16 %v1143, %v1138
    %v1774 = vpack.c.b16 %v1144, %v1139
    %v1775 = vpack.c.b16 %v1145, %v1140
    %v1776 = vpack.c.b16 %v1151, %v1146
    %v1777 = vpack.c.b16 %v1152, %v1147
    %v1778 = vpack.c.b16 %v1153, %v1148
    %v1779 = vpack.c.b16 %v1154, %v1149
    %v1780 = vpack.c.b16 %v1155, %v1150
    %v1781 = vpack.c.b16 %v1161, %v1156
    %v1782 = vpack.c.b16 %v1162, %v1157
    %v1783 = vpack.c.b16 %v1163, %v1158
    %v1784 = vpack.c.b16 %v1164, %v1159
    %v1785 = vpack.c.b16 %v1165, %v1160
    %v1786 = vpack.c.b16 %v1171, %v1166
    %v1787 = vpack.c.b16 %v1172, %v1167
    %v1788 = vpack.c.b16 %v1173, %v1168
    %v1789 = vpack.c.b16 %v1174, %v1169
    %v1790 = vpack.c.b16 %v1175, %v1170
    %v1791 = vpack.c.b16 %v1181, %v1176
    %v1792 = vpack.c.b16 %v1182, %v1177
    %v1793 = vpack.c.b16 %v1183, %v1178
    %v1794 = vpack.c.b16 %v1184, %v1179
    %v1795 = vpack.c.b16 %v1185, %v1180
    %v1796 = vpack.c.b16 %v1191, %v1186
    %v1797 = vpack.c.b16 %v1192, %v1187
    %v1798 = vpack.c.b16 %v1193, %v1188
    %v1799 = vpack.c.b16 %v1194, %v1189
    %v1800 = vpack.c.b16 %v1195, %v1190
    %v1801 = vpack.c.b16 %v1201, %v1196
    %v1802 = vpack.c.b16 %v1202, %v1197
    %v1803 = vpack.c.b16 %v1203, %v1198
    %v1804 = vpack.c.b16 %v1204, %v1199
    %v1805 = vpack.c.b16 %v1205, %v1200
    %v1806 = vpack.c.b16 %v1211, %v1206
    %v1807 = vpack.c.b16 %v1212, %v1207
    %v1808 = vpack.c.b16 %v1213, %v1208
    %v1809 = vpack.c.b16 %v1214, %v1209
    %v1810 = vpack.c.b16 %v1215, %v1210
    %v1811 = vpack.c.b16 %v1221, %v1216
    %v1812 = vpack.c.b16 %v1222, %v1217
    %v1813 = vpack.c.b16 %v1223, %v1218
    %v1814 = vpack.c.b16 %v1224, %v1219
    %v1815 = vpack.c.b16 %v1225, %v1220
    %v1816 = vpack.c.b16 %v1231, %v1226
    %v1817 = vpack.c.b16 %v1232, %v1227
    %v1818 = vpack.c.b16 %v1233, %v1228
    %v1819 = vpack.c.b16 %v1234, %v1229
    %v1820 = vpack.c.b16 %v1235, %v1230
    %v1821 = vpack.c.b16 %v1241, %v1236
    %v1822 = vpack.c.b16 %v1242, %v1237
    %v1823 = vpack.c.b16 %v1243, %v1238
    %v1824 = vpack.c.b16 %v1244, %v1239
    %v1825 = vpack.c.b16 %v1245, %v1240
    %v1826 = vpack.c.b16 %v1251, %v1246
    %v1827 = vpack.c.b16 %v1252, %v1247
    %v1828 = vpack.c.b16 %v1253, %v1248
    %v1829 = vpack.c.b16 %v1254, %v1249
    %v1830 = vpack.c.b16 %v1255, %v1250
    %v1831 = vpack.c.b16 %v1261, %v1256
    %v1832 = vpack.c.b16 %v1262, %v1257
    %v1833 = vpack.c.b16 %v1263, %v1258
    %v1834 = vpack.c.b16 %v1264, %v1259
    %v1835 = vpack.c.b16 %v1265, %v1260
    %v1836 = vpack.c.b16 %v1271, %v1266
    %v1837 = vpack.c.b16 %v1272, %v1267
    %v1838 = vpack.c.b16 %v1273, %v1268
    %v1839 = vpack.c.b16 %v1274, %v1269
    %v1840 = vpack.c.b16 %v1275, %v1270
    %v1841 = vpack.c.b16 %v1281, %v1276
    %v1842 = vpack.c.b16 %v1282, %v1277
    %v1843 = vpack.c.b16 %v1283, %v1278
    %v1844 = vpack.c.b16 %v1284, %v1279
    %v1845 = vpack.c.b16 %v1285, %v1280
    %v1846 = vpack.c.b16 %v1291, %v1286
    %v1847 = vpack.c.b16 %v1292, %v1287
    %v1848 = vpack.c.b16 %v1293, %v1288
    %v1849 = vpack.c.b16 %v1294, %v1289
    %v1850 = vpack.c.b16 %v1295, %v1290
    %v1851 = vpack.c.b16 %v1301, %v1296
    %v1852 = vpack.c.b16 %v1302, %v1297
    %v1853 = vpack.c.b16 %v1303, %v1298
    %v1854 = vpack.c.b16 %v1304, %v1299
    %v1855 = vpack.c.b16 %v1305, %v1300
    %v1856 = vpack.c.b16 %v1311, %v1306
    %v1857 = vpack.c.b16 %v1312, %v1307
    %v1858 = vpack.c.b16 %v1313, %v1308
    %v1859 = vpack.c.b16 %v1314, %v1309
    %v1860 = vpack.c.b16 %v1315, %v1310
    %v1861 = vpack.c.b16 %v1321, %v1316
    %v1862 = vpack.c.b16 %v1322, %v1317
    %v1863 = vpack.c.b16 %v1323, %v1318
    %v1864 = vpack.c.b16 %v1324, %v1319
    %v1865 = vpack.c.b16 %v1325, %v1320
    %v1866 = vpack.c.b16 %v1331, %v1326
    %v1867 = vpack.c.b16 %v1332, %v1327
    %v1868 = vpack.c.b16 %v1333, %v1328
    %v1869 = vpack.c.b16 %v1334, %v1329
    %v1870 = vpack.c.b16 %v1335, %v1330
    %v1871 = vpack.c.b16 %v1341, %v1336
    %v1872 = vpack.c.b16 %v1342, %v1337
    %v1873 = vpack.c.b16 %v1343, %v1338
    %v1874 = vpack.c.b16 %v1344, %v1339
    %v1875 = vpack.c.b16 %v1345, %v1340
    %v1876 = vpack.c.b16 %v1351, %v1346
    %v1877 = vpack.c.b16 %v1352, %v1347
    %v1878 = vpack.c.b16 %v1353, %v1348
    %v1879 = vpack.c.b16 %v1354, %v1349
    %v1880 = vpack.c.b16 %v1355, %v1350
    %v1881 = vpack.c.b16 %v1361, %v1356
    %v1882 = vpack.c.b16 %v1362, %v1357
    %v1883 = vpack.c.b16 %v1363, %v1358
    %v1884 = vpack.c.b16 %v1364, %v1359
    %v1885 = vpack.c.b16 %v1365, %v1360
    %v1886 = vpack.c.b16 %v1371, %v1366
    %v1887 = vpack.c.b16 %v1372, %v1367
    %v1888 = vpack.c.b16 %v1373, %v1368
    %v1889 = vpack.c.b16 %v1374, %v1369
    %v1890 = vpack.c.b16 %v1375, %v1370
    %v1891 = vpack.c.b16 %v1381, %v1376
    %v1892 = vpack.c.b16 %v1382, %v1377
    %v1893 = vpack.c.b16 %v1383, %v1378
    %v1894 = vpack.c.b16 %v1384, %v1379
    %v1895 = vpack.c.b16 %v1385, %v1380
    %v1896 = vpack.c.b16 %v1391, %v1386
    %v1897 = vpack.c.b16 %v1392, %v1387
    %v1898 = vpack.c.b16 %v1393, %v1388
    %v1899 = vpack.c.b16 %v1394, %v1389
    %v1900 = vpack.c.b16 %v1395, %v1390
    %v1901 = vpack.c.b16 %v1401, %v1396
    %v1902 = vpack.c.b16 %v1402, %v1397
    %v1903 = vpack.c.b16 %v1403, %v1398
    %v1904 = vpack.c.b16 %v1404, %v1399
    %v1905 = vpack.c.b16 %v1405, %v1400
    %v1906 = vpack.c.b16 %v1411, %v1406
    %v1907 = vpack.c.b16 %v1412, %v1407
    %v1908 = vpack.c.b16 %v1413, %v1408
    %v1909 = vpack.c.b16 %v1414, %v1409
    %v1910 = vpack.c.b16 %v1415, %v1410
    %v1911 = vpack.c.b16 %v1421, %v1416
    %v1912 = vpack.c.b16 %v1422, %v1417
    %v1913 = vpack.c.b16 %v1423, %v1418
    %v1914 = vpack.c.b16 %v1424, %v1419
    %v1915 = vpack.c.b16 %v1425, %v1420
    %v1916 = vpack.c.b16 %v1431, %v1426
    %v1917 = vpack.c.b16 %v1432, %v1427
    %v1918 = vpack.c.b16 %v1433, %v1428
    %v1919 = vpack.c.b16 %v1434, %v1429
    %v1920 = vpack.c.b16 %v1435, %v1430
    %v1921 = vpack.c.b16 %v1441, %v1436
    %v1922 = vpack.c.b16 %v1442, %v1437
    %v1923 = vpack.c.b16 %v1443, %v1438
    %v1924 = vpack.c.b16 %v1444, %v1439
    %v1925 = vpack.c.b16 %v1445, %v1440
    %v1926 = vpack.c.b16 %v1451, %v1446
    %v1927 = vpack.c.b16 %v1452, %v1447
    %v1928 = vpack.c.b16 %v1453, %v1448
    %v1929 = vpack.c.b16 %v1454, %v1449
    %v1930 = vpack.c.b16 %v1455, %v1450
    %v1931 = vpack.c.b16 %v1461, %v1456
    %v1932 = vpack.c.b16 %v1462, %v1457
    %v1933 = vpack.c.b16 %v1463, %v1458
    %v1934 = vpack.c.b16 %v1464, %v1459
    %v1935 = vpack.c.b16 %v1465, %v1460
    %v1936 = vpack.c.b16 %v1471, %v1466
    %v1937 = vpack.c.b16 %v1472, %v1467
    %v1938 = vpack.c.b16 %v1473, %v1468
    %v1939 = vpack.c.b16 %v1474, %v1469
    %v1940 = vpack.c.b16 %v1475, %v1470
    %v1941 = vpack.c.b16 %v1481, %v1476
    %v1942 = vpack.c.b16 %v1482, %v1477
    %v1943 = vpack.c.b16 %v1483, %v1478
    %v1944 = vpack.c.b16 %v1484, %v1479
    %v1945 = vpack.c.b16 %v1485, %v1480
    %v1946 = vpack.c.b16 %v1491, %v1486
    %v1947 = vpack.c.b16 %v1492, %v1487
    %v1948 = vpack.c.b16 %v1493, %v1488
    %v1949 = vpack.c.b16 %v1494, %v1489
    %v1950 = vpack.c.b16 %v1495, %v1490
    %v1951 = vpack.c.b16 %v1501, %v1496
    %v1952 = vpack.c.b16 %v1502, %v1497
    %v1953 = vpack.c.b16 %v1503, %v1498
    %v1954 = vpack.c.b16 %v1504, %v1499
    %v1955 = vpack.c.b16 %v1505, %v1500
    %v1956 = vpack.c.b16 %v1511, %v1506
    %v1957 = vpack.c.b16 %v1512, %v1507
    %v1958 = vpack.c.b16 %v1513, %v1508
    %v1959 = vpack.c.b16 %v1514, %v1509
    %v1960 = vpack.c.b16 %v1515, %v1510
    %v1961 = vpack.c.b16 %v1521, %v1516
    %v1962 = vpack.c.b16 %v1522, %v1517
    %v1963 = vpack.c.b16 %v1523, %v1518
    %v1964 = vpack.c.b16 %v1524, %v1519
    %v1965 = vpack.c.b16 %v1525, %v1520
    %v1966 = vpack.c.b16 %v1531, %v1526
    %v1967 = vpack.c.b16 %v1532, %v1527
    %v1968 = vpack.c.b16 %v1533, %v1528
    %v1969 = vpack.c.b16 %v1534, %v1529
    %v1970 = vpack.c.b16 %v1535, %v1530
    %v1971 = vpack.c.b16 %v1541, %v1536
    %v1972 = vpack.c.b16 %v1542, %v1537
    %v1973 = vpack.c.b16 %v1543, %v1538
    %v1974 = vpack.c.b16 %v1544, %v1539
    %v1975 = vpack.c.b16 %v1545, %v1540
    %v1976 = vpack.c.b16 %v1551, %v1546
    %v1977 = vpack.c.b16 %v1552, %v1547
    %v1978 = vpack.c.b16 %v1553, %v1548
    %v1979 = vpack.c.b16 %v1554, %v1549
    %v1980 = vpack.c.b16 %v1555, %v1550
    %v1981 = vpack.c.b16 %v1561, %v1556
    %v1982 = vpack.c.b16 %v1562, %v1557
    %v1983 = vpack.c.b16 %v1563, %v1558
    %v1984 = vpack.c.b16 %v1564, %v1559
    %v1985 = vpack.c.b16 %v1565, %v1560
    %v1986 = vpack.c.b16 %v1571, %v1566
    %v1987 = vpack.c.b16 %v1572, %v1567
    %v1988 = vpack.c.b16 %v1573, %v1568
    %v1989 = vpack.c.b16 %v1574, %v1569
    %v1990 = vpack.c.b16 %v1575, %v1570
    %v1991 = vpack.c.b16 %v1581, %v1576
    %v1992 = vpack.c.b16 %v1582, %v1577
    %v1993 = vpack.c.b16 %v1583, %v1578
    %v1994 = vpack.c.b16 %v1584, %v1579
    %v1995 = vpack.c.b16 %v1585, %v1580
    %v1996 = vpack.c.b16 %v1591, %v1586
    %v1997 = vpack.c.b16 %v1592, %v1587
    %v1998 = vpack.c.b16 %v1593, %v1588
    %v1999 = vpack.c.b16 %v1594, %v1589
    %v2000 = vpack.c.b16 %v1595, %v1590
    %v2001 = vpack.c.b16 %v1601, %v1596
    %v2002 = vpack.c.b16 %v1602, %v1597
    %v2003 = vpack.c.b16 %v1603, %v1598
    %v2004 = vpack.c.b16 %v1604, %v1599
    %v2005 = vpack.c.b16 %v1605, %v1600
    %v2006 = vpack.c.b16 %v1611, %v1606
    %v2007 = vpack.c.b16 %v1612, %v1607
    %v2008 = vpack.c.b16 %v1613, %v1608
    %v2009 = vpack.c.b16 %v1614, %v1609
    %v2010 = vpack.c.b16 %v1615, %v1610
    %v2011 = vpack.c.b16 %v1621, %v1616
    %v2012 = vpack.c.b16 %v1622, %v1617
    %v2013 = vpack.c.b16 %v1623, %v1618
    %v2014 = vpack.c.b16 %v1624, %v1619
    %v2015 = vpack.c.b16 %v1625, %v1620
    %v2016 = vpack.c.b16 %v1631, %v1626
    %v2017 = vpack.c.b16 %v1632, %v1627
    %v2018 = vpack.c.b16 %v1633, %v1628
    %v2019 = vpack.c.b16 %v1634, %v1629
    %v2020 = vpack.c.b16 %v1635, %v1630
    %v2021 = vpack.c.b16 %v1641, %v1636
    %v2022 = vpack.c.b16 %v1642, %v1637
    %v2023 = vpack.c.b16 %v1643, %v1638
    %v2024 = vpack.c.b16 %v1644, %v1639
    %v2025 = vpack.c.b16 %v1645, %v1640
    %v2026 = vpack.c.b16 %v1651, %v1646
    %v2027 = vpack.c.b16 %v1652, %v1647
    %v2028 = vpack.c.b16 %v1653, %v1648
    %v2029 = vpack.c.b16 %v1654, %v1649
    %v2030 = vpack.c.b16 %v1655, %v1650
    %v2031 = vpack.c.b16 %v1661, %v1656
    %v2032 = vpack.c.b16 %v1662, %v1657
    %v2033 = vpack.c.b16 %v1663, %v1658
    %v2034 = vpack.c.b16 %v1664, %v1659
    %v2035 = vpack.c.b16 %v1665, %v1660
    %v2036 = vpack.c.b16 %v1671, %v1666
    %v2037 = vpack.c.b16 %v1672, %v1667
    %v2038 = vpack.c.b16 %v1673, %v1668
    %v2039 = vpack.c.b16 %v1674, %v1669
    %v2040 = vpack.c.b16 %v1675, %v1670
    %v2041 = vpack.c.b16 %v1681, %v1676
    %v2042 = vpack.c.b16 %v1682, %v1677
    %v2043 = vpack.c.b16 %v1683, %v1678
    %v2044 = vpack.c.b16 %v1684, %v1679
    %v2045 = vpack.c.b16 %v1685, %v1680
    %v2046 = vpack.c.b16 %v1691, %v1686
    %v2047 = vpack.c.b16 %v1692, %v1687
    %v2048 = vpack.c.b16 %v1693, %v1688
    %v2049 = vpack.c.b16 %v1694, %v1689
    %v2050 = vpack.c.b16 %v1695, %v1690
    %v2051 = vpack.c.b16 %v1701, %v1696
    %v2052 = vpack.c.b16 %v1702, %v1697
    %v2053 = vpack.c.b16 %v1703, %v1698
    %v2054 = vpack.c.b16 %v1704, %v1699
    %v2055 = vpack.c.b16 %v1705, %v1700
    %v2056 = vpack.c.b16 %v1711, %v1706
    %v2057 = vpack.c.b16 %v1712, %v1707
    %v2058 = vpack.c.b16 %v1713, %v1708
    %v2059 = vpack.c.b16 %v1714, %v1709
    %v2060 = vpack.c.b16 %v1715, %v1710
    %vm2401 = vcmask 621568
    %v2403 = vsel %vm2401, %v603, 0
    %vm2405 = vcmask 1045504
    %v2407 = vsel %vm2405, %v2056, 0
    %v2410 = vsel %vm2405, %v2057, 0
    %v2413 = vsel %vm2405, %v2058, 0
    %v2416 = vsel %vm2405, %v2059, 0
    %v2419 = vsel %vm2405, %v2060, 0
    %2421 = vmatprep.subr.bf16.mxu0 %v1717
    %2422 = vmatpush1.bf16.msra.mxu0 %v1716
    %2423 = vmatprep.subr.bf16.mxu0 %v1722
    %2424 = vmatpush1.bf16.msra.mxu0 %v1721
    %2425 = vmatprep.subr.bf16.mxu0 %v1727
    %2426 = vmatpush1.bf16.msra.mxu0 %v1726
    %2427 = vmatprep.subr.bf16.mxu0 %v1732
    %2428 = vmatpush1.bf16.msra.mxu0 %v1731
    %2429 = vmatprep.subr.bf16.mxu0 %v1737
    %2430 = vmatpush1.bf16.msra.mxu0 %v1736
    %2431 = vmatprep.subr.bf16.mxu0 %v1742
    %2432 = vmatpush1.bf16.msra.mxu0 %v1741
    %2433 = vmatprep.subr.bf16.mxu0 %v1747
    %2434 = vmatpush1.bf16.msra.mxu0 %v1746
    %2435 = vmatprep.subr.bf16.mxu0 %v1752
    %2436 = vmatpush1.bf16.msra.mxu0 %v1751
    %2437 = vmatprep.subr.bf16.mxu0 %v1757
    %2438 = vmatpush1.bf16.msra.mxu0 %v1756
    %2439 = vmatprep.subr.bf16.mxu0 %v1762
    %2440 = vmatpush1.bf16.msra.mxu0 %v1761
    %2441 = vmatprep.subr.bf16.mxu0 %v1767
    %2442 = vmatpush1.bf16.msra.mxu0 %v1766
    %2443 = vmatprep.subr.bf16.mxu0 %v1772
    %2444 = vmatpush1.bf16.msra.mxu0 %v1771
    %2445 = vmatprep.subr.bf16.mxu0 %v1777
    %2446 = vmatpush1.bf16.msra.mxu0 %v1776
    %2447 = vmatprep.subr.bf16.mxu0 %v1782
    %2448 = vmatpush1.bf16.msra.mxu0 %v1781
    %2449 = vmatprep.subr.bf16.mxu0 %v1787
    %2450 = vmatpush1.bf16.msra.mxu0 %v1786
    %2451 = vmatprep.subr.bf16.mxu0 %v1792
    %2452 = vmatpush1.bf16.msra.mxu0 %v1791
    %2453 = vmatprep.mubr.bf16.mxu0 %v596
    %2454 = vmatmul.mubr.bf16.gmra.mrb[0].mxu0 %v595
    %v2455 = vpop.f32.mrb[0].mxu0
    %v2456 = vadd.f32 %v559, %v2455
    %v2457 = vpop.f32.mrb[0].mxu0
    %v2458 = vadd.f32 %v563, %v2457
    %v2459 = vpop.f32.mrb[0].mxu0
    %v2460 = vpop.f32.mrb[0].mxu0
    %2461 = vdwg.mxu0
    %2462 = vmatprep.subr.bf16.mxu0 %v1797
    %2463 = vmatpush1.bf16.msra.mxu0 %v1796
    %2464 = vmatprep.subr.bf16.mxu0 %v1802
    %2465 = vmatpush1.bf16.msra.mxu0 %v1801
    %2466 = vmatprep.subr.bf16.mxu0 %v1807
    %2467 = vmatpush1.bf16.msra.mxu0 %v1806
    %2468 = vmatprep.subr.bf16.mxu0 %v1812
    %2469 = vmatpush1.bf16.msra.mxu0 %v1811
    %2470 = vmatprep.subr.bf16.mxu0 %v1817
    %2471 = vmatpush1.bf16.msra.mxu0 %v1816
    %2472 = vmatprep.subr.bf16.mxu0 %v1822
    %2473 = vmatpush1.bf16.msra.mxu0 %v1821
    %2474 = vmatprep.subr.bf16.mxu0 %v1827
    %2475 = vmatpush1.bf16.msra.mxu0 %v1826
    %2476 = vmatprep.subr.bf16.mxu0 %v1832
    %2477 = vmatpush1.bf16.msra.mxu0 %v1831
    %2478 = vmatprep.subr.bf16.mxu0 %v1837
    %2479 = vmatpush1.bf16.msra.mxu0 %v1836
    %2480 = vmatprep.subr.bf16.mxu0 %v1842
    %2481 = vmatpush1.bf16.msra.mxu0 %v1841
    %2482 = vmatprep.subr.bf16.mxu0 %v1847
    %2483 = vmatpush1.bf16.msra.mxu0 %v1846
    %2484 = vmatprep.subr.bf16.mxu0 %v1852
    %2485 = vmatpush1.bf16.msra.mxu0 %v1851
    %2486 = vmatprep.subr.bf16.mxu0 %v1857
    %2487 = vmatpush1.bf16.msra.mxu0 %v1856
    %2488 = vmatprep.subr.bf16.mxu0 %v1862
    %2489 = vmatpush1.bf16.msra.mxu0 %v1861
    %2490 = vmatprep.subr.bf16.mxu0 %v1867
    %2491 = vmatpush1.bf16.msra.mxu0 %v1866
    %2492 = vmatprep.subr.bf16.mxu0 %v1872
    %2493 = vmatpush1.bf16.msra.mxu0 %v1871
    %2494 = vmatprep.mubr.bf16.mxu0 %v598
    %2495 = vmatmul.mubr.bf16.gmra.mrb[0].mxu0 %v597
    %v2496 = vpop.f32.mrb[0].mxu0
    %v2497 = vadd.f32 %v2456, %v2496
    %v2498 = vpop.f32.mrb[0].mxu0
    %v2499 = vadd.f32 %v2458, %v2498
    %v2500 = vpop.f32.mrb[0].mxu0
    %v2501 = vpop.f32.mrb[0].mxu0
    %2502 = vdwg.mxu0
    %2503 = vmatprep.subr.bf16.mxu0 %v1877
    %2504 = vmatpush1.bf16.msra.mxu0 %v1876
    %2505 = vmatprep.subr.bf16.mxu0 %v1882
    %2506 = vmatpush1.bf16.msra.mxu0 %v1881
    %2507 = vmatprep.subr.bf16.mxu0 %v1887
    %2508 = vmatpush1.bf16.msra.mxu0 %v1886
    %2509 = vmatprep.subr.bf16.mxu0 %v1892
    %2510 = vmatpush1.bf16.msra.mxu0 %v1891
    %2511 = vmatprep.subr.bf16.mxu0 %v1897
    %2512 = vmatpush1.bf16.msra.mxu0 %v1896
    %2513 = vmatprep.subr.bf16.mxu0 %v1902
    %2514 = vmatpush1.bf16.msra.mxu0 %v1901
    %2515 = vmatprep.subr.bf16.mxu0 %v1907
    %2516 = vmatpush1.bf16.msra.mxu0 %v1906
    %2517 = vmatprep.subr.bf16.mxu0 %v1912
    %2518 = vmatpush1.bf16.msra.mxu0 %v1911
    %2519 = vmatprep.subr.bf16.mxu0 %v1917
    %2520 = vmatpush1.bf16.msra.mxu0 %v1916
    %2521 = vmatprep.subr.bf16.mxu0 %v1922
    %2522 = vmatpush1.bf16.msra.mxu0 %v1921
    %2523 = vmatprep.subr.bf16.mxu0 %v1927
    %2524 = vmatpush1.bf16.msra.mxu0 %v1926
    %2525 = vmatprep.subr.bf16.mxu0 %v1932
    %2526 = vmatpush1.bf16.msra.mxu0 %v1931
    %2527 = vmatprep.subr.bf16.mxu0 %v1937
    %2528 = vmatpush1.bf16.msra.mxu0 %v1936
    %2529 = vmatprep.subr.bf16.mxu0 %v1942
    %2530 = vmatpush1.bf16.msra.mxu0 %v1941
    %2531 = vmatprep.subr.bf16.mxu0 %v1947
    %2532 = vmatpush1.bf16.msra.mxu0 %v1946
    %2533 = vmatprep.subr.bf16.mxu0 %v1952
    %2534 = vmatpush1.bf16.msra.mxu0 %v1951
    %2535 = vmatprep.mubr.bf16.mxu0 %v600
    %2536 = vmatmul.mubr.bf16.gmra.mrb[0].mxu0 %v599
    %v2537 = vpop.f32.mrb[0].mxu0
    %v2538 = vadd.f32 %v2497, %v2537
    %v2539 = vpop.f32.mrb[0].mxu0
    %v2540 = vadd.f32 %v2499, %v2539
    %v2541 = vpop.f32.mrb[0].mxu0
    %v2542 = vpop.f32.mrb[0].mxu0
    %2543 = vdwg.mxu0
    %2544 = vmatprep.subr.bf16.mxu0 %v1957
    %2545 = vmatpush1.bf16.msra.mxu0 %v1956
    %2546 = vmatprep.subr.bf16.mxu0 %v1962
    %2547 = vmatpush1.bf16.msra.mxu0 %v1961
    %2548 = vmatprep.subr.bf16.mxu0 %v1967
    %2549 = vmatpush1.bf16.msra.mxu0 %v1966
    %2550 = vmatprep.subr.bf16.mxu0 %v1972
    %2551 = vmatpush1.bf16.msra.mxu0 %v1971
    %2552 = vmatprep.subr.bf16.mxu0 %v1977
    %2553 = vmatpush1.bf16.msra.mxu0 %v1976
    %2554 = vmatprep.subr.bf16.mxu0 %v1982
    %2555 = vmatpush1.bf16.msra.mxu0 %v1981
    %2556 = vmatprep.subr.bf16.mxu0 %v1987
    %2557 = vmatpush1.bf16.msra.mxu0 %v1986
    %2558 = vmatprep.subr.bf16.mxu0 %v1992
    %2559 = vmatpush1.bf16.msra.mxu0 %v1991
    %2560 = vmatprep.subr.bf16.mxu0 %v1997
    %2561 = vmatpush1.bf16.msra.mxu0 %v1996
    %2562 = vmatprep.subr.bf16.mxu0 %v2002
    %2563 = vmatpush1.bf16.msra.mxu0 %v2001
    %2564 = vmatprep.subr.bf16.mxu0 %v2007
    %2565 = vmatpush1.bf16.msra.mxu0 %v2006
    %2566 = vmatprep.subr.bf16.mxu0 %v2012
    %2567 = vmatpush1.bf16.msra.mxu0 %v2011
    %2568 = vmatprep.subr.bf16.mxu0 %v2017
    %2569 = vmatpush1.bf16.msra.mxu0 %v2016
    %2570 = vmatprep.subr.bf16.mxu0 %v2022
    %2571 = vmatpush1.bf16.msra.mxu0 %v2021
    %2572 = vmatprep.subr.bf16.mxu0 %v2027
    %2573 = vmatpush1.bf16.msra.mxu0 %v2026
    %2574 = vmatprep.subr.bf16.mxu0 %v2032
    %2575 = vmatpush1.bf16.msra.mxu0 %v2031
    %2576 = vmatprep.mubr.bf16.mxu0 %v602
    %2577 = vmatmul.mubr.bf16.gmra.mrb[0].mxu0 %v601
    %v2578 = vpop.f32.mrb[0].mxu0
    %v2579 = vadd.f32 %v2538, %v2578
    %v2580 = vpop.f32.mrb[0].mxu0
    %v2581 = vadd.f32 %v2540, %v2580
    %v2582 = vpop.f32.mrb[0].mxu0
    %v2583 = vpop.f32.mrb[0].mxu0
    %2584 = vdwg.mxu0
    %2585 = vmatprep.subr.bf16.mxu0 %v2037
    %2586 = vmatpush1.bf16.msra.mxu0 %v2036
    %2587 = vmatprep.subr.bf16.mxu0 %v2042
    %2588 = vmatpush1.bf16.msra.mxu0 %v2041
    %2589 = vmatprep.subr.bf16.mxu0 %v2047
    %2590 = vmatpush1.bf16.msra.mxu0 %v2046
    %2591 = vmatprep.subr.bf16.mxu0 %v2052
    %2592 = vmatpush1.bf16.msra.mxu0 %v2051
    %2593 = vmatprep.subr.bf16.mxu0 %v2410
    %2594 = vmatpush1.bf16.msra.mxu0 %v2407
    %2595 = vmatprep.subr.bf16.mxu0 0
    %2596 = vmatpush1.bf16.msra.mxu0 0
    %2597 = vmatprep.subr.bf16.mxu0 0
    %2598 = vmatpush1.bf16.msra.mxu0 0
    %2599 = vmatprep.subr.bf16.mxu0 0
    %2600 = vmatpush1.bf16.msra.mxu0 0
    %2601 = vmatprep.subr.bf16.mxu0 0
    %2602 = vmatpush1.bf16.msra.mxu0 0
    %2603 = vmatprep.subr.bf16.mxu0 0
    %2604 = vmatpush1.bf16.msra.mxu0 0
    %2605 = vmatprep.subr.bf16.mxu0 0
    %2606 = vmatpush1.bf16.msra.mxu0 0
    %2607 = vmatprep.subr.bf16.mxu0 0
    %2608 = vmatpush1.bf16.msra.mxu0 0
    %2609 = vmatprep.subr.bf16.mxu0 0
    %2610 = vmatpush1.bf16.msra.mxu0 0
    %2611 = vmatprep.subr.bf16.mxu0 0
    %2612 = vmatpush1.bf16.msra.mxu0 0
    %2613 = vmatprep.subr.bf16.mxu0 0
    %2614 = vmatpush1.bf16.msra.mxu0 0
    %2615 = vmatprep.subr.bf16.mxu0 0
    %2616 = vmatpush1.bf16.msra.mxu0 0
    %2617 = vmatprep.mubr.bf16.mxu0 0
    %2618 = vmatmul.mubr.bf16.gmra.mrb[0].mxu0 %v2403
    %v2619 = vpop.f32.mrb[0].mxu0
    %v2620 = vadd.f32 %v2579, %v2619
    %v2621 = vpop.f32.mrb[0].mxu0
    %v2622 = vadd.f32 %v2581, %v2621
    %v2623 = vpop.f32.mrb[0].mxu0
    %v2624 = vpop.f32.mrb[0].mxu0
    %2625 = vdwg.mxu0
    %2626 = vmatprep.subr.bf16.mxu0 %v1719
    %2627 = vmatpush1.bf16.msra.mxu0 %v1718
    %2628 = vmatprep.subr.bf16.mxu0 %v1724
    %2629 = vmatpush1.bf16.msra.mxu0 %v1723
    %2630 = vmatprep.subr.bf16.mxu0 %v1729
    %2631 = vmatpush1.bf16.msra.mxu0 %v1728
    %2632 = vmatprep.subr.bf16.mxu0 %v1734
    %2633 = vmatpush1.bf16.msra.mxu0 %v1733
    %2634 = vmatprep.subr.bf16.mxu0 %v1739
    %2635 = vmatpush1.bf16.msra.mxu0 %v1738
    %2636 = vmatprep.subr.bf16.mxu0 %v1744
    %2637 = vmatpush1.bf16.msra.mxu0 %v1743
    %2638 = vmatprep.subr.bf16.mxu0 %v1749
    %2639 = vmatpush1.bf16.msra.mxu0 %v1748
    %2640 = vmatprep.subr.bf16.mxu0 %v1754
    %2641 = vmatpush1.bf16.msra.mxu0 %v1753
    %2642 = vmatprep.subr.bf16.mxu0 %v1759
    %2643 = vmatpush1.bf16.msra.mxu0 %v1758
    %2644 = vmatprep.subr.bf16.mxu0 %v1764
    %2645 = vmatpush1.bf16.msra.mxu0 %v1763
    %2646 = vmatprep.subr.bf16.mxu0 %v1769
    %2647 = vmatpush1.bf16.msra.mxu0 %v1768
    %2648 = vmatprep.subr.bf16.mxu0 %v1774
    %2649 = vmatpush1.bf16.msra.mxu0 %v1773
    %2650 = vmatprep.subr.bf16.mxu0 %v1779
    %2651 = vmatpush1.bf16.msra.mxu0 %v1778
    %2652 = vmatprep.subr.bf16.mxu0 %v1784
    %2653 = vmatpush1.bf16.msra.mxu0 %v1783
    %2654 = vmatprep.subr.bf16.mxu0 %v1789
    %2655 = vmatpush1.bf16.msra.mxu0 %v1788
    %2656 = vmatprep.subr.bf16.mxu0 %v1794
    %2657 = vmatpush1.bf16.msra.mxu0 %v1793
    %2658 = vmatprep.mubr.bf16.mxu0 %v596
    %2659 = vmatmul.mubr.bf16.gmra.mrb[0].mxu0 %v595
    %v2660 = vpop.f32.mrb[0].mxu0
    %v2661 = vadd.f32 %v567, %v2660
    %v2662 = vpop.f32.mrb[0].mxu0
    %v2663 = vadd.f32 %v571, %v2662
    %v2664 = vpop.f32.mrb[0].mxu0
    %v2665 = vpop.f32.mrb[0].mxu0
    %2666 = vdwg.mxu0
    %2667 = vmatprep.subr.bf16.mxu0 %v1799
    %2668 = vmatpush1.bf16.msra.mxu0 %v1798
    %2669 = vmatprep.subr.bf16.mxu0 %v1804
    %2670 = vmatpush1.bf16.msra.mxu0 %v1803
    %2671 = vmatprep.subr.bf16.mxu0 %v1809
    %2672 = vmatpush1.bf16.msra.mxu0 %v1808
    %2673 = vmatprep.subr.bf16.mxu0 %v1814
    %2674 = vmatpush1.bf16.msra.mxu0 %v1813
    %2675 = vmatprep.subr.bf16.mxu0 %v1819
    %2676 = vmatpush1.bf16.msra.mxu0 %v1818
    %2677 = vmatprep.subr.bf16.mxu0 %v1824
    %2678 = vmatpush1.bf16.msra.mxu0 %v1823
    %2679 = vmatprep.subr.bf16.mxu0 %v1829
    %2680 = vmatpush1.bf16.msra.mxu0 %v1828
    %2681 = vmatprep.subr.bf16.mxu0 %v1834
    %2682 = vmatpush1.bf16.msra.mxu0 %v1833
    %2683 = vmatprep.subr.bf16.mxu0 %v1839
    %2684 = vmatpush1.bf16.msra.mxu0 %v1838
    %2685 = vmatprep.subr.bf16.mxu0 %v1844
    %2686 = vmatpush1.bf16.msra.mxu0 %v1843
    %2687 = vmatprep.subr.bf16.mxu0 %v1849
    %2688 = vmatpush1.bf16.msra.mxu0 %v1848
    %2689 = vmatprep.subr.bf16.mxu0 %v1854
    %2690 = vmatpush1.bf16.msra.mxu0 %v1853
    %2691 = vmatprep.subr.bf16.mxu0 %v1859
    %2692 = vmatpush1.bf16.msra.mxu0 %v1858
    %2693 = vmatprep.subr.bf16.mxu0 %v1864
    %2694 = vmatpush1.bf16.msra.mxu0 %v1863
    %2695 = vmatprep.subr.bf16.mxu0 %v1869
    %2696 = vmatpush1.bf16.msra.mxu0 %v1868
    %2697 = vmatprep.subr.bf16.mxu0 %v1874
    %2698 = vmatpush1.bf16.msra.mxu0 %v1873
    %2699 = vmatprep.mubr.bf16.mxu0 %v598
    %2700 = vmatmul.mubr.bf16.gmra.mrb[0].mxu0 %v597
    %v2701 = vpop.f32.mrb[0].mxu0
    %v2702 = vadd.f32 %v2661, %v2701
    %v2703 = vpop.f32.mrb[0].mxu0
    %v2704 = vadd.f32 %v2663, %v2703
    %v2705 = vpop.f32.mrb[0].mxu0
    %v2706 = vpop.f32.mrb[0].mxu0
    %2707 = vdwg.mxu0
    %2708 = vmatprep.subr.bf16.mxu0 %v1879
    %2709 = vmatpush1.bf16.msra.mxu0 %v1878
    %2710 = vmatprep.subr.bf16.mxu0 %v1884
    %2711 = vmatpush1.bf16.msra.mxu0 %v1883
    %2712 = vmatprep.subr.bf16.mxu0 %v1889
    %2713 = vmatpush1.bf16.msra.mxu0 %v1888
    %2714 = vmatprep.subr.bf16.mxu0 %v1894
    %2715 = vmatpush1.bf16.msra.mxu0 %v1893
    %2716 = vmatprep.subr.bf16.mxu0 %v1899
    %2717 = vmatpush1.bf16.msra.mxu0 %v1898
    %2718 = vmatprep.subr.bf16.mxu0 %v1904
    %2719 = vmatpush1.bf16.msra.mxu0 %v1903
    %2720 = vmatprep.subr.bf16.mxu0 %v1909
    %2721 = vmatpush1.bf16.msra.mxu0 %v1908
    %2722 = vmatprep.subr.bf16.mxu0 %v1914
    %2723 = vmatpush1.bf16.msra.mxu0 %v1913
    %2724 = vmatprep.subr.bf16.mxu0 %v1919
    %2725 = vmatpush1.bf16.msra.mxu0 %v1918
    %2726 = vmatprep.subr.bf16.mxu0 %v1924
    %2727 = vmatpush1.bf16.msra.mxu0 %v1923
    %2728 = vmatprep.subr.bf16.mxu0 %v1929
    %2729 = vmatpush1.bf16.msra.mxu0 %v1928
    %2730 = vmatprep.subr.bf16.mxu0 %v1934
    %2731 = vmatpush1.bf16.msra.mxu0 %v1933
    %2732 = vmatprep.subr.bf16.mxu0 %v1939
    %2733 = vmatpush1.bf16.msra.mxu0 %v1938
    %2734 = vmatprep.subr.bf16.mxu0 %v1944
    %2735 = vmatpush1.bf16.msra.mxu0 %v1943
    %2736 = vmatprep.subr.bf16.mxu0 %v1949
    %2737 = vmatpush1.bf16.msra.mxu0 %v1948
    %2738 = vmatprep.subr.bf16.mxu0 %v1954
    %2739 = vmatpush1.bf16.msra.mxu0 %v1953
    %2740 = vmatprep.mubr.bf16.mxu0 %v600
    %2741 = vmatmul.mubr.bf16.gmra.mrb[0].mxu0 %v599
    %v2742 = vpop.f32.mrb[0].mxu0
    %v2743 = vadd.f32 %v2702, %v2742
    %v2744 = vpop.f32.mrb[0].mxu0
    %v2745 = vadd.f32 %v2704, %v2744
    %v2746 = vpop.f32.mrb[0].mxu0
    %v2747 = vpop.f32.mrb[0].mxu0
    %2748 = vdwg.mxu0
    %2749 = vmatprep.subr.bf16.mxu0 %v1959
    %2750 = vmatpush1.bf16.msra.mxu0 %v1958
    %2751 = vmatprep.subr.bf16.mxu0 %v1964
    %2752 = vmatpush1.bf16.msra.mxu0 %v1963
    %2753 = vmatprep.subr.bf16.mxu0 %v1969
    %2754 = vmatpush1.bf16.msra.mxu0 %v1968
    %2755 = vmatprep.subr.bf16.mxu0 %v1974
    %2756 = vmatpush1.bf16.msra.mxu0 %v1973
    %2757 = vmatprep.subr.bf16.mxu0 %v1979
    %2758 = vmatpush1.bf16.msra.mxu0 %v1978
    %2759 = vmatprep.subr.bf16.mxu0 %v1984
    %2760 = vmatpush1.bf16.msra.mxu0 %v1983
    %2761 = vmatprep.subr.bf16.mxu0 %v1989
    %2762 = vmatpush1.bf16.msra.mxu0 %v1988
    %2763 = vmatprep.subr.bf16.mxu0 %v1994
    %2764 = vmatpush1.bf16.msra.mxu0 %v1993
    %2765 = vmatprep.subr.bf16.mxu0 %v1999
    %2766 = vmatpush1.bf16.msra.mxu0 %v1998
    %2767 = vmatprep.subr.bf16.mxu0 %v2004
    %2768 = vmatpush1.bf16.msra.mxu0 %v2003
    %2769 = vmatprep.subr.bf16.mxu0 %v2009
    %2770 = vmatpush1.bf16.msra.mxu0 %v2008
    %2771 = vmatprep.subr.bf16.mxu0 %v2014
    %2772 = vmatpush1.bf16.msra.mxu0 %v2013
    %2773 = vmatprep.subr.bf16.mxu0 %v2019
    %2774 = vmatpush1.bf16.msra.mxu0 %v2018
    %2775 = vmatprep.subr.bf16.mxu0 %v2024
    %2776 = vmatpush1.bf16.msra.mxu0 %v2023
    %2777 = vmatprep.subr.bf16.mxu0 %v2029
    %2778 = vmatpush1.bf16.msra.mxu0 %v2028
    %2779 = vmatprep.subr.bf16.mxu0 %v2034
    %2780 = vmatpush1.bf16.msra.mxu0 %v2033
    %2781 = vmatprep.mubr.bf16.mxu0 %v602
    %2782 = vmatmul.mubr.bf16.gmra.mrb[0].mxu0 %v601
    %v2783 = vpop.f32.mrb[0].mxu0
    %v2784 = vadd.f32 %v2743, %v2783
    %v2785 = vpop.f32.mrb[0].mxu0
    %v2786 = vadd.f32 %v2745, %v2785
    %v2787 = vpop.f32.mrb[0].mxu0
    %v2788 = vpop.f32.mrb[0].mxu0
    %2789 = vdwg.mxu0
    %2790 = vmatprep.subr.bf16.mxu0 %v2039
    %2791 = vmatpush1.bf16.msra.mxu0 %v2038
    %2792 = vmatprep.subr.bf16.mxu0 %v2044
    %2793 = vmatpush1.bf16.msra.mxu0 %v2043
    %2794 = vmatprep.subr.bf16.mxu0 %v2049
    %2795 = vmatpush1.bf16.msra.mxu0 %v2048
    %2796 = vmatprep.subr.bf16.mxu0 %v2054
    %2797 = vmatpush1.bf16.msra.mxu0 %v2053
    %2798 = vmatprep.subr.bf16.mxu0 %v2416
    %2799 = vmatpush1.bf16.msra.mxu0 %v2413
    %2800 = vmatprep.subr.bf16.mxu0 0
    %2801 = vmatpush1.bf16.msra.mxu0 0
    %2802 = vmatprep.subr.bf16.mxu0 0
    %2803 = vmatpush1.bf16.msra.mxu0 0
    %2804 = vmatprep.subr.bf16.mxu0 0
    %2805 = vmatpush1.bf16.msra.mxu0 0
    %2806 = vmatprep.subr.bf16.mxu0 0
    %2807 = vmatpush1.bf16.msra.mxu0 0
    %2808 = vmatprep.subr.bf16.mxu0 0
    %2809 = vmatpush1.bf16.msra.mxu0 0
    %2810 = vmatprep.subr.bf16.mxu0 0
    %2811 = vmatpush1.bf16.msra.mxu0 0
    %2812 = vmatprep.subr.bf16.mxu0 0
    %2813 = vmatpush1.bf16.msra.mxu0 0
    %2814 = vmatprep.subr.bf16.mxu0 0
    %2815 = vmatpush1.bf16.msra.mxu0 0
    %2816 = vmatprep.subr.bf16.mxu0 0
    %2817 = vmatpush1.bf16.msra.mxu0 0
    %2818 = vmatprep.subr.bf16.mxu0 0
    %2819 = vmatpush1.bf16.msra.mxu0 0
    %2820 = vmatprep.subr.bf16.mxu0 0
    %2821 = vmatpush1.bf16.msra.mxu0 0
    %2822 = vmatprep.mubr.bf16.mxu0 0
    %2823 = vmatmul.mubr.bf16.gmra.mrb[0].mxu0 %v2403
    %v2824 = vpop.f32.mrb[0].mxu0
    %v2825 = vadd.f32 %v2784, %v2824
    %v2826 = vpop.f32.mrb[0].mxu0
    %v2827 = vadd.f32 %v2786, %v2826
    %v2828 = vpop.f32.mrb[0].mxu0
    %v2829 = vpop.f32.mrb[0].mxu0
    %2830 = vdwg.mxu0
    %2831 = vmatprep.subr.bf16.mxu0 0
    %2832 = vmatpush1.bf16.msra.mxu0 %v1720
    %2833 = vmatprep.subr.bf16.mxu0 0
    %2834 = vmatpush1.bf16.msra.mxu0 %v1725
    %2835 = vmatprep.subr.bf16.mxu0 0
    %2836 = vmatpush1.bf16.msra.mxu0 %v1730
    %2837 = vmatprep.subr.bf16.mxu0 0
    %2838 = vmatpush1.bf16.msra.mxu0 %v1735
    %2839 = vmatprep.subr.bf16.mxu0 0
    %2840 = vmatpush1.bf16.msra.mxu0 %v1740
    %2841 = vmatprep.subr.bf16.mxu0 0
    %2842 = vmatpush1.bf16.msra.mxu0 %v1745
    %2843 = vmatprep.subr.bf16.mxu0 0
    %2844 = vmatpush1.bf16.msra.mxu0 %v1750
    %2845 = vmatprep.subr.bf16.mxu0 0
    %2846 = vmatpush1.bf16.msra.mxu0 %v1755
    %2847 = vmatprep.subr.bf16.mxu0 0
    %2848 = vmatpush1.bf16.msra.mxu0 %v1760
    %2849 = vmatprep.subr.bf16.mxu0 0
    %2850 = vmatpush1.bf16.msra.mxu0 %v1765
    %2851 = vmatprep.subr.bf16.mxu0 0
    %2852 = vmatpush1.bf16.msra.mxu0 %v1770
    %2853 = vmatprep.subr.bf16.mxu0 0
    %2854 = vmatpush1.bf16.msra.mxu0 %v1775
    %2855 = vmatprep.subr.bf16.mxu0 0
    %2856 = vmatpush1.bf16.msra.mxu0 %v1780
    %2857 = vmatprep.subr.bf16.mxu0 0
    %2858 = vmatpush1.bf16.msra.mxu0 %v1785
    %2859 = vmatprep.subr.bf16.mxu0 0
    %2860 = vmatpush1.bf16.msra.mxu0 %v1790
    %2861 = vmatprep.subr.bf16.mxu0 0
    %2862 = vmatpush1.bf16.msra.mxu0 %v1795
    %2863 = vmatprep.mubr.bf16.mxu0 %v596
    %2864 = vmatmul.mubr.bf16.gmra.mrb[0].mxu0 %v595
    %v2865 = vpop.f32.mrb[0].mxu0
    %v2866 = vadd.f32 %v575, %v2865
    %v2867 = vpop.f32.mrb[0].mxu0
    %v2868 = vpop.f32.mrb[0].mxu0
    %v2869 = vpop.f32.mrb[0].mxu0
    %2870 = vdwg.mxu0
    %2871 = vmatprep.subr.bf16.mxu0 0
    %2872 = vmatpush1.bf16.msra.mxu0 %v1800
    %2873 = vmatprep.subr.bf16.mxu0 0
    %2874 = vmatpush1.bf16.msra.mxu0 %v1805
    %2875 = vmatprep.subr.bf16.mxu0 0
    %2876 = vmatpush1.bf16.msra.mxu0 %v1810
    %2877 = vmatprep.subr.bf16.mxu0 0
    %2878 = vmatpush1.bf16.msra.mxu0 %v1815
    %2879 = vmatprep.subr.bf16.mxu0 0
    %2880 = vmatpush1.bf16.msra.mxu0 %v1820
    %2881 = vmatprep.subr.bf16.mxu0 0
    %2882 = vmatpush1.bf16.msra.mxu0 %v1825
    %2883 = vmatprep.subr.bf16.mxu0 0
    %2884 = vmatpush1.bf16.msra.mxu0 %v1830
    %2885 = vmatprep.subr.bf16.mxu0 0
    %2886 = vmatpush1.bf16.msra.mxu0 %v1835
    %2887 = vmatprep.subr.bf16.mxu0 0
    %2888 = vmatpush1.bf16.msra.mxu0 %v1840
    %2889 = vmatprep.subr.bf16.mxu0 0
    %2890 = vmatpush1.bf16.msra.mxu0 %v1845
    %2891 = vmatprep.subr.bf16.mxu0 0
    %2892 = vmatpush1.bf16.msra.mxu0 %v1850
    %2893 = vmatprep.subr.bf16.mxu0 0
    %2894 = vmatpush1.bf16.msra.mxu0 %v1855
    %2895 = vmatprep.subr.bf16.mxu0 0
    %2896 = vmatpush1.bf16.msra.mxu0 %v1860
    %2897 = vmatprep.subr.bf16.mxu0 0
    %2898 = vmatpush1.bf16.msra.mxu0 %v1865
    %2899 = vmatprep.subr.bf16.mxu0 0
    %2900 = vmatpush1.bf16.msra.mxu0 %v1870
    %2901 = vmatprep.subr.bf16.mxu0 0
    %2902 = vmatpush1.bf16.msra.mxu0 %v1875
    %2903 = vmatprep.mubr.bf16.mxu0 %v598
    %2904 = vmatmul.mubr.bf16.gmra.mrb[0].mxu0 %v597
    %v2905 = vpop.f32.mrb[0].mxu0
    %v2906 = vadd.f32 %v2866, %v2905
    %v2907 = vpop.f32.mrb[0].mxu0
    %v2908 = vpop.f32.mrb[0].mxu0
    %v2909 = vpop.f32.mrb[0].mxu0
    %2910 = vdwg.mxu0
    %2911 = vmatprep.subr.bf16.mxu0 0
    %2912 = vmatpush1.bf16.msra.mxu0 %v1880
    %2913 = vmatprep.subr.bf16.mxu0 0
    %2914 = vmatpush1.bf16.msra.mxu0 %v1885
    %2915 = vmatprep.subr.bf16.mxu0 0
    %2916 = vmatpush1.bf16.msra.mxu0 %v1890
    %2917 = vmatprep.subr.bf16.mxu0 0
    %2918 = vmatpush1.bf16.msra.mxu0 %v1895
    %2919 = vmatprep.subr.bf16.mxu0 0
    %2920 = vmatpush1.bf16.msra.mxu0 %v1900
    %2921 = vmatprep.subr.bf16.mxu0 0
    %2922 = vmatpush1.bf16.msra.mxu0 %v1905
    %2923 = vmatprep.subr.bf16.mxu0 0
    %2924 = vmatpush1.bf16.msra.mxu0 %v1910
    %2925 = vmatprep.subr.bf16.mxu0 0
    %2926 = vmatpush1.bf16.msra.mxu0 %v1915
    %2927 = vmatprep.subr.bf16.mxu0 0
    %2928 = vmatpush1.bf16.msra.mxu0 %v1920
    %2929 = vmatprep.subr.bf16.mxu0 0
    %2930 = vmatpush1.bf16.msra.mxu0 %v1925
    %2931 = vmatprep.subr.bf16.mxu0 0
    %2932 = vmatpush1.bf16.msra.mxu0 %v1930
    %2933 = vmatprep.subr.bf16.mxu0 0
    %2934 = vmatpush1.bf16.msra.mxu0 %v1935
    %2935 = vmatprep.subr.bf16.mxu0 0
    %2936 = vmatpush1.bf16.msra.mxu0 %v1940
    %2937 = vmatprep.subr.bf16.mxu0 0
    %2938 = vmatpush1.bf16.msra.mxu0 %v1945
    %2939 = vmatprep.subr.bf16.mxu0 0
    %2940 = vmatpush1.bf16.msra.mxu0 %v1950
    %2941 = vmatprep.subr.bf16.mxu0 0
    %2942 = vmatpush1.bf16.msra.mxu0 %v1955
    %2943 = vmatprep.mubr.bf16.mxu0 %v600
    %2944 = vmatmul.mubr.bf16.gmra.mrb[0].mxu0 %v599
    %v2945 = vpop.f32.mrb[0].mxu0
    %v2946 = vadd.f32 %v2906, %v2945
    %v2947 = vpop.f32.mrb[0].mxu0
    %v2948 = vpop.f32.mrb[0].mxu0
    %v2949 = vpop.f32.mrb[0].mxu0
    %2950 = vdwg.mxu0
    %2951 = vmatprep.subr.bf16.mxu0 0
    %2952 = vmatpush1.bf16.msra.mxu0 %v1960
    %2953 = vmatprep.subr.bf16.mxu0 0
    %2954 = vmatpush1.bf16.msra.mxu0 %v1965
    %2955 = vmatprep.subr.bf16.mxu0 0
    %2956 = vmatpush1.bf16.msra.mxu0 %v1970
    %2957 = vmatprep.subr.bf16.mxu0 0
    %2958 = vmatpush1.bf16.msra.mxu0 %v1975
    %2959 = vmatprep.subr.bf16.mxu0 0
    %2960 = vmatpush1.bf16.msra.mxu0 %v1980
    %2961 = vmatprep.subr.bf16.mxu0 0
    %2962 = vmatpush1.bf16.msra.mxu0 %v1985
    %2963 = vmatprep.subr.bf16.mxu0 0
    %2964 = vmatpush1.bf16.msra.mxu0 %v1990
    %2965 = vmatprep.subr.bf16.mxu0 0
    %2966 = vmatpush1.bf16.msra.mxu0 %v1995
    %2967 = vmatprep.subr.bf16.mxu0 0
    %2968 = vmatpush1.bf16.msra.mxu0 %v2000
    %2969 = vmatprep.subr.bf16.mxu0 0
    %2970 = vmatpush1.bf16.msra.mxu0 %v2005
    %2971 = vmatprep.subr.bf16.mxu0 0
    %2972 = vmatpush1.bf16.msra.mxu0 %v2010
    %2973 = vmatprep.subr.bf16.mxu0 0
    %2974 = vmatpush1.bf16.msra.mxu0 %v2015
    %2975 = vmatprep.subr.bf16.mxu0 0
    %2976 = vmatpush1.bf16.msra.mxu0 %v2020
    %2977 = vmatprep.subr.bf16.mxu0 0
    %2978 = vmatpush1.bf16.msra.mxu0 %v2025
    %2979 = vmatprep.subr.bf16.mxu0 0
    %2980 = vmatpush1.bf16.msra.mxu0 %v2030
    %2981 = vmatprep.subr.bf16.mxu0 0
    %2982 = vmatpush1.bf16.msra.mxu0 %v2035
    %2983 = vmatprep.mubr.bf16.mxu0 %v602
    %2984 = vmatmul.mubr.bf16.gmra.mrb[0].mxu0 %v601
    %v2985 = vpop.f32.mrb[0].mxu0
    %v2986 = vadd.f32 %v2946, %v2985
    %v2987 = vpop.f32.mrb[0].mxu0
    %v2988 = vpop.f32.mrb[0].mxu0
    %v2989 = vpop.f32.mrb[0].mxu0
    %2990 = vdwg.mxu0
    %2991 = vmatprep.subr.bf16.mxu0 0
    %2992 = vmatpush1.bf16.msra.mxu0 %v2040
    %2993 = vmatprep.subr.bf16.mxu0 0
    %2994 = vmatpush1.bf16.msra.mxu0 %v2045
    %2995 = vmatprep.subr.bf16.mxu0 0
    %2996 = vmatpush1.bf16.msra.mxu0 %v2050
    %2997 = vmatprep.subr.bf16.mxu0 0
    %2998 = vmatpush1.bf16.msra.mxu0 %v2055
    %2999 = vmatprep.subr.bf16.mxu0 0
    %3000 = vmatpush1.bf16.msra.mxu0 %v2419
    %3001 = vmatprep.subr.bf16.mxu0 0
    %3002 = vmatpush1.bf16.msra.mxu0 0
    %3003 = vmatprep.subr.bf16.mxu0 0
    %3004 = vmatpush1.bf16.msra.mxu0 0
    %3005 = vmatprep.subr.bf16.mxu0 0
    %3006 = vmatpush1.bf16.msra.mxu0 0
    %3007 = vmatprep.subr.bf16.mxu0 0
    %3008 = vmatpush1.bf16.msra.mxu0 0
    %3009 = vmatprep.subr.bf16.mxu0 0
    %3010 = vmatpush1.bf16.msra.mxu0 0
    %3011 = vmatprep.subr.bf16.mxu0 0
    %3012 = vmatpush1.bf16.msra.mxu0 0
    %3013 = vmatprep.subr.bf16.mxu0 0
    %3014 = vmatpush1.bf16.msra.mxu0 0
    %3015 = vmatprep.subr.bf16.mxu0 0
    %3016 = vmatpush1.bf16.msra.mxu0 0
    %3017 = vmatprep.subr.bf16.mxu0 0
    %3018 = vmatpush1.bf16.msra.mxu0 0
    %3019 = vmatprep.subr.bf16.mxu0 0
    %3020 = vmatpush1.bf16.msra.mxu0 0
    %3021 = vmatprep.subr.bf16.mxu0 0
    %3022 = vmatpush1.bf16.msra.mxu0 0
    %3023 = vmatprep.mubr.bf16.mxu0 0
    %3024 = vmatmul.mubr.bf16.gmra.mrb[0].mxu0 %v2403
    %v3025 = vpop.f32.mrb[0].mxu0
    %v3026 = vadd.f32 %v2986, %v3025
    %v3027 = vpop.f32.mrb[0].mxu0
    %v3028 = vpop.f32.mrb[0].mxu0
    %v3029 = vpop.f32.mrb[0].mxu0
    %3030 = vdwg.mxu0
    %v3031 = vpack.c.bf16 %v2620, %v2620
    %v3032 = vpack.c.bf16 %v2622, %v2622
    %v3033 = vpack.c.bf16 %v2825, %v2825
    %v3034 = vpack.c.bf16 %v2827, %v2827
    %v3035 = vpack.c.bf16 %v3026, %v3026
    %vm3036 = vcmp.gt.bf16.partialorder %v3031, 0
    %vm3037 = vcmp.gt.bf16.partialorder %v3032, 0
    %vm3038 = vcmp.gt.bf16.partialorder %v3033, 0
    %vm3039 = vcmp.gt.bf16.partialorder %v3034, 0
    %vm3040 = vcmp.gt.bf16.partialorder %v3035, 0
    %v3041 = vmul.bf16 %v3031, 1009007652
    %v3042 = vmul.bf16 %v3032, 1009007652
    %v3043 = vmul.bf16 %v3033, 1009007652
    %v3044 = vmul.bf16 %v3034, 1009007652
    %v3045 = vmul.bf16 %v3035, 1009007652
    %v3046 = vsel %vm3036, %v3031, %v3041
    %v3047 = vsel %vm3037, %v3032, %v3042
    %v3048 = vsel %vm3038, %v3033, %v3043
    %v3049 = vsel %vm3039, %v3034, %v3044
    %v3050 = vsel %vm3040, %v3035, %v3045
    %v3051 = vld [vmem:[#allocation8] sm:$0xff]
    %v3052 = vld [vmem:[#allocation8 + $0x8] sm:$0xf]
    %v3053 = vld [vmem:[#allocation8 + $0xc] sm:$0xff]
    %v3054 = vld [vmem:[#allocation8 + $0x14] sm:$0xf]
    %v3055 = vld [vmem:[#allocation8 + $0x18] sm:$0xff]
    %v3056 = vld [vmem:[#allocation8 + $0x20] sm:$0xf]
    %v3057 = vld [vmem:[#allocation8 + $0x24] sm:$0xff]
    %v3058 = vld [vmem:[#allocation8 + $0x2c] sm:$0xf]
    %v3059 = vld [vmem:[#allocation8 + $0x30] sm:$0xff]
    %v3060 = vld [vmem:[#allocation8 + $0x38] sm:$0xf]
    %v3061 = vld [vmem:[#allocation8 + $0x3c] sm:$0xff]
    %v3062 = vld [vmem:[#allocation8 + $0x44] sm:$0xf]
    %v3063 = vld [vmem:[#allocation8 + $0x48] sm:$0xff]
    %v3064 = vld [vmem:[#allocation8 + $0x50] sm:$0xf]
    %v3065 = vld [vmem:[#allocation8 + $0x54] sm:$0xff]
    %v3066 = vld [vmem:[#allocation8 + $0x5c] sm:$0xf]
    %v3067 = vld [vmem:[#allocation8 + $0x60] sm:$0xff]
    %v3068 = vld [vmem:[#allocation8 + $0x68] sm:$0xf]
    %v3069 = vld [vmem:[#allocation8 + $0x6c] sm:$0xff]
    %v3070 = vld [vmem:[#allocation8 + $0x74] sm:$0xf]
    %v3071 = vld [vmem:[#allocation8 + $0x78] sm:$0xff]
    %v3072 = vld [vmem:[#allocation8 + $0x80] sm:$0xf]
    %v3073 = vld [vmem:[#allocation8 + $0x84] sm:$0xff]
    %v3074 = vld [vmem:[#allocation8 + $0x8c] sm:$0xf]
    %v3075 = vld [vmem:[#allocation8 + $0x90] sm:$0xff]
    %v3076 = vld [vmem:[#allocation8 + $0x98] sm:$0xf]
    %v3077 = vld [vmem:[#allocation8 + $0x9c] sm:$0xff]
    %v3078 = vld [vmem:[#allocation8 + $0xa4] sm:$0xf]
    %v3079 = vld [vmem:[#allocation8 + $0xa8] sm:$0xff]
    %v3080 = vld [vmem:[#allocation8 + $0xb0] sm:$0xf]
    %v3081 = vld [vmem:[#allocation8 + $0xb4] sm:$0xff]
    %v3082 = vld [vmem:[#allocation8 + $0xbc] sm:$0xf]
    %v3083 = vld [vmem:[#allocation8 + $0xc0] sm:$0xff]
    %v3084 = vld [vmem:[#allocation8 + $0xc8] sm:$0xf]
    %v3085 = vld [vmem:[#allocation8 + $0xcc] sm:$0xff]
    %v3086 = vld [vmem:[#allocation8 + $0xd4] sm:$0xf]
    %v3087 = vld [vmem:[#allocation8 + $0xd8] sm:$0xff]
    %v3088 = vld [vmem:[#allocation8 + $0xe0] sm:$0xf]
    %v3089 = vld [vmem:[#allocation8 + $0xe4] sm:$0xff]
    %v3090 = vld [vmem:[#allocation8 + $0xec] sm:$0xf]
    %v3091 = vld [vmem:[#allocation8 + $0xf0] sm:$0xff]
    %v3092 = vld [vmem:[#allocation8 + $0xf8] sm:$0xf]
    %v3093 = vld [vmem:[#allocation8 + $0xfc] sm:$0xff]
    %v3094 = vld [vmem:[#allocation8 + $0x104] sm:$0xf]
    %v3095 = vld [vmem:[#allocation8 + $0x108] sm:$0xff]
    %v3096 = vld [vmem:[#allocation8 + $0x110] sm:$0xf]
    %v3097 = vld [vmem:[#allocation8 + $0x114] sm:$0xff]
    %v3098 = vld [vmem:[#allocation8 + $0x11c] sm:$0xf]
    %v3099 = vld [vmem:[#allocation8 + $0x120] sm:$0xff]
    %v3100 = vld [vmem:[#allocation8 + $0x128] sm:$0xf]
    %v3101 = vld [vmem:[#allocation8 + $0x12c] sm:$0xff]
    %v3102 = vld [vmem:[#allocation8 + $0x134] sm:$0xf]
    %v3103 = vld [vmem:[#allocation8 + $0x138] sm:$0xff]
    %v3104 = vld [vmem:[#allocation8 + $0x140] sm:$0xf]
    %v3105 = vld [vmem:[#allocation8 + $0x144] sm:$0xff]
    %v3106 = vld [vmem:[#allocation8 + $0x14c] sm:$0xf]
    %v3107 = vld [vmem:[#allocation8 + $0x150] sm:$0xff]
    %v3108 = vld [vmem:[#allocation8 + $0x158] sm:$0xf]
    %v3109 = vld [vmem:[#allocation8 + $0x15c] sm:$0xff]
    %v3110 = vld [vmem:[#allocation8 + $0x164] sm:$0xf]
    %v3111 = vld [vmem:[#allocation8 + $0x168] sm:$0xff]
    %v3112 = vld [vmem:[#allocation8 + $0x170] sm:$0xf]
    %v3113 = vld [vmem:[#allocation8 + $0x174] sm:$0xff]
    %v3114 = vld [vmem:[#allocation8 + $0x17c] sm:$0xf]
    %v3115 = vld [vmem:[#allocation8 + $0x180] sm:$0xff]
    %v3116 = vld [vmem:[#allocation8 + $0x188] sm:$0xf]
    %v3117 = vld [vmem:[#allocation8 + $0x18c] sm:$0xff]
    %v3118 = vld [vmem:[#allocation8 + $0x194] sm:$0xf]
    %v3119 = vld [vmem:[#allocation8 + $0x198] sm:$0xff]
    %v3120 = vld [vmem:[#allocation8 + $0x1a0] sm:$0xf]
    %v3121 = vld [vmem:[#allocation8 + $0x1a4] sm:$0xff]
    %v3122 = vld [vmem:[#allocation8 + $0x1ac] sm:$0xf]
    %v3123 = vld [vmem:[#allocation8 + $0x1b0] sm:$0xff]
    %v3124 = vld [vmem:[#allocation8 + $0x1b8] sm:$0xf]
    %v3125 = vld [vmem:[#allocation8 + $0x1bc] sm:$0xff]
    %v3126 = vld [vmem:[#allocation8 + $0x1c4] sm:$0xf]
    %v3127 = vld [vmem:[#allocation8 + $0x1c8] sm:$0xff]
    %v3128 = vld [vmem:[#allocation8 + $0x1d0] sm:$0xf]
    %v3129 = vld [vmem:[#allocation8 + $0x1d4] sm:$0xff]
    %v3130 = vld [vmem:[#allocation8 + $0x1dc] sm:$0xf]
    %v3131 = vld [vmem:[#allocation8 + $0x1e0] sm:$0xff]
    %v3132 = vld [vmem:[#allocation8 + $0x1e8] sm:$0xf]
    %v3133 = vld [vmem:[#allocation8 + $0x1ec] sm:$0xff]
    %v3134 = vld [vmem:[#allocation8 + $0x1f4] sm:$0xf]
    %v3135 = vld [vmem:[#allocation8 + $0x1f8] sm:$0xff]
    %v3136 = vld [vmem:[#allocation8 + $0x200] sm:$0xf]
    %v3137 = vld [vmem:[#allocation8 + $0x204] sm:$0xff]
    %v3138 = vld [vmem:[#allocation8 + $0x20c] sm:$0xf]
    %v3139 = vld [vmem:[#allocation8 + $0x210] sm:$0xff]
    %v3140 = vld [vmem:[#allocation8 + $0x218] sm:$0xf]
    %v3141 = vld [vmem:[#allocation8 + $0x21c] sm:$0xff]
    %v3142 = vld [vmem:[#allocation8 + $0x224] sm:$0xf]
    %v3143 = vld [vmem:[#allocation8 + $0x228] sm:$0xff]
    %v3144 = vld [vmem:[#allocation8 + $0x230] sm:$0xf]
    %v3145 = vld [vmem:[#allocation8 + $0x234] sm:$0xff]
    %v3146 = vld [vmem:[#allocation8 + $0x23c] sm:$0xf]
    %v3147 = vld [vmem:[#allocation8 + $0x240] sm:$0xff]
    %v3148 = vld [vmem:[#allocation8 + $0x248] sm:$0xf]
    %v3149 = vld [vmem:[#allocation8 + $0x24c] sm:$0xff]
    %v3150 = vld [vmem:[#allocation8 + $0x254] sm:$0xf]
    %v3151 = vld [vmem:[#allocation8 + $0x258] sm:$0xff]
    %v3152 = vld [vmem:[#allocation8 + $0x260] sm:$0xf]
    %v3153 = vld [vmem:[#allocation8 + $0x264] sm:$0xff]
    %v3154 = vld [vmem:[#allocation8 + $0x26c] sm:$0xf]
    %v3155 = vld [vmem:[#allocation8 + $0x270] sm:$0xff]
    %v3156 = vld [vmem:[#allocation8 + $0x278] sm:$0xf]
    %v3157 = vld [vmem:[#allocation8 + $0x27c] sm:$0xff]
    %v3158 = vld [vmem:[#allocation8 + $0x284] sm:$0xf]
    %v3159 = vld [vmem:[#allocation8 + $0x288] sm:$0xff]
    %v3160 = vld [vmem:[#allocation8 + $0x290] sm:$0xf]
    %v3161 = vld [vmem:[#allocation8 + $0x294] sm:$0xff]
    %v3162 = vld [vmem:[#allocation8 + $0x29c] sm:$0xf]
    %v3163 = vld [vmem:[#allocation8 + $0x2a0] sm:$0xff]
    %v3164 = vld [vmem:[#allocation8 + $0x2a8] sm:$0xf]
    %v3165 = vld [vmem:[#allocation8 + $0x2ac] sm:$0xff]
    %v3166 = vld [vmem:[#allocation8 + $0x2b4] sm:$0xf]
    %v3167 = vld [vmem:[#allocation8 + $0x2b8] sm:$0xff]
    %v3168 = vld [vmem:[#allocation8 + $0x2c0] sm:$0xf]
    %v3169 = vld [vmem:[#allocation8 + $0x2c4] sm:$0xff]
    %v3170 = vld [vmem:[#allocation8 + $0x2cc] sm:$0xf]
    %v3171 = vld [vmem:[#allocation8 + $0x2d0] sm:$0xff]
    %v3172 = vld [vmem:[#allocation8 + $0x2d8] sm:$0xf]
    %v3173 = vld [vmem:[#allocation8 + $0x2dc] sm:$0xff]
    %v3174 = vld [vmem:[#allocation8 + $0x2e4] sm:$0xf]
    %v3175 = vld [vmem:[#allocation8 + $0x2e8] sm:$0xff]
    %v3176 = vld [vmem:[#allocation8 + $0x2f0] sm:$0xf]
    %v3177 = vld [vmem:[#allocation8 + $0x2f4] sm:$0xff]
    %v3178 = vld [vmem:[#allocation8 + $0x2fc] sm:$0xf]
    %v3179 = vld [vmem:[#allocation8 + $0x300] sm:$0xff]
    %v3180 = vld [vmem:[#allocation8 + $0x308] sm:$0xf]
    %v3181 = vld [vmem:[#allocation8 + $0x30c] sm:$0xff]
    %v3182 = vld [vmem:[#allocation8 + $0x314] sm:$0xf]
    %v3183 = vld [vmem:[#allocation8 + $0x318] sm:$0xff]
    %v3184 = vld [vmem:[#allocation8 + $0x320] sm:$0xf]
    %v3185 = vld [vmem:[#allocation8 + $0x324] sm:$0xff]
    %v3186 = vld [vmem:[#allocation8 + $0x32c] sm:$0xf]
    %v3187 = vld [vmem:[#allocation8 + $0x330] sm:$0xff]
    %v3188 = vld [vmem:[#allocation8 + $0x338] sm:$0xf]
    %v3189 = vld [vmem:[#allocation8 + $0x33c] sm:$0xff]
    %v3190 = vld [vmem:[#allocation8 + $0x344] sm:$0xf]
    %v3191 = vld [vmem:[#allocation8 + $0x348] sm:$0xff]
    %v3192 = vld [vmem:[#allocation8 + $0x350] sm:$0xf]
    %v3193 = vld [vmem:[#allocation8 + $0x354] sm:$0xff]
    %v3194 = vld [vmem:[#allocation8 + $0x35c] sm:$0xf]
    %v3195 = vld [vmem:[#allocation8 + $0x360] sm:$0xff]
    %v3196 = vld [vmem:[#allocation8 + $0x368] sm:$0xf]
    %v3197 = vld [vmem:[#allocation8 + $0x36c] sm:$0xff]
    %v3198 = vld [vmem:[#allocation8 + $0x374] sm:$0xf]
    %v3199 = vld [vmem:[#allocation8 + $0x378] sm:$0xff]
    %v3200 = vld [vmem:[#allocation8 + $0x380] sm:$0xf]
    %v3201 = vld [vmem:[#allocation8 + $0x384] sm:$0xff]
    %v3202 = vld [vmem:[#allocation8 + $0x38c] sm:$0xf]
    %v3203 = vld [vmem:[#allocation8 + $0x390] sm:$0xff]
    %v3204 = vld [vmem:[#allocation8 + $0x398] sm:$0xf]
    %v3205 = vld [vmem:[#allocation8 + $0x39c] sm:$0xff]
    %v3206 = vld [vmem:[#allocation8 + $0x3a4] sm:$0xf]
    %v3207 = vld [vmem:[#allocation8 + $0x3a8] sm:$0xff]
    %v3208 = vld [vmem:[#allocation8 + $0x3b0] sm:$0xf]
    %v3209 = vld [vmem:[#allocation8 + $0x3b4] sm:$0xff]
    %v3210 = vld [vmem:[#allocation8 + $0x3bc] sm:$0xf]
    %v3211 = vld [vmem:[#allocation10] sm:$0x7]
    %v3213 = vlaneseq
    %v3214 = vshrl.u32 %v3213, 7
    %v3215 = vsub.s32 0, %v3214
    %v3216 = vrot.slane %v3211, %v3215
    %v3217 = vlaneseq
    %v3218 = vshrl.u32 %v3217, 7
    %v3219 = vsub.s32 1, %v3218
    %v3220 = vrot.slane %v3211, %v3219
    %v3221 = vlaneseq
    %v3222 = vshrl.u32 %v3221, 7
    %v3223 = vsub.s32 2, %v3222
    %v3224 = vrot.slane %v3211, %v3223
    %v3388 = vunpack.c.l.b16 %v3051
    %v3389 = vunpack.c.h.b16 %v3051
    %v3390 = vunpack.c.l.b16 %v3052
    %v3391 = vunpack.c.l.b16 %v3053
    %v3392 = vunpack.c.h.b16 %v3053
    %v3393 = vunpack.c.l.b16 %v3054
    %v3394 = vunpack.c.l.b16 %v3055
    %v3395 = vunpack.c.h.b16 %v3055
    %v3396 = vunpack.c.l.b16 %v3056
    %v3397 = vunpack.c.l.b16 %v3057
    %v3398 = vunpack.c.h.b16 %v3057
    %v3399 = vunpack.c.l.b16 %v3058
    %v3400 = vunpack.c.l.b16 %v3059
    %v3401 = vunpack.c.h.b16 %v3059
    %v3402 = vunpack.c.l.b16 %v3060
    %v3403 = vunpack.c.l.b16 %v3061
    %v3404 = vunpack.c.h.b16 %v3061
    %v3405 = vunpack.c.l.b16 %v3062
    %v3406 = vunpack.c.l.b16 %v3063
    %v3407 = vunpack.c.h.b16 %v3063
    %v3408 = vunpack.c.l.b16 %v3064
    %v3409 = vunpack.c.l.b16 %v3065
    %v3410 = vunpack.c.h.b16 %v3065
    %v3411 = vunpack.c.l.b16 %v3066
    %v3412 = vunpack.c.l.b16 %v3067
    %v3413 = vunpack.c.h.b16 %v3067
    %v3414 = vunpack.c.l.b16 %v3068
    %v3415 = vunpack.c.l.b16 %v3069
    %v3416 = vunpack.c.h.b16 %v3069
    %v3417 = vunpack.c.l.b16 %v3070
    %v3418 = vunpack.c.l.b16 %v3071
    %v3419 = vunpack.c.h.b16 %v3071
    %v3420 = vunpack.c.l.b16 %v3072
    %v3421 = vunpack.c.l.b16 %v3073
    %v3422 = vunpack.c.h.b16 %v3073
    %v3423 = vunpack.c.l.b16 %v3074
    %v3424 = vunpack.c.l.b16 %v3075
    %v3425 = vunpack.c.h.b16 %v3075
    %v3426 = vunpack.c.l.b16 %v3076
    %v3427 = vunpack.c.l.b16 %v3077
    %v3428 = vunpack.c.h.b16 %v3077
    %v3429 = vunpack.c.l.b16 %v3078
    %v3430 = vunpack.c.l.b16 %v3079
    %v3431 = vunpack.c.h.b16 %v3079
    %v3432 = vunpack.c.l.b16 %v3080
    %v3433 = vunpack.c.l.b16 %v3081
    %v3434 = vunpack.c.h.b16 %v3081
    %v3435 = vunpack.c.l.b16 %v3082
    %v3436 = vunpack.c.l.b16 %v3083
    %v3437 = vunpack.c.h.b16 %v3083
    %v3438 = vunpack.c.l.b16 %v3084
    %v3439 = vunpack.c.l.b16 %v3085
    %v3440 = vunpack.c.h.b16 %v3085
    %v3441 = vunpack.c.l.b16 %v3086
    %v3442 = vunpack.c.l.b16 %v3087
    %v3443 = vunpack.c.h.b16 %v3087
    %v3444 = vunpack.c.l.b16 %v3088
    %v3445 = vunpack.c.l.b16 %v3089
    %v3446 = vunpack.c.h.b16 %v3089
    %v3447 = vunpack.c.l.b16 %v3090
    %v3448 = vunpack.c.l.b16 %v3091
    %v3449 = vunpack.c.h.b16 %v3091
    %v3450 = vunpack.c.l.b16 %v3092
    %v3451 = vunpack.c.l.b16 %v3093
    %v3452 = vunpack.c.h.b16 %v3093
    %v3453 = vunpack.c.l.b16 %v3094
    %v3454 = vunpack.c.l.b16 %v3095
    %v3455 = vunpack.c.h.b16 %v3095
    %v3456 = vunpack.c.l.b16 %v3096
    %v3457 = vunpack.c.l.b16 %v3097
    %v3458 = vunpack.c.h.b16 %v3097
    %v3459 = vunpack.c.l.b16 %v3098
    %v3460 = vunpack.c.l.b16 %v3099
    %v3461 = vunpack.c.h.b16 %v3099
    %v3462 = vunpack.c.l.b16 %v3100
    %v3463 = vunpack.c.l.b16 %v3101
    %v3464 = vunpack.c.h.b16 %v3101
    %v3465 = vunpack.c.l.b16 %v3102
    %v3466 = vunpack.c.l.b16 %v3103
    %v3467 = vunpack.c.h.b16 %v3103
    %v3468 = vunpack.c.l.b16 %v3104
    %v3469 = vunpack.c.l.b16 %v3105
    %v3470 = vunpack.c.h.b16 %v3105
    %v3471 = vunpack.c.l.b16 %v3106
    %v3472 = vunpack.c.l.b16 %v3107
    %v3473 = vunpack.c.h.b16 %v3107
    %v3474 = vunpack.c.l.b16 %v3108
    %v3475 = vunpack.c.l.b16 %v3109
    %v3476 = vunpack.c.h.b16 %v3109
    %v3477 = vunpack.c.l.b16 %v3110
    %v3478 = vunpack.c.l.b16 %v3111
    %v3479 = vunpack.c.h.b16 %v3111
    %v3480 = vunpack.c.l.b16 %v3112
    %v3481 = vunpack.c.l.b16 %v3113
    %v3482 = vunpack.c.h.b16 %v3113
    %v3483 = vunpack.c.l.b16 %v3114
    %v3484 = vunpack.c.l.b16 %v3115
    %v3485 = vunpack.c.h.b16 %v3115
    %v3486 = vunpack.c.l.b16 %v3116
    %v3487 = vunpack.c.l.b16 %v3117
    %v3488 = vunpack.c.h.b16 %v3117
    %v3489 = vunpack.c.l.b16 %v3118
    %v3490 = vunpack.c.l.b16 %v3119
    %v3491 = vunpack.c.h.b16 %v3119
    %v3492 = vunpack.c.l.b16 %v3120
    %v3493 = vunpack.c.l.b16 %v3121
    %v3494 = vunpack.c.h.b16 %v3121
    %v3495 = vunpack.c.l.b16 %v3122
    %v3496 = vunpack.c.l.b16 %v3123
    %v3497 = vunpack.c.h.b16 %v3123
    %v3498 = vunpack.c.l.b16 %v3124
    %v3499 = vunpack.c.l.b16 %v3125
    %v3500 = vunpack.c.h.b16 %v3125
    %v3501 = vunpack.c.l.b16 %v3126
    %v3502 = vunpack.c.l.b16 %v3127
    %v3503 = vunpack.c.h.b16 %v3127
    %v3504 = vunpack.c.l.b16 %v3128
    %v3505 = vunpack.c.l.b16 %v3129
    %v3506 = vunpack.c.h.b16 %v3129
    %v3507 = vunpack.c.l.b16 %v3130
    %v3508 = vunpack.c.l.b16 %v3131
    %v3509 = vunpack.c.h.b16 %v3131
    %v3510 = vunpack.c.l.b16 %v3132
    %v3511 = vunpack.c.l.b16 %v3133
    %v3512 = vunpack.c.h.b16 %v3133
    %v3513 = vunpack.c.l.b16 %v3134
    %v3514 = vunpack.c.l.b16 %v3135
    %v3515 = vunpack.c.h.b16 %v3135
    %v3516 = vunpack.c.l.b16 %v3136
    %v3517 = vunpack.c.l.b16 %v3137
    %v3518 = vunpack.c.h.b16 %v3137
    %v3519 = vunpack.c.l.b16 %v3138
    %v3520 = vunpack.c.l.b16 %v3139
    %v3521 = vunpack.c.h.b16 %v3139
    %v3522 = vunpack.c.l.b16 %v3140
    %v3523 = vunpack.c.l.b16 %v3141
    %v3524 = vunpack.c.h.b16 %v3141
    %v3525 = vunpack.c.l.b16 %v3142
    %v3526 = vunpack.c.l.b16 %v3143
    %v3527 = vunpack.c.h.b16 %v3143
    %v3528 = vunpack.c.l.b16 %v3144
    %v3529 = vunpack.c.l.b16 %v3145
    %v3530 = vunpack.c.h.b16 %v3145
    %v3531 = vunpack.c.l.b16 %v3146
    %v3532 = vunpack.c.l.b16 %v3147
    %v3533 = vunpack.c.h.b16 %v3147
    %v3534 = vunpack.c.l.b16 %v3148
    %v3535 = vunpack.c.l.b16 %v3149
    %v3536 = vunpack.c.h.b16 %v3149
    %v3537 = vunpack.c.l.b16 %v3150
    %v3538 = vunpack.c.l.b16 %v3151
    %v3539 = vunpack.c.h.b16 %v3151
    %v3540 = vunpack.c.l.b16 %v3152
    %v3541 = vunpack.c.l.b16 %v3153
    %v3542 = vunpack.c.h.b16 %v3153
    %v3543 = vunpack.c.l.b16 %v3154
    %v3544 = vunpack.c.l.b16 %v3155
    %v3545 = vunpack.c.h.b16 %v3155
    %v3546 = vunpack.c.l.b16 %v3156
    %v3547 = vunpack.c.l.b16 %v3157
    %v3548 = vunpack.c.h.b16 %v3157
    %v3549 = vunpack.c.l.b16 %v3158
    %v3550 = vunpack.c.l.b16 %v3159
    %v3551 = vunpack.c.h.b16 %v3159
    %v3552 = vunpack.c.l.b16 %v3160
    %v3553 = vunpack.c.l.b16 %v3161
    %v3554 = vunpack.c.h.b16 %v3161
    %v3555 = vunpack.c.l.b16 %v3162
    %v3556 = vunpack.c.l.b16 %v3163
    %v3557 = vunpack.c.h.b16 %v3163
    %v3558 = vunpack.c.l.b16 %v3164
    %v3559 = vunpack.c.l.b16 %v3165
    %v3560 = vunpack.c.h.b16 %v3165
    %v3561 = vunpack.c.l.b16 %v3166
    %v3562 = vunpack.c.l.b16 %v3167
    %v3563 = vunpack.c.h.b16 %v3167
    %v3564 = vunpack.c.l.b16 %v3168
    %v3565 = vunpack.c.l.b16 %v3169
    %v3566 = vunpack.c.h.b16 %v3169
    %v3567 = vunpack.c.l.b16 %v3170
    %v3568 = vunpack.c.l.b16 %v3171
    %v3569 = vunpack.c.h.b16 %v3171
    %v3570 = vunpack.c.l.b16 %v3172
    %v3571 = vunpack.c.l.b16 %v3173
    %v3572 = vunpack.c.h.b16 %v3173
    %v3573 = vunpack.c.l.b16 %v3174
    %v3574 = vunpack.c.l.b16 %v3175
    %v3575 = vunpack.c.h.b16 %v3175
    %v3576 = vunpack.c.l.b16 %v3176
    %v3577 = vunpack.c.l.b16 %v3177
    %v3578 = vunpack.c.h.b16 %v3177
    %v3579 = vunpack.c.l.b16 %v3178
    %v3580 = vunpack.c.l.b16 %v3179
    %v3581 = vunpack.c.h.b16 %v3179
    %v3582 = vunpack.c.l.b16 %v3180
    %v3583 = vunpack.c.l.b16 %v3181
    %v3584 = vunpack.c.h.b16 %v3181
    %v3585 = vunpack.c.l.b16 %v3182
    %v3586 = vunpack.c.l.b16 %v3183
    %v3587 = vunpack.c.h.b16 %v3183
    %v3588 = vunpack.c.l.b16 %v3184
    %v3589 = vunpack.c.l.b16 %v3185
    %v3590 = vunpack.c.h.b16 %v3185
    %v3591 = vunpack.c.l.b16 %v3186
    %v3592 = vunpack.c.l.b16 %v3187
    %v3593 = vunpack.c.h.b16 %v3187
    %v3594 = vunpack.c.l.b16 %v3188
    %v3595 = vunpack.c.l.b16 %v3189
    %v3596 = vunpack.c.h.b16 %v3189
    %v3597 = vunpack.c.l.b16 %v3190
    %v3598 = vunpack.c.l.b16 %v3191
    %v3599 = vunpack.c.h.b16 %v3191
    %v3600 = vunpack.c.l.b16 %v3192
    %v3601 = vunpack.c.l.b16 %v3193
    %v3602 = vunpack.c.h.b16 %v3193
    %v3603 = vunpack.c.l.b16 %v3194
    %v3604 = vunpack.c.l.b16 %v3195
    %v3605 = vunpack.c.h.b16 %v3195
    %v3606 = vunpack.c.l.b16 %v3196
    %v3607 = vunpack.c.l.b16 %v3197
    %v3608 = vunpack.c.h.b16 %v3197
    %v3609 = vunpack.c.l.b16 %v3198
    %v3610 = vunpack.c.l.b16 %v3199
    %v3611 = vunpack.c.h.b16 %v3199
    %v3612 = vunpack.c.l.b16 %v3200
    %v3613 = vunpack.c.l.b16 %v3201
    %v3614 = vunpack.c.h.b16 %v3201
    %v3615 = vunpack.c.l.b16 %v3202
    %v3616 = vunpack.c.l.b16 %v3203
    %v3617 = vunpack.c.h.b16 %v3203
    %v3618 = vunpack.c.l.b16 %v3204
    %v3619 = vunpack.c.l.b16 %v3205
    %v3620 = vunpack.c.h.b16 %v3205
    %v3621 = vunpack.c.l.b16 %v3206
    %v3622 = vunpack.c.l.b16 %v3207
    %v3623 = vunpack.c.h.b16 %v3207
    %v3624 = vunpack.c.l.b16 %v3208
    %v3625 = vunpack.c.l.b16 %v3209
    %v3626 = vunpack.c.h.b16 %v3209
    %v3627 = vunpack.c.l.b16 %v3210
    %v3628 = vpack.c.b16 %v3391, %v3388
    %v3629 = vpack.c.b16 %v3392, %v3389
    %v3630 = vpack.c.b16 %v3393, %v3390
    %v3631 = vpack.c.b16 %v3397, %v3394
    %v3632 = vpack.c.b16 %v3398, %v3395
    %v3633 = vpack.c.b16 %v3399, %v3396
    %v3634 = vpack.c.b16 %v3403, %v3400
    %v3635 = vpack.c.b16 %v3404, %v3401
    %v3636 = vpack.c.b16 %v3405, %v3402
    %v3637 = vpack.c.b16 %v3409, %v3406
    %v3638 = vpack.c.b16 %v3410, %v3407
    %v3639 = vpack.c.b16 %v3411, %v3408
    %v3640 = vpack.c.b16 %v3415, %v3412
    %v3641 = vpack.c.b16 %v3416, %v3413
    %v3642 = vpack.c.b16 %v3417, %v3414
    %v3643 = vpack.c.b16 %v3421, %v3418
    %v3644 = vpack.c.b16 %v3422, %v3419
    %v3645 = vpack.c.b16 %v3423, %v3420
    %v3646 = vpack.c.b16 %v3427, %v3424
    %v3647 = vpack.c.b16 %v3428, %v3425
    %v3648 = vpack.c.b16 %v3429, %v3426
    %v3649 = vpack.c.b16 %v3433, %v3430
    %v3650 = vpack.c.b16 %v3434, %v3431
    %v3651 = vpack.c.b16 %v3435, %v3432
    %v3652 = vpack.c.b16 %v3439, %v3436
    %v3653 = vpack.c.b16 %v3440, %v3437
    %v3654 = vpack.c.b16 %v3441, %v3438
    %v3655 = vpack.c.b16 %v3445, %v3442
    %v3656 = vpack.c.b16 %v3446, %v3443
    %v3657 = vpack.c.b16 %v3447, %v3444
    %v3658 = vpack.c.b16 %v3451, %v3448
    %v3659 = vpack.c.b16 %v3452, %v3449
    %v3660 = vpack.c.b16 %v3453, %v3450
    %v3661 = vpack.c.b16 %v3457, %v3454
    %v3662 = vpack.c.b16 %v3458, %v3455
    %v3663 = vpack.c.b16 %v3459, %v3456
    %v3664 = vpack.c.b16 %v3463, %v3460
    %v3665 = vpack.c.b16 %v3464, %v3461
    %v3666 = vpack.c.b16 %v3465, %v3462
    %v3667 = vpack.c.b16 %v3469, %v3466
    %v3668 = vpack.c.b16 %v3470, %v3467
    %v3669 = vpack.c.b16 %v3471, %v3468
    %v3670 = vpack.c.b16 %v3475, %v3472
    %v3671 = vpack.c.b16 %v3476, %v3473
    %v3672 = vpack.c.b16 %v3477, %v3474
    %v3673 = vpack.c.b16 %v3481, %v3478
    %v3674 = vpack.c.b16 %v3482, %v3479
    %v3675 = vpack.c.b16 %v3483, %v3480
    %v3676 = vpack.c.b16 %v3487, %v3484
    %v3677 = vpack.c.b16 %v3488, %v3485
    %v3678 = vpack.c.b16 %v3489, %v3486
    %v3679 = vpack.c.b16 %v3493, %v3490
    %v3680 = vpack.c.b16 %v3494, %v3491
    %v3681 = vpack.c.b16 %v3495, %v3492
    %v3682 = vpack.c.b16 %v3499, %v3496
    %v3683 = vpack.c.b16 %v3500, %v3497
    %v3684 = vpack.c.b16 %v3501, %v3498
    %v3685 = vpack.c.b16 %v3505, %v3502
    %v3686 = vpack.c.b16 %v3506, %v3503
    %v3687 = vpack.c.b16 %v3507, %v3504
    %v3688 = vpack.c.b16 %v3511, %v3508
    %v3689 = vpack.c.b16 %v3512, %v3509
    %v3690 = vpack.c.b16 %v3513, %v3510
    %v3691 = vpack.c.b16 %v3517, %v3514
    %v3692 = vpack.c.b16 %v3518, %v3515
    %v3693 = vpack.c.b16 %v3519, %v3516
    %v3694 = vpack.c.b16 %v3523, %v3520
    %v3695 = vpack.c.b16 %v3524, %v3521
    %v3696 = vpack.c.b16 %v3525, %v3522
    %v3697 = vpack.c.b16 %v3529, %v3526
    %v3698 = vpack.c.b16 %v3530, %v3527
    %v3699 = vpack.c.b16 %v3531, %v3528
    %v3700 = vpack.c.b16 %v3535, %v3532
    %v3701 = vpack.c.b16 %v3536, %v3533
    %v3702 = vpack.c.b16 %v3537, %v3534
    %v3703 = vpack.c.b16 %v3541, %v3538
    %v3704 = vpack.c.b16 %v3542, %v3539
    %v3705 = vpack.c.b16 %v3543, %v3540
    %v3706 = vpack.c.b16 %v3547, %v3544
    %v3707 = vpack.c.b16 %v3548, %v3545
    %v3708 = vpack.c.b16 %v3549, %v3546
    %v3709 = vpack.c.b16 %v3553, %v3550
    %v3710 = vpack.c.b16 %v3554, %v3551
    %v3711 = vpack.c.b16 %v3555, %v3552
    %v3712 = vpack.c.b16 %v3559, %v3556
    %v3713 = vpack.c.b16 %v3560, %v3557
    %v3714 = vpack.c.b16 %v3561, %v3558
    %v3715 = vpack.c.b16 %v3565, %v3562
    %v3716 = vpack.c.b16 %v3566, %v3563
    %v3717 = vpack.c.b16 %v3567, %v3564
    %v3718 = vpack.c.b16 %v3571, %v3568
    %v3719 = vpack.c.b16 %v3572, %v3569
    %v3720 = vpack.c.b16 %v3573, %v3570
    %v3721 = vpack.c.b16 %v3577, %v3574
    %v3722 = vpack.c.b16 %v3578, %v3575
    %v3723 = vpack.c.b16 %v3579, %v3576
    %v3724 = vpack.c.b16 %v3583, %v3580
    %v3725 = vpack.c.b16 %v3584, %v3581
    %v3726 = vpack.c.b16 %v3585, %v3582
    %v3727 = vpack.c.b16 %v3589, %v3586
    %v3728 = vpack.c.b16 %v3590, %v3587
    %v3729 = vpack.c.b16 %v3591, %v3588
    %v3730 = vpack.c.b16 %v3595, %v3592
    %v3731 = vpack.c.b16 %v3596, %v3593
    %v3732 = vpack.c.b16 %v3597, %v3594
    %v3733 = vpack.c.b16 %v3601, %v3598
    %v3734 = vpack.c.b16 %v3602, %v3599
    %v3735 = vpack.c.b16 %v3603, %v3600
    %v3736 = vpack.c.b16 %v3607, %v3604
    %v3737 = vpack.c.b16 %v3608, %v3605
    %v3738 = vpack.c.b16 %v3609, %v3606
    %v3739 = vpack.c.b16 %v3613, %v3610
    %v3740 = vpack.c.b16 %v3614, %v3611
    %v3741 = vpack.c.b16 %v3615, %v3612
    %v3742 = vpack.c.b16 %v3619, %v3616
    %v3743 = vpack.c.b16 %v3620, %v3617
    %v3744 = vpack.c.b16 %v3621, %v3618
    %v3745 = vpack.c.b16 %v3625, %v3622
    %v3746 = vpack.c.b16 %v3626, %v3623
    %v3747 = vpack.c.b16 %v3627, %v3624
    %3868 = vmatprep.subr.bf16.mxu0 %v3629
    %3869 = vmatpush1.bf16.msra.mxu0 %v3628
    %3870 = vmatprep.subr.bf16.mxu0 %v3632
    %3871 = vmatpush1.bf16.msra.mxu0 %v3631
    %3872 = vmatprep.subr.bf16.mxu0 %v3635
    %3873 = vmatpush1.bf16.msra.mxu0 %v3634
    %3874 = vmatprep.subr.bf16.mxu0 %v3638
    %3875 = vmatpush1.bf16.msra.mxu0 %v3637
    %3876 = vmatprep.subr.bf16.mxu0 %v3641
    %3877 = vmatpush1.bf16.msra.mxu0 %v3640
    %3878 = vmatprep.subr.bf16.mxu0 %v3644
    %3879 = vmatpush1.bf16.msra.mxu0 %v3643
    %3880 = vmatprep.subr.bf16.mxu0 %v3647
    %3881 = vmatpush1.bf16.msra.mxu0 %v3646
    %3882 = vmatprep.subr.bf16.mxu0 %v3650
    %3883 = vmatpush1.bf16.msra.mxu0 %v3649
    %3884 = vmatprep.subr.bf16.mxu0 %v3653
    %3885 = vmatpush1.bf16.msra.mxu0 %v3652
    %3886 = vmatprep.subr.bf16.mxu0 %v3656
    %3887 = vmatpush1.bf16.msra.mxu0 %v3655
    %3888 = vmatprep.subr.bf16.mxu0 %v3659
    %3889 = vmatpush1.bf16.msra.mxu0 %v3658
    %3890 = vmatprep.subr.bf16.mxu0 %v3662
    %3891 = vmatpush1.bf16.msra.mxu0 %v3661
    %3892 = vmatprep.subr.bf16.mxu0 %v3665
    %3893 = vmatpush1.bf16.msra.mxu0 %v3664
    %3894 = vmatprep.subr.bf16.mxu0 %v3668
    %3895 = vmatpush1.bf16.msra.mxu0 %v3667
    %3896 = vmatprep.subr.bf16.mxu0 %v3671
    %3897 = vmatpush1.bf16.msra.mxu0 %v3670
    %3898 = vmatprep.subr.bf16.mxu0 %v3674
    %3899 = vmatpush1.bf16.msra.mxu0 %v3673
    %3900 = vmatprep.mubr.bf16.mxu0 %v3047
    %3901 = vmatmul.mubr.bf16.gmra.mrb[0].mxu0 %v3046
    %v3902 = vpop.f32.mrb[0].mxu0
    %v3903 = vadd.f32 %v3216, %v3902
    %v3904 = vpop.f32.mrb[0].mxu0
    %v3905 = vadd.f32 %v3220, %v3904
    %v3906 = vpop.f32.mrb[0].mxu0
    %v3907 = vpop.f32.mrb[0].mxu0
    %3908 = vdwg.mxu0
    %3909 = vmatprep.subr.bf16.mxu0 %v3677
    %3910 = vmatpush1.bf16.msra.mxu0 %v3676
    %3911 = vmatprep.subr.bf16.mxu0 %v3680
    %3912 = vmatpush1.bf16.msra.mxu0 %v3679
    %3913 = vmatprep.subr.bf16.mxu0 %v3683
    %3914 = vmatpush1.bf16.msra.mxu0 %v3682
    %3915 = vmatprep.subr.bf16.mxu0 %v3686
    %3916 = vmatpush1.bf16.msra.mxu0 %v3685
    %3917 = vmatprep.subr.bf16.mxu0 %v3689
    %3918 = vmatpush1.bf16.msra.mxu0 %v3688
    %3919 = vmatprep.subr.bf16.mxu0 %v3692
    %3920 = vmatpush1.bf16.msra.mxu0 %v3691
    %3921 = vmatprep.subr.bf16.mxu0 %v3695
    %3922 = vmatpush1.bf16.msra.mxu0 %v3694
    %3923 = vmatprep.subr.bf16.mxu0 %v3698
    %3924 = vmatpush1.bf16.msra.mxu0 %v3697
    %3925 = vmatprep.subr.bf16.mxu0 %v3701
    %3926 = vmatpush1.bf16.msra.mxu0 %v3700
    %3927 = vmatprep.subr.bf16.mxu0 %v3704
    %3928 = vmatpush1.bf16.msra.mxu0 %v3703
    %3929 = vmatprep.subr.bf16.mxu0 %v3707
    %3930 = vmatpush1.bf16.msra.mxu0 %v3706
    %3931 = vmatprep.subr.bf16.mxu0 %v3710
    %3932 = vmatpush1.bf16.msra.mxu0 %v3709
    %3933 = vmatprep.subr.bf16.mxu0 %v3713
    %3934 = vmatpush1.bf16.msra.mxu0 %v3712
    %3935 = vmatprep.subr.bf16.mxu0 %v3716
    %3936 = vmatpush1.bf16.msra.mxu0 %v3715
    %3937 = vmatprep.subr.bf16.mxu0 %v3719
    %3938 = vmatpush1.bf16.msra.mxu0 %v3718
    %3939 = vmatprep.subr.bf16.mxu0 %v3722
    %3940 = vmatpush1.bf16.msra.mxu0 %v3721
    %3941 = vmatprep.mubr.bf16.mxu0 %v3049
    %3942 = vmatmul.mubr.bf16.gmra.mrb[0].mxu0 %v3048
    %v3943 = vpop.f32.mrb[0].mxu0
    %v3944 = vadd.f32 %v3903, %v3943
    %v3945 = vpop.f32.mrb[0].mxu0
    %v3946 = vadd.f32 %v3905, %v3945
    %v3947 = vpop.f32.mrb[0].mxu0
    %v3948 = vpop.f32.mrb[0].mxu0
    %3949 = vdwg.mxu0
    %3950 = vmatprep.subr.bf16.mxu0 %v3725
    %3951 = vmatpush1.bf16.msra.mxu0 %v3724
    %3952 = vmatprep.subr.bf16.mxu0 %v3728
    %3953 = vmatpush1.bf16.msra.mxu0 %v3727
    %3954 = vmatprep.subr.bf16.mxu0 %v3731
    %3955 = vmatpush1.bf16.msra.mxu0 %v3730
    %3956 = vmatprep.subr.bf16.mxu0 %v3734
    %3957 = vmatpush1.bf16.msra.mxu0 %v3733
    %3958 = vmatprep.subr.bf16.mxu0 %v3737
    %3959 = vmatpush1.bf16.msra.mxu0 %v3736
    %3960 = vmatprep.subr.bf16.mxu0 %v3740
    %3961 = vmatpush1.bf16.msra.mxu0 %v3739
    %3962 = vmatprep.subr.bf16.mxu0 %v3743
    %3963 = vmatpush1.bf16.msra.mxu0 %v3742
    %3964 = vmatprep.subr.bf16.mxu0 %v3746
    %3965 = vmatpush1.bf16.msra.mxu0 %v3745
    %3966 = vmatprep.subr.bf16.mxu0 0
    %3967 = vmatpush1.bf16.msra.mxu0 0
    %3968 = vmatprep.subr.bf16.mxu0 0
    %3969 = vmatpush1.bf16.msra.mxu0 0
    %3970 = vmatprep.subr.bf16.mxu0 0
    %3971 = vmatpush1.bf16.msra.mxu0 0
    %3972 = vmatprep.subr.bf16.mxu0 0
    %3973 = vmatpush1.bf16.msra.mxu0 0
    %3974 = vmatprep.subr.bf16.mxu0 0
    %3975 = vmatpush1.bf16.msra.mxu0 0
    %3976 = vmatprep.subr.bf16.mxu0 0
    %3977 = vmatpush1.bf16.msra.mxu0 0
    %3978 = vmatprep.subr.bf16.mxu0 0
    %3979 = vmatpush1.bf16.msra.mxu0 0
    %3980 = vmatprep.subr.bf16.mxu0 0
    %3981 = vmatpush1.bf16.msra.mxu0 0
    %3982 = vmatprep.mubr.bf16.mxu0 0
    %3983 = vmatmul.mubr.bf16.gmra.mrb[0].mxu0 %v3050
    %v3984 = vpop.f32.mrb[0].mxu0
    %v3985 = vadd.f32 %v3944, %v3984
    %v3986 = vpop.f32.mrb[0].mxu0
    %v3987 = vadd.f32 %v3946, %v3986
    %v3988 = vpop.f32.mrb[0].mxu0
    %v3989 = vpop.f32.mrb[0].mxu0
    %3990 = vdwg.mxu0
    %3991 = vmatprep.subr.bf16.mxu0 0
    %3992 = vmatpush1.bf16.msra.mxu0 %v3630
    %3993 = vmatprep.subr.bf16.mxu0 0
    %3994 = vmatpush1.bf16.msra.mxu0 %v3633
    %3995 = vmatprep.subr.bf16.mxu0 0
    %3996 = vmatpush1.bf16.msra.mxu0 %v3636
    %3997 = vmatprep.subr.bf16.mxu0 0
    %3998 = vmatpush1.bf16.msra.mxu0 %v3639
    %3999 = vmatprep.subr.bf16.mxu0 0
    %4000 = vmatpush1.bf16.msra.mxu0 %v3642
    %4001 = vmatprep.subr.bf16.mxu0 0
    %4002 = vmatpush1.bf16.msra.mxu0 %v3645
    %4003 = vmatprep.subr.bf16.mxu0 0
    %4004 = vmatpush1.bf16.msra.mxu0 %v3648
    %4005 = vmatprep.subr.bf16.mxu0 0
    %4006 = vmatpush1.bf16.msra.mxu0 %v3651
    %4007 = vmatprep.subr.bf16.mxu0 0
    %4008 = vmatpush1.bf16.msra.mxu0 %v3654
    %4009 = vmatprep.subr.bf16.mxu0 0
    %4010 = vmatpush1.bf16.msra.mxu0 %v3657
    %4011 = vmatprep.subr.bf16.mxu0 0
    %4012 = vmatpush1.bf16.msra.mxu0 %v3660
    %4013 = vmatprep.subr.bf16.mxu0 0
    %4014 = vmatpush1.bf16.msra.mxu0 %v3663
    %4015 = vmatprep.subr.bf16.mxu0 0
    %4016 = vmatpush1.bf16.msra.mxu0 %v3666
    %4017 = vmatprep.subr.bf16.mxu0 0
    %4018 = vmatpush1.bf16.msra.mxu0 %v3669
    %4019 = vmatprep.subr.bf16.mxu0 0
    %4020 = vmatpush1.bf16.msra.mxu0 %v3672
    %4021 = vmatprep.subr.bf16.mxu0 0
    %4022 = vmatpush1.bf16.msra.mxu0 %v3675
    %4023 = vmatprep.mubr.bf16.mxu0 %v3047
    %4024 = vmatmul.mubr.bf16.gmra.mrb[0].mxu0 %v3046
    %v4025 = vpop.f32.mrb[0].mxu0
    %v4026 = vadd.f32 %v3224, %v4025
    %v4027 = vpop.f32.mrb[0].mxu0
    %v4028 = vpop.f32.mrb[0].mxu0
    %v4029 = vpop.f32.mrb[0].mxu0
    %4030 = vdwg.mxu0
    %4031 = vmatprep.subr.bf16.mxu0 0
    %4032 = vmatpush1.bf16.msra.mxu0 %v3678
    %4033 = vmatprep.subr.bf16.mxu0 0
    %4034 = vmatpush1.bf16.msra.mxu0 %v3681
    %4035 = vmatprep.subr.bf16.mxu0 0
    %4036 = vmatpush1.bf16.msra.mxu0 %v3684
    %4037 = vmatprep.subr.bf16.mxu0 0
    %4038 = vmatpush1.bf16.msra.mxu0 %v3687
    %4039 = vmatprep.subr.bf16.mxu0 0
    %4040 = vmatpush1.bf16.msra.mxu0 %v3690
    %4041 = vmatprep.subr.bf16.mxu0 0
    %4042 = vmatpush1.bf16.msra.mxu0 %v3693
    %4043 = vmatprep.subr.bf16.mxu0 0
    %4044 = vmatpush1.bf16.msra.mxu0 %v3696
    %4045 = vmatprep.subr.bf16.mxu0 0
    %4046 = vmatpush1.bf16.msra.mxu0 %v3699
    %4047 = vmatprep.subr.bf16.mxu0 0
    %4048 = vmatpush1.bf16.msra.mxu0 %v3702
    %4049 = vmatprep.subr.bf16.mxu0 0
    %4050 = vmatpush1.bf16.msra.mxu0 %v3705
    %4051 = vmatprep.subr.bf16.mxu0 0
    %4052 = vmatpush1.bf16.msra.mxu0 %v3708
    %4053 = vmatprep.subr.bf16.mxu0 0
    %4054 = vmatpush1.bf16.msra.mxu0 %v3711
    %4055 = vmatprep.subr.bf16.mxu0 0
    %4056 = vmatpush1.bf16.msra.mxu0 %v3714
    %4057 = vmatprep.subr.bf16.mxu0 0
    %4058 = vmatpush1.bf16.msra.mxu0 %v3717
    %4059 = vmatprep.subr.bf16.mxu0 0
    %4060 = vmatpush1.bf16.msra.mxu0 %v3720
    %4061 = vmatprep.subr.bf16.mxu0 0
    %4062 = vmatpush1.bf16.msra.mxu0 %v3723
    %4063 = vmatprep.mubr.bf16.mxu0 %v3049
    %4064 = vmatmul.mubr.bf16.gmra.mrb[0].mxu0 %v3048
    %v4065 = vpop.f32.mrb[0].mxu0
    %v4066 = vadd.f32 %v4026, %v4065
    %v4067 = vpop.f32.mrb[0].mxu0
    %v4068 = vpop.f32.mrb[0].mxu0
    %v4069 = vpop.f32.mrb[0].mxu0
    %4070 = vdwg.mxu0
    %4071 = vmatprep.subr.bf16.mxu0 0
    %4072 = vmatpush1.bf16.msra.mxu0 %v3726
    %4073 = vmatprep.subr.bf16.mxu0 0
    %4074 = vmatpush1.bf16.msra.mxu0 %v3729
    %4075 = vmatprep.subr.bf16.mxu0 0
    %4076 = vmatpush1.bf16.msra.mxu0 %v3732
    %4077 = vmatprep.subr.bf16.mxu0 0
    %4078 = vmatpush1.bf16.msra.mxu0 %v3735
    %4079 = vmatprep.subr.bf16.mxu0 0
    %4080 = vmatpush1.bf16.msra.mxu0 %v3738
    %4081 = vmatprep.subr.bf16.mxu0 0
    %4082 = vmatpush1.bf16.msra.mxu0 %v3741
    %4083 = vmatprep.subr.bf16.mxu0 0
    %4084 = vmatpush1.bf16.msra.mxu0 %v3744
    %4085 = vmatprep.subr.bf16.mxu0 0
    %4086 = vmatpush1.bf16.msra.mxu0 %v3747
    %4087 = vmatprep.subr.bf16.mxu0 0
    %4088 = vmatpush1.bf16.msra.mxu0 0
    %4089 = vmatprep.subr.bf16.mxu0 0
    %4090 = vmatpush1.bf16.msra.mxu0 0
    %4091 = vmatprep.subr.bf16.mxu0 0
    %4092 = vmatpush1.bf16.msra.mxu0 0
    %4093 = vmatprep.subr.bf16.mxu0 0
    %4094 = vmatpush1.bf16.msra.mxu0 0
    %4095 = vmatprep.subr.bf16.mxu0 0
    %4096 = vmatpush1.bf16.msra.mxu0 0
    %4097 = vmatprep.subr.bf16.mxu0 0
    %4098 = vmatpush1.bf16.msra.mxu0 0
    %4099 = vmatprep.subr.bf16.mxu0 0
    %4100 = vmatpush1.bf16.msra.mxu0 0
    %4101 = vmatprep.subr.bf16.mxu0 0
    %4102 = vmatpush1.bf16.msra.mxu0 0
    %4103 = vmatprep.mubr.bf16.mxu0 0
    %4104 = vmatmul.mubr.bf16.gmra.mrb[0].mxu0 %v3050
    %v4105 = vpop.f32.mrb[0].mxu0
    %v4106 = vadd.f32 %v4066, %v4105
    %v4107 = vpop.f32.mrb[0].mxu0
    %v4108 = vpop.f32.mrb[0].mxu0
    %v4109 = vpop.f32.mrb[0].mxu0
    %4110 = vdwg.mxu0
    %v4111 = vpack.c.bf16 %v3985, %v3985
    %v4112 = vpack.c.bf16 %v3987, %v3987
    %v4113 = vpack.c.bf16 %v4106, %v4106
    %vm4114 = vcmp.gt.bf16.partialorder %v4111, 0
    %vm4115 = vcmp.gt.bf16.partialorder %v4112, 0
    %vm4116 = vcmp.gt.bf16.partialorder %v4113, 0
    %v4117 = vmul.bf16 %v4111, 1009007652
    %v4118 = vmul.bf16 %v4112, 1009007652
    %v4119 = vmul.bf16 %v4113, 1009007652
    %v4120 = vsel %vm4114, %v4111, %v4117
    %v4121 = vsel %vm4115, %v4112, %v4118
    %v4122 = vsel %vm4116, %v4113, %v4119
    %v4123 = vld [vmem:[#allocation11] sm:$0xff]
    %v4124 = vld [vmem:[#allocation11 + $0x8] sm:$0xff]
    %v4125 = vld [vmem:[#allocation11 + $0x10] sm:$0xff]
    %v4126 = vld [vmem:[#allocation11 + $0x18] sm:$0xff]
    %v4127 = vld [vmem:[#allocation11 + $0x20] sm:$0xff]
    %v4128 = vld [vmem:[#allocation11 + $0x28] sm:$0xff]
    %v4129 = vld [vmem:[#allocation11 + $0x30] sm:$0xff]
    %v4130 = vld [vmem:[#allocation11 + $0x38] sm:$0xff]
    %v4131 = vld [vmem:[#allocation11 + $0x40] sm:$0xff]
    %v4132 = vld [vmem:[#allocation11 + $0x48] sm:$0xff]
    %v4133 = vld [vmem:[#allocation11 + $0x50] sm:$0xff]
    %v4134 = vld [vmem:[#allocation11 + $0x58] sm:$0xff]
    %v4135 = vld [vmem:[#allocation11 + $0x60] sm:$0xff]
    %v4136 = vld [vmem:[#allocation11 + $0x68] sm:$0xff]
    %v4137 = vld [vmem:[#allocation11 + $0x70] sm:$0xff]
    %v4138 = vld [vmem:[#allocation11 + $0x78] sm:$0xff]
    %v4139 = vld [vmem:[#allocation11 + $0x80] sm:$0xff]
    %v4140 = vld [vmem:[#allocation11 + $0x88] sm:$0xff]
    %v4141 = vld [vmem:[#allocation11 + $0x90] sm:$0xff]
    %v4142 = vld [vmem:[#allocation11 + $0x98] sm:$0xff]
    %v4143 = vld [vmem:[#allocation11 + $0xa0] sm:$0xff]
    %v4144 = vld [vmem:[#allocation11 + $0xa8] sm:$0xff]
    %v4145 = vld [vmem:[#allocation11 + $0xb0] sm:$0xff]
    %v4146 = vld [vmem:[#allocation11 + $0xb8] sm:$0xff]
    %v4147 = vld [vmem:[#allocation11 + $0xc0] sm:$0xff]
    %v4148 = vld [vmem:[#allocation11 + $0xc8] sm:$0xff]
    %v4149 = vld [vmem:[#allocation11 + $0xd0] sm:$0xff]
    %v4150 = vld [vmem:[#allocation11 + $0xd8] sm:$0xff]
    %v4151 = vld [vmem:[#allocation11 + $0xe0] sm:$0xff]
    %v4152 = vld [vmem:[#allocation11 + $0xe8] sm:$0xff]
    %v4153 = vld [vmem:[#allocation11 + $0xf0] sm:$0xff]
    %v4154 = vld [vmem:[#allocation11 + $0xf8] sm:$0xff]
    %v4155 = vld [vmem:[#allocation11 + $0x100] sm:$0xff]
    %v4156 = vld [vmem:[#allocation11 + $0x108] sm:$0xff]
    %v4157 = vld [vmem:[#allocation11 + $0x110] sm:$0xff]
    %v4158 = vld [vmem:[#allocation11 + $0x118] sm:$0xff]
    %v4159 = vld [vmem:[#allocation11 + $0x120] sm:$0xff]
    %v4160 = vld [vmem:[#allocation11 + $0x128] sm:$0xff]
    %v4161 = vld [vmem:[#allocation11 + $0x130] sm:$0xff]
    %v4162 = vld [vmem:[#allocation11 + $0x138] sm:$0xff]
    %v4163 = vld [vmem:[#allocation11 + $0x140] sm:$0xff]
    %v4164 = vld [vmem:[#allocation11 + $0x148] sm:$0xff]
    %v4165 = vld [vmem:[#allocation11 + $0x150] sm:$0xff]
    %v4166 = vld [vmem:[#allocation11 + $0x158] sm:$0xff]
    %v4167 = vld [vmem:[#allocation11 + $0x160] sm:$0xff]
    %v4168 = vld [vmem:[#allocation11 + $0x168] sm:$0xff]
    %v4169 = vld [vmem:[#allocation11 + $0x170] sm:$0xff]
    %v4170 = vld [vmem:[#allocation11 + $0x178] sm:$0xff]
    %v4171 = vld [vmem:[#allocation13] sm:$0x3]
    %v4173 = vlaneseq
    %v4174 = vshrl.u32 %v4173, 7
    %v4175 = vsub.s32 0, %v4174
    %v4176 = vrot.slane %v4171, %v4175
    %v4177 = vlaneseq
    %v4178 = vshrl.u32 %v4177, 7
    %v4179 = vsub.s32 1, %v4178
    %v4180 = vrot.slane %v4171, %v4179
    %v4231 = vunpack.c.l.b16 %v4123
    %v4232 = vunpack.c.h.b16 %v4123
    %v4233 = vunpack.c.l.b16 %v4124
    %v4234 = vunpack.c.h.b16 %v4124
    %v4235 = vunpack.c.l.b16 %v4125
    %v4236 = vunpack.c.h.b16 %v4125
    %v4237 = vunpack.c.l.b16 %v4126
    %v4238 = vunpack.c.h.b16 %v4126
    %v4239 = vunpack.c.l.b16 %v4127
    %v4240 = vunpack.c.h.b16 %v4127
    %v4241 = vunpack.c.l.b16 %v4128
    %v4242 = vunpack.c.h.b16 %v4128
    %v4243 = vunpack.c.l.b16 %v4129
    %v4244 = vunpack.c.h.b16 %v4129
    %v4245 = vunpack.c.l.b16 %v4130
    %v4246 = vunpack.c.h.b16 %v4130
    %v4247 = vunpack.c.l.b16 %v4131
    %v4248 = vunpack.c.h.b16 %v4131
    %v4249 = vunpack.c.l.b16 %v4132
    %v4250 = vunpack.c.h.b16 %v4132
    %v4251 = vunpack.c.l.b16 %v4133
    %v4252 = vunpack.c.h.b16 %v4133
    %v4253 = vunpack.c.l.b16 %v4134
    %v4254 = vunpack.c.h.b16 %v4134
    %v4255 = vunpack.c.l.b16 %v4135
    %v4256 = vunpack.c.h.b16 %v4135
    %v4257 = vunpack.c.l.b16 %v4136
    %v4258 = vunpack.c.h.b16 %v4136
    %v4259 = vunpack.c.l.b16 %v4137
    %v4260 = vunpack.c.h.b16 %v4137
    %v4261 = vunpack.c.l.b16 %v4138
    %v4262 = vunpack.c.h.b16 %v4138
    %v4263 = vunpack.c.l.b16 %v4139
    %v4264 = vunpack.c.h.b16 %v4139
    %v4265 = vunpack.c.l.b16 %v4140
    %v4266 = vunpack.c.h.b16 %v4140
    %v4267 = vunpack.c.l.b16 %v4141
    %v4268 = vunpack.c.h.b16 %v4141
    %v4269 = vunpack.c.l.b16 %v4142
    %v4270 = vunpack.c.h.b16 %v4142
    %v4271 = vunpack.c.l.b16 %v4143
    %v4272 = vunpack.c.h.b16 %v4143
    %v4273 = vunpack.c.l.b16 %v4144
    %v4274 = vunpack.c.h.b16 %v4144
    %v4275 = vunpack.c.l.b16 %v4145
    %v4276 = vunpack.c.h.b16 %v4145
    %v4277 = vunpack.c.l.b16 %v4146
    %v4278 = vunpack.c.h.b16 %v4146
    %v4279 = vunpack.c.l.b16 %v4147
    %v4280 = vunpack.c.h.b16 %v4147
    %v4281 = vunpack.c.l.b16 %v4148
    %v4282 = vunpack.c.h.b16 %v4148
    %v4283 = vunpack.c.l.b16 %v4149
    %v4284 = vunpack.c.h.b16 %v4149
    %v4285 = vunpack.c.l.b16 %v4150
    %v4286 = vunpack.c.h.b16 %v4150
    %v4287 = vunpack.c.l.b16 %v4151
    %v4288 = vunpack.c.h.b16 %v4151
    %v4289 = vunpack.c.l.b16 %v4152
    %v4290 = vunpack.c.h.b16 %v4152
    %v4291 = vunpack.c.l.b16 %v4153
    %v4292 = vunpack.c.h.b16 %v4153
    %v4293 = vunpack.c.l.b16 %v4154
    %v4294 = vunpack.c.h.b16 %v4154
    %v4295 = vunpack.c.l.b16 %v4155
    %v4296 = vunpack.c.h.b16 %v4155
    %v4297 = vunpack.c.l.b16 %v4156
    %v4298 = vunpack.c.h.b16 %v4156
    %v4299 = vunpack.c.l.b16 %v4157
    %v4300 = vunpack.c.h.b16 %v4157
    %v4301 = vunpack.c.l.b16 %v4158
    %v4302 = vunpack.c.h.b16 %v4158
    %v4303 = vunpack.c.l.b16 %v4159
    %v4304 = vunpack.c.h.b16 %v4159
    %v4305 = vunpack.c.l.b16 %v4160
    %v4306 = vunpack.c.h.b16 %v4160
    %v4307 = vunpack.c.l.b16 %v4161
    %v4308 = vunpack.c.h.b16 %v4161
    %v4309 = vunpack.c.l.b16 %v4162
    %v4310 = vunpack.c.h.b16 %v4162
    %v4311 = vunpack.c.l.b16 %v4163
    %v4312 = vunpack.c.h.b16 %v4163
    %v4313 = vunpack.c.l.b16 %v4164
    %v4314 = vunpack.c.h.b16 %v4164
    %v4315 = vunpack.c.l.b16 %v4165
    %v4316 = vunpack.c.h.b16 %v4165
    %v4317 = vunpack.c.l.b16 %v4166
    %v4318 = vunpack.c.h.b16 %v4166
    %v4319 = vunpack.c.l.b16 %v4167
    %v4320 = vunpack.c.h.b16 %v4167
    %v4321 = vunpack.c.l.b16 %v4168
    %v4322 = vunpack.c.h.b16 %v4168
    %v4323 = vunpack.c.l.b16 %v4169
    %v4324 = vunpack.c.h.b16 %v4169
    %v4325 = vunpack.c.l.b16 %v4170
    %v4326 = vunpack.c.h.b16 %v4170
    %v4327 = vpack.c.b16 %v4233, %v4231
    %v4328 = vpack.c.b16 %v4234, %v4232
    %v4329 = vpack.c.b16 %v4237, %v4235
    %v4330 = vpack.c.b16 %v4238, %v4236
    %v4331 = vpack.c.b16 %v4241, %v4239
    %v4332 = vpack.c.b16 %v4242, %v4240
    %v4333 = vpack.c.b16 %v4245, %v4243
    %v4334 = vpack.c.b16 %v4246, %v4244
    %v4335 = vpack.c.b16 %v4249, %v4247
    %v4336 = vpack.c.b16 %v4250, %v4248
    %v4337 = vpack.c.b16 %v4253, %v4251
    %v4338 = vpack.c.b16 %v4254, %v4252
    %v4339 = vpack.c.b16 %v4257, %v4255
    %v4340 = vpack.c.b16 %v4258, %v4256
    %v4341 = vpack.c.b16 %v4261, %v4259
    %v4342 = vpack.c.b16 %v4262, %v4260
    %v4343 = vpack.c.b16 %v4265, %v4263
    %v4344 = vpack.c.b16 %v4266, %v4264
    %v4345 = vpack.c.b16 %v4269, %v4267
    %v4346 = vpack.c.b16 %v4270, %v4268
    %v4347 = vpack.c.b16 %v4273, %v4271
    %v4348 = vpack.c.b16 %v4274, %v4272
    %v4349 = vpack.c.b16 %v4277, %v4275
    %v4350 = vpack.c.b16 %v4278, %v4276
    %v4351 = vpack.c.b16 %v4281, %v4279
    %v4352 = vpack.c.b16 %v4282, %v4280
    %v4353 = vpack.c.b16 %v4285, %v4283
    %v4354 = vpack.c.b16 %v4286, %v4284
    %v4355 = vpack.c.b16 %v4289, %v4287
    %v4356 = vpack.c.b16 %v4290, %v4288
    %v4357 = vpack.c.b16 %v4293, %v4291
    %v4358 = vpack.c.b16 %v4294, %v4292
    %v4359 = vpack.c.b16 %v4297, %v4295
    %v4360 = vpack.c.b16 %v4298, %v4296
    %v4361 = vpack.c.b16 %v4301, %v4299
    %v4362 = vpack.c.b16 %v4302, %v4300
    %v4363 = vpack.c.b16 %v4305, %v4303
    %v4364 = vpack.c.b16 %v4306, %v4304
    %v4365 = vpack.c.b16 %v4309, %v4307
    %v4366 = vpack.c.b16 %v4310, %v4308
    %v4367 = vpack.c.b16 %v4313, %v4311
    %v4368 = vpack.c.b16 %v4314, %v4312
    %v4369 = vpack.c.b16 %v4317, %v4315
    %v4370 = vpack.c.b16 %v4318, %v4316
    %v4371 = vpack.c.b16 %v4321, %v4319
    %v4372 = vpack.c.b16 %v4322, %v4320
    %v4373 = vpack.c.b16 %v4325, %v4323
    %v4374 = vpack.c.b16 %v4326, %v4324
    %4423 = vmatprep.subr.bf16.mxu0 %v4328
    %4424 = vmatpush1.bf16.msra.mxu0 %v4327
    %4425 = vmatprep.subr.bf16.mxu0 %v4330
    %4426 = vmatpush1.bf16.msra.mxu0 %v4329
    %4427 = vmatprep.subr.bf16.mxu0 %v4332
    %4428 = vmatpush1.bf16.msra.mxu0 %v4331
    %4429 = vmatprep.subr.bf16.mxu0 %v4334
    %4430 = vmatpush1.bf16.msra.mxu0 %v4333
    %4431 = vmatprep.subr.bf16.mxu0 %v4336
    %4432 = vmatpush1.bf16.msra.mxu0 %v4335
    %4433 = vmatprep.subr.bf16.mxu0 %v4338
    %4434 = vmatpush1.bf16.msra.mxu0 %v4337
    %4435 = vmatprep.subr.bf16.mxu0 %v4340
    %4436 = vmatpush1.bf16.msra.mxu0 %v4339
    %4437 = vmatprep.subr.bf16.mxu0 %v4342
    %4438 = vmatpush1.bf16.msra.mxu0 %v4341
    %4439 = vmatprep.subr.bf16.mxu0 %v4344
    %4440 = vmatpush1.bf16.msra.mxu0 %v4343
    %4441 = vmatprep.subr.bf16.mxu0 %v4346
    %4442 = vmatpush1.bf16.msra.mxu0 %v4345
    %4443 = vmatprep.subr.bf16.mxu0 %v4348
    %4444 = vmatpush1.bf16.msra.mxu0 %v4347
    %4445 = vmatprep.subr.bf16.mxu0 %v4350
    %4446 = vmatpush1.bf16.msra.mxu0 %v4349
    %4447 = vmatprep.subr.bf16.mxu0 %v4352
    %4448 = vmatpush1.bf16.msra.mxu0 %v4351
    %4449 = vmatprep.subr.bf16.mxu0 %v4354
    %4450 = vmatpush1.bf16.msra.mxu0 %v4353
    %4451 = vmatprep.subr.bf16.mxu0 %v4356
    %4452 = vmatpush1.bf16.msra.mxu0 %v4355
    %4453 = vmatprep.subr.bf16.mxu0 %v4358
    %4454 = vmatpush1.bf16.msra.mxu0 %v4357
    %4455 = vmatprep.mubr.bf16.mxu0 %v4121
    %4456 = vmatmul.mubr.bf16.gmra.mrb[0].mxu0 %v4120
    %v4457 = vpop.f32.mrb[0].mxu0
    %v4458 = vadd.f32 %v4176, %v4457
    %v4459 = vpop.f32.mrb[0].mxu0
    %v4460 = vadd.f32 %v4180, %v4459
    %v4461 = vpop.f32.mrb[0].mxu0
    %v4462 = vpop.f32.mrb[0].mxu0
    %4463 = vdwg.mxu0
    %4464 = vmatprep.subr.bf16.mxu0 %v4360
    %4465 = vmatpush1.bf16.msra.mxu0 %v4359
    %4466 = vmatprep.subr.bf16.mxu0 %v4362
    %4467 = vmatpush1.bf16.msra.mxu0 %v4361
    %4468 = vmatprep.subr.bf16.mxu0 %v4364
    %4469 = vmatpush1.bf16.msra.mxu0 %v4363
    %4470 = vmatprep.subr.bf16.mxu0 %v4366
    %4471 = vmatpush1.bf16.msra.mxu0 %v4365
    %4472 = vmatprep.subr.bf16.mxu0 %v4368
    %4473 = vmatpush1.bf16.msra.mxu0 %v4367
    %4474 = vmatprep.subr.bf16.mxu0 %v4370
    %4475 = vmatpush1.bf16.msra.mxu0 %v4369
    %4476 = vmatprep.subr.bf16.mxu0 %v4372
    %4477 = vmatpush1.bf16.msra.mxu0 %v4371
    %4478 = vmatprep.subr.bf16.mxu0 %v4374
    %4479 = vmatpush1.bf16.msra.mxu0 %v4373
    %4480 = vmatprep.subr.bf16.mxu0 0
    %4481 = vmatpush1.bf16.msra.mxu0 0
    %4482 = vmatprep.subr.bf16.mxu0 0
    %4483 = vmatpush1.bf16.msra.mxu0 0
    %4484 = vmatprep.subr.bf16.mxu0 0
    %4485 = vmatpush1.bf16.msra.mxu0 0
    %4486 = vmatprep.subr.bf16.mxu0 0
    %4487 = vmatpush1.bf16.msra.mxu0 0
    %4488 = vmatprep.subr.bf16.mxu0 0
    %4489 = vmatpush1.bf16.msra.mxu0 0
    %4490 = vmatprep.subr.bf16.mxu0 0
    %4491 = vmatpush1.bf16.msra.mxu0 0
    %4492 = vmatprep.subr.bf16.mxu0 0
    %4493 = vmatpush1.bf16.msra.mxu0 0
    %4494 = vmatprep.subr.bf16.mxu0 0
    %4495 = vmatpush1.bf16.msra.mxu0 0
    %4496 = vmatprep.mubr.bf16.mxu0 0
    %4497 = vmatmul.mubr.bf16.gmra.mrb[0].mxu0 %v4122
    %v4498 = vpop.f32.mrb[0].mxu0
    %v4499 = vadd.f32 %v4458, %v4498
    %v4500 = vpop.f32.mrb[0].mxu0
    %v4501 = vadd.f32 %v4460, %v4500
    %v4502 = vpop.f32.mrb[0].mxu0
    %v4503 = vpop.f32.mrb[0].mxu0
    %4504 = vdwg.mxu0
    %v4505 = vpack.c.bf16 %v4499, %v4499
    %v4506 = vpack.c.bf16 %v4501, %v4501
    %vm4507 = vcmp.gt.bf16.partialorder %v4505, 0
    %vm4508 = vcmp.gt.bf16.partialorder %v4506, 0
    %v4509 = vmul.bf16 %v4505, 1009007652
    %v4510 = vmul.bf16 %v4506, 1009007652
    %v4511 = vsel %vm4507, %v4505, %v4509
    %v4512 = vsel %vm4508, %v4506, %v4510
    %v4513 = vld [vmem:[#allocation14] sm:$0x3]
    %v4514 = vunpack.c.l.bf16 %v4511
    %v4515 = vunpack.c.l.bf16 %v4512
    %v4517 = vlaneseq
    %v4518 = vshrl.u32 %v4517, 7
    %v4519 = vsub.s32 0, %v4518
    %v4520 = vrot.slane %v4513, %v4519
    %v4521 = vlaneseq
    %v4522 = vshrl.u32 %v4521, 7
    %v4523 = vsub.s32 1, %v4522
    %v4524 = vrot.slane %v4513, %v4523
    %v4527 = vmul.f32 %v4514, %v4520
    %v4528 = vmul.f32 %v4515, %v4524
    %v4529 = vadd.f32 %v4527, %v4528
    %4530 = vadd.xlane.f32.xlu0 %v4529
    %v4531 = vpop.xlane.xlu0 %4530
    %v4532 = vld [vmem:[#allocation2] sm:$0x1]
    %v4534 = vlaneseq
    %v4535 = vshrl.u32 %v4534, 7
    %v4536 = vsub.s32 0, %v4535
    %v4537 = vrot.slane %v4532, %v4536
    %v4539 = vadd.f32 %v4531, %v4537
    %v4540 = vand.u32 2147483647, %v4539
    %v4541 = vsub.f32 0.0, %v4540
    %v4542 = vmul.f32 %v4541, 1.442695
    %v4543 = vpow.pop %v4542
    %vm4544 = vcmp.ge.f32.partialorder %v4539, 0.0
    %v4545 = vsel %vm4544, 1.0, %v4543
    %v4546 = vadd.f32 %v4543, 1.0
    %v4547 = vrcp.pop %v4546
    %v4548 = vmul.f32 %v4545, %v4547
    %vm4549 = vcmask 7168
    %4550 = vst.msk [vmem:[%s9] sm:$0xff] %vm4549, %v4548
    // Predicated region
    $region70: #{tpu_custom_call.1} parent=1 // pred_check
      _
    $region71: #{tpu_custom_call.1} parent=1 // pred_check_branch
      %4552 = sbr.rel (0) target = $region73
    $region72: #{tpu_custom_call.1} parent=1 // pred_region
      _
    $region73: #{tpu_custom_call.1} parent=1 // pred_fallthru
      _
    // Predicated region
    $region74: #{tpu_custom_call.1} parent=1 // pred_check
      _
    $region75: #{tpu_custom_call.1} parent=1 // pred_check_branch
      %4554 = sbr.rel (0) target = $region77
    $region76: #{tpu_custom_call.1} parent=1 // pred_region
      _
    $region77: #{tpu_custom_call.1} parent=1 // pred_fallthru
      _
    %4555 = vsyncpa [#allocation4], 1
    %4556 = vsyncpa [#allocation6], 1
    %4557 = vsyncpa [#allocation9], 1
    %4558 = vsyncpa [#allocation12], 1
    %4559 = vsyncpa [#allocation15], 1

</llo_original>
